<compile_context>
chip_gen: v5e
topology: v5e:2x2
jax: 0.10.0
libtpu: 0.0.40
codegen_flags: <defaults>
</compile_context>

<pallas_src>
import jax
import jax.numpy as jnp
from jax import lax
from jax.experimental import pallas as pl
from jax.experimental.pallas import tpu as pltpu

NUM_TAGS = 36  # number of distinct LSTMCells in the torch module


def _pos_lstm_kernel(tags_ref,                 # (S,)          int32, SMEM
                     emb_ref,                  # (S, 1, E)     f32,   VMEM
                     wcat_ref,                 # (T, E+H, 4H)  f32,   VMEM resident
                     b_ref,                    # (T, 1, 4H)    f32,   VMEM resident
                     h0_ref, c0_ref,           # (1, H)
                     fcw_ref, fcb_ref,         # (H, O), (1, O)
                     out_ref, hout_ref, cout_ref):
    S = emb_ref.shape[0]
    H = h0_ref.shape[-1]

    def step(t, carry):
        h, c = carry
        tag = tags_ref[t]                        # scalar read from SMEM
        x = emb_ref[t]                           # (1, E)
        xh = jnp.concatenate([x, h], axis=-1)    # (1, E+H)
        # Single fused MXU pass per serial step; torch gate order [i, f, g, o].
        gates = (jnp.dot(xh, wcat_ref[tag],
                         preferred_element_type=jnp.float32)
                 + b_ref[tag])                   # (1, 4H)

        # Full-vreg transcendentals, then cheap lane slices.
        sig = jax.nn.sigmoid(gates)
        tnh = jnp.tanh(gates)
        i_g = sig[:, 0:H]
        f_g = sig[:, H:2 * H]
        o_g = sig[:, 3 * H:4 * H]
        g_g = tnh[:, 2 * H:3 * H]

        c_new = f_g * c + i_g * g_g
        h_new = o_g * jnp.tanh(c_new)
        return (h_new, c_new)

    h, c = lax.fori_loop(0, S, step, (h0_ref[...], c0_ref[...]), unroll=True)

    # TODO(synk): nn.Dropout omitted (inference semantics => identity).
    logits = jnp.dot(h, fcw_ref[...],
                     preferred_element_type=jnp.float32) + fcb_ref[...]
    out_ref[...] = jax.nn.sigmoid(logits)
    hout_ref[...] = h
    cout_ref[...] = c


@jax.jit
def pos_lstm_forward(tag_ids, embeds, w_cat, bias, h0, c0, fc_w, fc_b):
    H = h0.shape[-1]
    O = fc_w.shape[-1]

    vmem = pl.BlockSpec(memory_space=pltpu.MemorySpace.VMEM)
    smem = pl.BlockSpec(memory_space=pltpu.MemorySpace.SMEM)

    out, h_T, c_T = pl.pallas_call(
        _pos_lstm_kernel,
        out_shape=(
            jax.ShapeDtypeStruct((1, O), jnp.float32),
            jax.ShapeDtypeStruct((1, H), jnp.float32),
            jax.ShapeDtypeStruct((1, H), jnp.float32),
        ),
        in_specs=[smem, vmem, vmem, vmem, vmem, vmem, vmem, vmem],
        out_specs=(vmem, vmem, vmem),
    )(tag_ids, embeds, w_cat, bias, h0, c0, fc_w, fc_b)

    # torch: out.view(batch, -1)[:, -1]  -> last sigmoid column
    return out[:, -1], (h_T, c_T)


def _reference(tag_ids, embeds, w_ih, w_hh, bias, h0, c0, fc_w, fc_b):
    """Pure-JAX reference matching nn.LSTMCell semantics (torch weight layout)."""
    S = embeds.shape[0]
    H = h0.shape[-1]
    h, c = h0, c0
    for t in range(S):
        k = int(tag_ids[t])
        x = embeds[t]                                     # (1, E)
        gates = x @ w_ih[k].T + h @ w_hh[k].T + bias[k]   # (1, 4H)
        i_g = jax.nn.sigmoid(gates[:, 0:H])
        f_g = jax.nn.sigmoid(gates[:, H:2 * H])
        g_g = jnp.tanh(gates[:, 2 * H:3 * H])
        o_g = jax.nn.sigmoid(gates[:, 3 * H:4 * H])
        c = f_g * c + i_g * g_g
        h = o_g * jnp.tanh(c)
    out = jax.nn.sigmoid(h @ fc_w + fc_b)
    return out[:, -1], (h, c)


if __name__ == "__main__":
    key = jax.random.PRNGKey(0)

    vocab_size = 64
    embedding_size = 32       # torch loops for i in range(embedding_size) => S = E
    hidden_dim = 32
    output_size = 8
    batch_size = 1            # torch .view(batch_size, embedding_size) implies B=1
    seq_len = embedding_size

    ks = jax.random.split(key, 8)

    # Frozen embedding matrix (deterministic synthetic init).
    embedding_matrix = jax.random.normal(ks[0], (vocab_size, embedding_size),
                                         jnp.float32) * 0.1

    # Input token indices (batch=1, seq=embedding_size).
    x_tokens = jax.random.randint(ks[1], (batch_size, seq_len), 0, vocab_size,
                                  dtype=jnp.int32)

    # TODO(synk): FullTagger / indexMapper (host-side NLP POS tagging) has no
    # kernel equivalent; replaced by a deterministic synthetic token->tag map.
    tag_ids = (x_tokens[0] % NUM_TAGS).astype(jnp.int32)        # (S,)

    # 36 LSTMCells worth of parameters, torch layout (4H, E)/(4H, H)/(4H,).
    scale = 1.0 / jnp.sqrt(hidden_dim)
    w_ih = jax.random.uniform(ks[2], (NUM_TAGS, 4 * hidden_dim, embedding_size),
                              jnp.float32, -scale, scale)
    w_hh = jax.random.uniform(ks[3], (NUM_TAGS, 4 * hidden_dim, hidden_dim),
                              jnp.float32, -scale, scale)
    b_ih = jax.random.uniform(ks[4], (NUM_TAGS, 4 * hidden_dim),
                              jnp.float32, -scale, scale)
    b_hh = jax.random.uniform(ks[5], (NUM_TAGS, 4 * hidden_dim),
                              jnp.float32, -scale, scale)

    fc_w_torch = jax.random.uniform(ks[6], (output_size, hidden_dim),
                                    jnp.float32, -scale, scale)
    fc_b = jax.random.uniform(ks[7], (output_size,), jnp.float32, -scale, scale)

    # Glue: embedding lookup + layout prep (plain JAX).
    embeds_2d = jnp.take(embedding_matrix, x_tokens[0], axis=0)   # (S, E)
    embeds = embeds_2d[:, None, :]                                # (S, 1, E)
    w_ih_t = jnp.transpose(w_ih, (0, 2, 1))                       # (T, E, 4H)
    w_hh_t = jnp.transpose(w_hh, (0, 2, 1))                       # (T, H, 4H)
    w_cat = jnp.concatenate([w_ih_t, w_hh_t], axis=1)             # (T, E+H, 4H)
    bias = (b_ih + b_hh)[:, None, :]                              # (T, 1, 4H)
    fc_w = fc_w_torch.T                                           # (H, O)
    fc_b2 = fc_b[None, :]                                         # (1, O)

    h0 = jnp.zeros((batch_size, hidden_dim), jnp.float32)
    c0 = jnp.zeros((batch_size, hidden_dim), jnp.float32)

    out, (h_T, c_T) = pos_lstm_forward(tag_ids, embeds, w_cat, bias,
                                       h0, c0, fc_w, fc_b2)
    jax.block_until_ready(out)

    ref_out, (ref_h, ref_c) = _reference(tag_ids, embeds, w_ih, w_hh, bias,
                                         h0, c0, fc_w, fc_b2)

    assert jnp.allclose(out, ref_out, atol=1e-4), (out, ref_out)
    assert jnp.allclose(h_T, ref_h, atol=1e-4)
    assert jnp.allclose(c_T, ref_c, atol=1e-4)

    print("KERNEL_OK")
</pallas_src>

<mosaic_0001>
module attributes {stable_mosaic.version = 11 : i64} {
  func.func @_pos_lstm_kernel(%arg0: memref<32xi32, #tpu.memory_space<smem>>, %arg1: memref<32x1x32xf32, #tpu.memory_space<vmem>>, %arg2: memref<36x64x128xf32, #tpu.memory_space<vmem>>, %arg3: memref<36x1x128xf32, #tpu.memory_space<vmem>>, %arg4: memref<1x32xf32, #tpu.memory_space<vmem>>, %arg5: memref<1x32xf32, #tpu.memory_space<vmem>>, %arg6: memref<32x8xf32, #tpu.memory_space<vmem>>, %arg7: memref<1x8xf32, #tpu.memory_space<vmem>>, %arg8: memref<1x8xf32, #tpu.memory_space<vmem>>, %arg9: memref<1x32xf32, #tpu.memory_space<vmem>>, %arg10: memref<1x32xf32, #tpu.memory_space<vmem>>) attributes {dimension_semantics = [], scalar_prefetch = 0 : i64, scratch_operands = 0 : i64, tpu.core_type = #tpu.core_type<tc>} {
    %c0 = arith.constant 0 : index
    %c0_0 = arith.constant 0 : index
    %0 = vector.load %arg4[%c0, %c0_0] : memref<1x32xf32, #tpu.memory_space<vmem>>, vector<1x32xf32>
    %c0_1 = arith.constant 0 : index
    %c0_2 = arith.constant 0 : index
    %1 = vector.load %arg5[%c0_1, %c0_2] : memref<1x32xf32, #tpu.memory_space<vmem>>, vector<1x32xf32>
    %c0_i32 = arith.constant 0 : i32
    %2 = arith.index_cast %c0_i32 : i32 to index
    %3 = memref.load %arg0[%2] : memref<32xi32, #tpu.memory_space<smem>>
    %4 = arith.index_cast %c0_i32 : i32 to index
    %c0_3 = arith.constant 0 : index
    %c0_4 = arith.constant 0 : index
    %5 = vector.load %arg1[%4, %c0_3, %c0_4] : memref<32x1x32xf32, #tpu.memory_space<vmem>>, vector<1x1x32xf32>
    %6 = vector.shape_cast %5 : vector<1x1x32xf32> to vector<1x32xf32>
    %7 = tpu.concatenate %6, %0 in 1 : vector<1x32xf32>, vector<1x32xf32> -> vector<1x64xf32>
    %8 = arith.index_cast %3 : i32 to index
    %c0_5 = arith.constant 0 : index
    %c0_6 = arith.constant 0 : index
    %9 = vector.load %arg2[%8, %c0_5, %c0_6] : memref<36x64x128xf32, #tpu.memory_space<vmem>>, vector<1x64x128xf32>
    %10 = vector.shape_cast %9 : vector<1x64x128xf32> to vector<64x128xf32>
    %cst = arith.constant dense<0.000000e+00> : vector<1x128xf32>
    %11 = tpu.matmul %7, %10, %cst {dimension_numbers = #tpu.dot_dimension_numbers<[1], [0], [0], [1], [0, 0, 1, 1], [], []>} : vector<1x64xf32>, vector<64x128xf32>, vector<1x128xf32> -> vector<1x128xf32>
    %12 = arith.index_cast %3 : i32 to index
    %c0_7 = arith.constant 0 : index
    %c0_8 = arith.constant 0 : index
    %13 = vector.load %arg3[%12, %c0_7, %c0_8] : memref<36x1x128xf32, #tpu.memory_space<vmem>>, vector<1x1x128xf32>
    %14 = vector.shape_cast %13 : vector<1x1x128xf32> to vector<1x128xf32>
    %15 = arith.addf %11, %14 : vector<1x128xf32>
    %16 = arith.negf %15 : vector<1x128xf32>
    %17 = math.exp %16 : vector<1x128xf32>
    %cst_9 = arith.constant 1.000000e+00 : f32
    %18 = vector.broadcast %cst_9 : f32 to vector<1x128xf32>
    %19 = arith.addf %18, %17 : vector<1x128xf32>
    %20 = arith.divf %18, %19 : vector<1x128xf32>
    %21 = math.tanh %15 : vector<1x128xf32>
    %22 = vector.extract_strided_slice %20 {offsets = [0, 0], sizes = [1, 32], strides = [1, 1]} : vector<1x128xf32> to vector<1x32xf32>
    %23 = vector.extract_strided_slice %20 {offsets = [0, 32], sizes = [1, 32], strides = [1, 1]} : vector<1x128xf32> to vector<1x32xf32>
    %24 = vector.extract_strided_slice %20 {offsets = [0, 96], sizes = [1, 32], strides = [1, 1]} : vector<1x128xf32> to vector<1x32xf32>
    %25 = vector.extract_strided_slice %21 {offsets = [0, 64], sizes = [1, 32], strides = [1, 1]} : vector<1x128xf32> to vector<1x32xf32>
    %26 = arith.mulf %23, %1 : vector<1x32xf32>
    %27 = arith.mulf %22, %25 : vector<1x32xf32>
    %28 = arith.addf %26, %27 : vector<1x32xf32>
    %29 = math.tanh %28 : vector<1x32xf32>
    %30 = arith.mulf %24, %29 : vector<1x32xf32>
    %c1_i32 = arith.constant 1 : i32
    %31 = arith.index_cast %c1_i32 : i32 to index
    %32 = memref.load %arg0[%31] : memref<32xi32, #tpu.memory_space<smem>>
    %33 = arith.index_cast %c1_i32 : i32 to index
    %c0_10 = arith.constant 0 : index
    %c0_11 = arith.constant 0 : index
    %34 = vector.load %arg1[%33, %c0_10, %c0_11] : memref<32x1x32xf32, #tpu.memory_space<vmem>>, vector<1x1x32xf32>
    %35 = vector.shape_cast %34 : vector<1x1x32xf32> to vector<1x32xf32>
    %36 = tpu.concatenate %35, %30 in 1 : vector<1x32xf32>, vector<1x32xf32> -> vector<1x64xf32>
    %37 = arith.index_cast %32 : i32 to index
    %c0_12 = arith.constant 0 : index
    %c0_13 = arith.constant 0 : index
    %38 = vector.load %arg2[%37, %c0_12, %c0_13] : memref<36x64x128xf32, #tpu.memory_space<vmem>>, vector<1x64x128xf32>
    %39 = vector.shape_cast %38 : vector<1x64x128xf32> to vector<64x128xf32>
    %cst_14 = arith.constant dense<0.000000e+00> : vector<1x128xf32>
    %40 = tpu.matmul %36, %39, %cst_14 {dimension_numbers = #tpu.dot_dimension_numbers<[1], [0], [0], [1], [0, 0, 1, 1], [], []>} : vector<1x64xf32>, vector<64x128xf32>, vector<1x128xf32> -> vector<1x128xf32>
    %41 = arith.index_cast %32 : i32 to index
    %c0_15 = arith.constant 0 : index
    %c0_16 = arith.constant 0 : index
    %42 = vector.load %arg3[%41, %c0_15, %c0_16] : memref<36x1x128xf32, #tpu.memory_space<vmem>>, vector<1x1x128xf32>
    %43 = vector.shape_cast %42 : vector<1x1x128xf32> to vector<1x128xf32>
    %44 = arith.addf %40, %43 : vector<1x128xf32>
    %45 = arith.negf %44 : vector<1x128xf32>
    %46 = math.exp %45 : vector<1x128xf32>
    %cst_17 = arith.constant 1.000000e+00 : f32
    %47 = vector.broadcast %cst_17 : f32 to vector<1x128xf32>
    %48 = arith.addf %47, %46 : vector<1x128xf32>
    %49 = arith.divf %47, %48 : vector<1x128xf32>
    %50 = math.tanh %44 : vector<1x128xf32>
    %51 = vector.extract_strided_slice %49 {offsets = [0, 0], sizes = [1, 32], strides = [1, 1]} : vector<1x128xf32> to vector<1x32xf32>
    %52 = vector.extract_strided_slice %49 {offsets = [0, 32], sizes = [1, 32], strides = [1, 1]} : vector<1x128xf32> to vector<1x32xf32>
    %53 = vector.extract_strided_slice %49 {offsets = [0, 96], sizes = [1, 32], strides = [1, 1]} : vector<1x128xf32> to vector<1x32xf32>
    %54 = vector.extract_strided_slice %50 {offsets = [0, 64], sizes = [1, 32], strides = [1, 1]} : vector<1x128xf32> to vector<1x32xf32>
    %55 = arith.mulf %52, %28 : vector<1x32xf32>
    %56 = arith.mulf %51, %54 : vector<1x32xf32>
    %57 = arith.addf %55, %56 : vector<1x32xf32>
    %58 = math.tanh %57 : vector<1x32xf32>
    %59 = arith.mulf %53, %58 : vector<1x32xf32>
    %c2_i32 = arith.constant 2 : i32
    %60 = arith.index_cast %c2_i32 : i32 to index
    %61 = memref.load %arg0[%60] : memref<32xi32, #tpu.memory_space<smem>>
    %62 = arith.index_cast %c2_i32 : i32 to index
    %c0_18 = arith.constant 0 : index
    %c0_19 = arith.constant 0 : index
    %63 = vector.load %arg1[%62, %c0_18, %c0_19] : memref<32x1x32xf32, #tpu.memory_space<vmem>>, vector<1x1x32xf32>
    %64 = vector.shape_cast %63 : vector<1x1x32xf32> to vector<1x32xf32>
    %65 = tpu.concatenate %64, %59 in 1 : vector<1x32xf32>, vector<1x32xf32> -> vector<1x64xf32>
    %66 = arith.index_cast %61 : i32 to index
    %c0_20 = arith.constant 0 : index
    %c0_21 = arith.constant 0 : index
    %67 = vector.load %arg2[%66, %c0_20, %c0_21] : memref<36x64x128xf32, #tpu.memory_space<vmem>>, vector<1x64x128xf32>
    %68 = vector.shape_cast %67 : vector<1x64x128xf32> to vector<64x128xf32>
    %cst_22 = arith.constant dense<0.000000e+00> : vector<1x128xf32>
    %69 = tpu.matmul %65, %68, %cst_22 {dimension_numbers = #tpu.dot_dimension_numbers<[1], [0], [0], [1], [0, 0, 1, 1], [], []>} : vector<1x64xf32>, vector<64x128xf32>, vector<1x128xf32> -> vector<1x128xf32>
    %70 = arith.index_cast %61 : i32 to index
    %c0_23 = arith.constant 0 : index
    %c0_24 = arith.constant 0 : index
    %71 = vector.load %arg3[%70, %c0_23, %c0_24] : memref<36x1x128xf32, #tpu.memory_space<vmem>>, vector<1x1x128xf32>
    %72 = vector.shape_cast %71 : vector<1x1x128xf32> to vector<1x128xf32>
    %73 = arith.addf %69, %72 : vector<1x128xf32>
    %74 = arith.negf %73 : vector<1x128xf32>
    %75 = math.exp %74 : vector<1x128xf32>
    %cst_25 = arith.constant 1.000000e+00 : f32
    %76 = vector.broadcast %cst_25 : f32 to vector<1x128xf32>
    %77 = arith.addf %76, %75 : vector<1x128xf32>
    %78 = arith.divf %76, %77 : vector<1x128xf32>
    %79 = math.tanh %73 : vector<1x128xf32>
    %80 = vector.extract_strided_slice %78 {offsets = [0, 0], sizes = [1, 32], strides = [1, 1]} : vector<1x128xf32> to vector<1x32xf32>
    %81 = vector.extract_strided_slice %78 {offsets = [0, 32], sizes = [1, 32], strides = [1, 1]} : vector<1x128xf32> to vector<1x32xf32>
    %82 = vector.extract_strided_slice %78 {offsets = [0, 96], sizes = [1, 32], strides = [1, 1]} : vector<1x128xf32> to vector<1x32xf32>
    %83 = vector.extract_strided_slice %79 {offsets = [0, 64], sizes = [1, 32], strides = [1, 1]} : vector<1x128xf32> to vector<1x32xf32>
    %84 = arith.mulf %81, %57 : vector<1x32xf32>
    %85 = arith.mulf %80, %83 : vector<1x32xf32>
    %86 = arith.addf %84, %85 : vector<1x32xf32>
    %87 = math.tanh %86 : vector<1x32xf32>
    %88 = arith.mulf %82, %87 : vector<1x32xf32>
    %c3_i32 = arith.constant 3 : i32
    %89 = arith.index_cast %c3_i32 : i32 to index
    %90 = memref.load %arg0[%89] : memref<32xi32, #tpu.memory_space<smem>>
    %91 = arith.index_cast %c3_i32 : i32 to index
    %c0_26 = arith.constant 0 : index
    %c0_27 = arith.constant 0 : index
    %92 = vector.load %arg1[%91, %c0_26, %c0_27] : memref<32x1x32xf32, #tpu.memory_space<vmem>>, vector<1x1x32xf32>
    %93 = vector.shape_cast %92 : vector<1x1x32xf32> to vector<1x32xf32>
    %94 = tpu.concatenate %93, %88 in 1 : vector<1x32xf32>, vector<1x32xf32> -> vector<1x64xf32>
    %95 = arith.index_cast %90 : i32 to index
    %c0_28 = arith.constant 0 : index
    %c0_29 = arith.constant 0 : index
    %96 = vector.load %arg2[%95, %c0_28, %c0_29] : memref<36x64x128xf32, #tpu.memory_space<vmem>>, vector<1x64x128xf32>
    %97 = vector.shape_cast %96 : vector<1x64x128xf32> to vector<64x128xf32>
    %cst_30 = arith.constant dense<0.000000e+00> : vector<1x128xf32>
    %98 = tpu.matmul %94, %97, %cst_30 {dimension_numbers = #tpu.dot_dimension_numbers<[1], [0], [0], [1], [0, 0, 1, 1], [], []>} : vector<1x64xf32>, vector<64x128xf32>, vector<1x128xf32> -> vector<1x128xf32>
    %99 = arith.index_cast %90 : i32 to index
    %c0_31 = arith.constant 0 : index
    %c0_32 = arith.constant 0 : index
    %100 = vector.load %arg3[%99, %c0_31, %c0_32] : memref<36x1x128xf32, #tpu.memory_space<vmem>>, vector<1x1x128xf32>
    %101 = vector.shape_cast %100 : vector<1x1x128xf32> to vector<1x128xf32>
    %102 = arith.addf %98, %101 : vector<1x128xf32>
    %103 = arith.negf %102 : vector<1x128xf32>
    %104 = math.exp %103 : vector<1x128xf32>
    %cst_33 = arith.constant 1.000000e+00 : f32
    %105 = vector.broadcast %cst_33 : f32 to vector<1x128xf32>
    %106 = arith.addf %105, %104 : vector<1x128xf32>
    %107 = arith.divf %105, %106 : vector<1x128xf32>
    %108 = math.tanh %102 : vector<1x128xf32>
    %109 = vector.extract_strided_slice %107 {offsets = [0, 0], sizes = [1, 32], strides = [1, 1]} : vector<1x128xf32> to vector<1x32xf32>
    %110 = vector.extract_strided_slice %107 {offsets = [0, 32], sizes = [1, 32], strides = [1, 1]} : vector<1x128xf32> to vector<1x32xf32>
    %111 = vector.extract_strided_slice %107 {offsets = [0, 96], sizes = [1, 32], strides = [1, 1]} : vector<1x128xf32> to vector<1x32xf32>
    %112 = vector.extract_strided_slice %108 {offsets = [0, 64], sizes = [1, 32], strides = [1, 1]} : vector<1x128xf32> to vector<1x32xf32>
    %113 = arith.mulf %110, %86 : vector<1x32xf32>
    %114 = arith.mulf %109, %112 : vector<1x32xf32>
    %115 = arith.addf %113, %114 : vector<1x32xf32>
    %116 = math.tanh %115 : vector<1x32xf32>
    %117 = arith.mulf %111, %116 : vector<1x32xf32>
    %c4_i32 = arith.constant 4 : i32
    %118 = arith.index_cast %c4_i32 : i32 to index
    %119 = memref.load %arg0[%118] : memref<32xi32, #tpu.memory_space<smem>>
    %120 = arith.index_cast %c4_i32 : i32 to index
    %c0_34 = arith.constant 0 : index
    %c0_35 = arith.constant 0 : index
    %121 = vector.load %arg1[%120, %c0_34, %c0_35] : memref<32x1x32xf32, #tpu.memory_space<vmem>>, vector<1x1x32xf32>
    %122 = vector.shape_cast %121 : vector<1x1x32xf32> to vector<1x32xf32>
    %123 = tpu.concatenate %122, %117 in 1 : vector<1x32xf32>, vector<1x32xf32> -> vector<1x64xf32>
    %124 = arith.index_cast %119 : i32 to index
    %c0_36 = arith.constant 0 : index
    %c0_37 = arith.constant 0 : index
    %125 = vector.load %arg2[%124, %c0_36, %c0_37] : memref<36x64x128xf32, #tpu.memory_space<vmem>>, vector<1x64x128xf32>
    %126 = vector.shape_cast %125 : vector<1x64x128xf32> to vector<64x128xf32>
    %cst_38 = arith.constant dense<0.000000e+00> : vector<1x128xf32>
    %127 = tpu.matmul %123, %126, %cst_38 {dimension_numbers = #tpu.dot_dimension_numbers<[1], [0], [0], [1], [0, 0, 1, 1], [], []>} : vector<1x64xf32>, vector<64x128xf32>, vector<1x128xf32> -> vector<1x128xf32>
    %128 = arith.index_cast %119 : i32 to index
    %c0_39 = arith.constant 0 : index
    %c0_40 = arith.constant 0 : index
    %129 = vector.load %arg3[%128, %c0_39, %c0_40] : memref<36x1x128xf32, #tpu.memory_space<vmem>>, vector<1x1x128xf32>
    %130 = vector.shape_cast %129 : vector<1x1x128xf32> to vector<1x128xf32>
    %131 = arith.addf %127, %130 : vector<1x128xf32>
    %132 = arith.negf %131 : vector<1x128xf32>
    %133 = math.exp %132 : vector<1x128xf32>
    %cst_41 = arith.constant 1.000000e+00 : f32
    %134 = vector.broadcast %cst_41 : f32 to vector<1x128xf32>
    %135 = arith.addf %134, %133 : vector<1x128xf32>
    %136 = arith.divf %134, %135 : vector<1x128xf32>
    %137 = math.tanh %131 : vector<1x128xf32>
    %138 = vector.extract_strided_slice %136 {offsets = [0, 0], sizes = [1, 32], strides = [1, 1]} : vector<1x128xf32> to vector<1x32xf32>
    %139 = vector.extract_strided_slice %136 {offsets = [0, 32], sizes = [1, 32], strides = [1, 1]} : vector<1x128xf32> to vector<1x32xf32>
    %140 = vector.extract_strided_slice %136 {offsets = [0, 96], sizes = [1, 32], strides = [1, 1]} : vector<1x128xf32> to vector<1x32xf32>
    %141 = vector.extract_strided_slice %137 {offsets = [0, 64], sizes = [1, 32], strides = [1, 1]} : vector<1x128xf32> to vector<1x32xf32>
    %142 = arith.mulf %139, %115 : vector<1x32xf32>
    %143 = arith.mulf %138, %141 : vector<1x32xf32>
    %144 = arith.addf %142, %143 : vector<1x32xf32>
    %145 = math.tanh %144 : vector<1x32xf32>
    %146 = arith.mulf %140, %145 : vector<1x32xf32>
    %c5_i32 = arith.constant 5 : i32
    %147 = arith.index_cast %c5_i32 : i32 to index
    %148 = memref.load %arg0[%147] : memref<32xi32, #tpu.memory_space<smem>>
    %149 = arith.index_cast %c5_i32 : i32 to index
    %c0_42 = arith.constant 0 : index
    %c0_43 = arith.constant 0 : index
    %150 = vector.load %arg1[%149, %c0_42, %c0_43] : memref<32x1x32xf32, #tpu.memory_space<vmem>>, vector<1x1x32xf32>
    %151 = vector.shape_cast %150 : vector<1x1x32xf32> to vector<1x32xf32>
    %152 = tpu.concatenate %151, %146 in 1 : vector<1x32xf32>, vector<1x32xf32> -> vector<1x64xf32>
    %153 = arith.index_cast %148 : i32 to index
    %c0_44 = arith.constant 0 : index
    %c0_45 = arith.constant 0 : index
    %154 = vector.load %arg2[%153, %c0_44, %c0_45] : memref<36x64x128xf32, #tpu.memory_space<vmem>>, vector<1x64x128xf32>
    %155 = vector.shape_cast %154 : vector<1x64x128xf32> to vector<64x128xf32>
    %cst_46 = arith.constant dense<0.000000e+00> : vector<1x128xf32>
    %156 = tpu.matmul %152, %155, %cst_46 {dimension_numbers = #tpu.dot_dimension_numbers<[1], [0], [0], [1], [0, 0, 1, 1], [], []>} : vector<1x64xf32>, vector<64x128xf32>, vector<1x128xf32> -> vector<1x128xf32>
    %157 = arith.index_cast %148 : i32 to index
    %c0_47 = arith.constant 0 : index
    %c0_48 = arith.constant 0 : index
    %158 = vector.load %arg3[%157, %c0_47, %c0_48] : memref<36x1x128xf32, #tpu.memory_space<vmem>>, vector<1x1x128xf32>
    %159 = vector.shape_cast %158 : vector<1x1x128xf32> to vector<1x128xf32>
    %160 = arith.addf %156, %159 : vector<1x128xf32>
    %161 = arith.negf %160 : vector<1x128xf32>
    %162 = math.exp %161 : vector<1x128xf32>
    %cst_49 = arith.constant 1.000000e+00 : f32
    %163 = vector.broadcast %cst_49 : f32 to vector<1x128xf32>
    %164 = arith.addf %163, %162 : vector<1x128xf32>
    %165 = arith.divf %163, %164 : vector<1x128xf32>
    %166 = math.tanh %160 : vector<1x128xf32>
    %167 = vector.extract_strided_slice %165 {offsets = [0, 0], sizes = [1, 32], strides = [1, 1]} : vector<1x128xf32> to vector<1x32xf32>
    %168 = vector.extract_strided_slice %165 {offsets = [0, 32], sizes = [1, 32], strides = [1, 1]} : vector<1x128xf32> to vector<1x32xf32>
    %169 = vector.extract_strided_slice %165 {offsets = [0, 96], sizes = [1, 32], strides = [1, 1]} : vector<1x128xf32> to vector<1x32xf32>
    %170 = vector.extract_strided_slice %166 {offsets = [0, 64], sizes = [1, 32], strides = [1, 1]} : vector<1x128xf32> to vector<1x32xf32>
    %171 = arith.mulf %168, %144 : vector<1x32xf32>
    %172 = arith.mulf %167, %170 : vector<1x32xf32>
    %173 = arith.addf %171, %172 : vector<1x32xf32>
    %174 = math.tanh %173 : vector<1x32xf32>
    %175 = arith.mulf %169, %174 : vector<1x32xf32>
    %c6_i32 = arith.constant 6 : i32
    %176 = arith.index_cast %c6_i32 : i32 to index
    %177 = memref.load %arg0[%176] : memref<32xi32, #tpu.memory_space<smem>>
    %178 = arith.index_cast %c6_i32 : i32 to index
    %c0_50 = arith.constant 0 : index
    %c0_51 = arith.constant 0 : index
    %179 = vector.load %arg1[%178, %c0_50, %c0_51] : memref<32x1x32xf32, #tpu.memory_space<vmem>>, vector<1x1x32xf32>
    %180 = vector.shape_cast %179 : vector<1x1x32xf32> to vector<1x32xf32>
    %181 = tpu.concatenate %180, %175 in 1 : vector<1x32xf32>, vector<1x32xf32> -> vector<1x64xf32>
    %182 = arith.index_cast %177 : i32 to index
    %c0_52 = arith.constant 0 : index
    %c0_53 = arith.constant 0 : index
    %183 = vector.load %arg2[%182, %c0_52, %c0_53] : memref<36x64x128xf32, #tpu.memory_space<vmem>>, vector<1x64x128xf32>
    %184 = vector.shape_cast %183 : vector<1x64x128xf32> to vector<64x128xf32>
    %cst_54 = arith.constant dense<0.000000e+00> : vector<1x128xf32>
    %185 = tpu.matmul %181, %184, %cst_54 {dimension_numbers = #tpu.dot_dimension_numbers<[1], [0], [0], [1], [0, 0, 1, 1], [], []>} : vector<1x64xf32>, vector<64x128xf32>, vector<1x128xf32> -> vector<1x128xf32>
    %186 = arith.index_cast %177 : i32 to index
    %c0_55 = arith.constant 0 : index
    %c0_56 = arith.constant 0 : index
    %187 = vector.load %arg3[%186, %c0_55, %c0_56] : memref<36x1x128xf32, #tpu.memory_space<vmem>>, vector<1x1x128xf32>
    %188 = vector.shape_cast %187 : vector<1x1x128xf32> to vector<1x128xf32>
    %189 = arith.addf %185, %188 : vector<1x128xf32>
    %190 = arith.negf %189 : vector<1x128xf32>
    %191 = math.exp %190 : vector<1x128xf32>
    %cst_57 = arith.constant 1.000000e+00 : f32
    %192 = vector.broadcast %cst_57 : f32 to vector<1x128xf32>
    %193 = arith.addf %192, %191 : vector<1x128xf32>
    %194 = arith.divf %192, %193 : vector<1x128xf32>
    %195 = math.tanh %189 : vector<1x128xf32>
    %196 = vector.extract_strided_slice %194 {offsets = [0, 0], sizes = [1, 32], strides = [1, 1]} : vector<1x128xf32> to vector<1x32xf32>
    %197 = vector.extract_strided_slice %194 {offsets = [0, 32], sizes = [1, 32], strides = [1, 1]} : vector<1x128xf32> to vector<1x32xf32>
    %198 = vector.extract_strided_slice %194 {offsets = [0, 96], sizes = [1, 32], strides = [1, 1]} : vector<1x128xf32> to vector<1x32xf32>
    %199 = vector.extract_strided_slice %195 {offsets = [0, 64], sizes = [1, 32], strides = [1, 1]} : vector<1x128xf32> to vector<1x32xf32>
    %200 = arith.mulf %197, %173 : vector<1x32xf32>
    %201 = arith.mulf %196, %199 : vector<1x32xf32>
    %202 = arith.addf %200, %201 : vector<1x32xf32>
    %203 = math.tanh %202 : vector<1x32xf32>
    %204 = arith.mulf %198, %203 : vector<1x32xf32>
    %c7_i32 = arith.constant 7 : i32
    %205 = arith.index_cast %c7_i32 : i32 to index
    %206 = memref.load %arg0[%205] : memref<32xi32, #tpu.memory_space<smem>>
    %207 = arith.index_cast %c7_i32 : i32 to index
    %c0_58 = arith.constant 0 : index
    %c0_59 = arith.constant 0 : index
    %208 = vector.load %arg1[%207, %c0_58, %c0_59] : memref<32x1x32xf32, #tpu.memory_space<vmem>>, vector<1x1x32xf32>
    %209 = vector.shape_cast %208 : vector<1x1x32xf32> to vector<1x32xf32>
    %210 = tpu.concatenate %209, %204 in 1 : vector<1x32xf32>, vector<1x32xf32> -> vector<1x64xf32>
    %211 = arith.index_cast %206 : i32 to index
    %c0_60 = arith.constant 0 : index
    %c0_61 = arith.constant 0 : index
    %212 = vector.load %arg2[%211, %c0_60, %c0_61] : memref<36x64x128xf32, #tpu.memory_space<vmem>>, vector<1x64x128xf32>
    %213 = vector.shape_cast %212 : vector<1x64x128xf32> to vector<64x128xf32>
    %cst_62 = arith.constant dense<0.000000e+00> : vector<1x128xf32>
    %214 = tpu.matmul %210, %213, %cst_62 {dimension_numbers = #tpu.dot_dimension_numbers<[1], [0], [0], [1], [0, 0, 1, 1], [], []>} : vector<1x64xf32>, vector<64x128xf32>, vector<1x128xf32> -> vector<1x128xf32>
    %215 = arith.index_cast %206 : i32 to index
    %c0_63 = arith.constant 0 : index
    %c0_64 = arith.constant 0 : index
    %216 = vector.load %arg3[%215, %c0_63, %c0_64] : memref<36x1x128xf32, #tpu.memory_space<vmem>>, vector<1x1x128xf32>
    %217 = vector.shape_cast %216 : vector<1x1x128xf32> to vector<1x128xf32>
    %218 = arith.addf %214, %217 : vector<1x128xf32>
    %219 = arith.negf %218 : vector<1x128xf32>
    %220 = math.exp %219 : vector<1x128xf32>
    %cst_65 = arith.constant 1.000000e+00 : f32
    %221 = vector.broadcast %cst_65 : f32 to vector<1x128xf32>
    %222 = arith.addf %221, %220 : vector<1x128xf32>
    %223 = arith.divf %221, %222 : vector<1x128xf32>
    %224 = math.tanh %218 : vector<1x128xf32>
    %225 = vector.extract_strided_slice %223 {offsets = [0, 0], sizes = [1, 32], strides = [1, 1]} : vector<1x128xf32> to vector<1x32xf32>
    %226 = vector.extract_strided_slice %223 {offsets = [0, 32], sizes = [1, 32], strides = [1, 1]} : vector<1x128xf32> to vector<1x32xf32>
    %227 = vector.extract_strided_slice %223 {offsets = [0, 96], sizes = [1, 32], strides = [1, 1]} : vector<1x128xf32> to vector<1x32xf32>
    %228 = vector.extract_strided_slice %224 {offsets = [0, 64], sizes = [1, 32], strides = [1, 1]} : vector<1x128xf32> to vector<1x32xf32>
    %229 = arith.mulf %226, %202 : vector<1x32xf32>
    %230 = arith.mulf %225, %228 : vector<1x32xf32>
    %231 = arith.addf %229, %230 : vector<1x32xf32>
    %232 = math.tanh %231 : vector<1x32xf32>
    %233 = arith.mulf %227, %232 : vector<1x32xf32>
    %c8_i32 = arith.constant 8 : i32
    %234 = arith.index_cast %c8_i32 : i32 to index
    %235 = memref.load %arg0[%234] : memref<32xi32, #tpu.memory_space<smem>>
    %236 = arith.index_cast %c8_i32 : i32 to index
    %c0_66 = arith.constant 0 : index
    %c0_67 = arith.constant 0 : index
    %237 = vector.load %arg1[%236, %c0_66, %c0_67] : memref<32x1x32xf32, #tpu.memory_space<vmem>>, vector<1x1x32xf32>
    %238 = vector.shape_cast %237 : vector<1x1x32xf32> to vector<1x32xf32>
    %239 = tpu.concatenate %238, %233 in 1 : vector<1x32xf32>, vector<1x32xf32> -> vector<1x64xf32>
    %240 = arith.index_cast %235 : i32 to index
    %c0_68 = arith.constant 0 : index
    %c0_69 = arith.constant 0 : index
    %241 = vector.load %arg2[%240, %c0_68, %c0_69] : memref<36x64x128xf32, #tpu.memory_space<vmem>>, vector<1x64x128xf32>
    %242 = vector.shape_cast %241 : vector<1x64x128xf32> to vector<64x128xf32>
    %cst_70 = arith.constant dense<0.000000e+00> : vector<1x128xf32>
    %243 = tpu.matmul %239, %242, %cst_70 {dimension_numbers = #tpu.dot_dimension_numbers<[1], [0], [0], [1], [0, 0, 1, 1], [], []>} : vector<1x64xf32>, vector<64x128xf32>, vector<1x128xf32> -> vector<1x128xf32>
    %244 = arith.index_cast %235 : i32 to index
    %c0_71 = arith.constant 0 : index
    %c0_72 = arith.constant 0 : index
    %245 = vector.load %arg3[%244, %c0_71, %c0_72] : memref<36x1x128xf32, #tpu.memory_space<vmem>>, vector<1x1x128xf32>
    %246 = vector.shape_cast %245 : vector<1x1x128xf32> to vector<1x128xf32>
    %247 = arith.addf %243, %246 : vector<1x128xf32>
    %248 = arith.negf %247 : vector<1x128xf32>
    %249 = math.exp %248 : vector<1x128xf32>
    %cst_73 = arith.constant 1.000000e+00 : f32
    %250 = vector.broadcast %cst_73 : f32 to vector<1x128xf32>
    %251 = arith.addf %250, %249 : vector<1x128xf32>
    %252 = arith.divf %250, %251 : vector<1x128xf32>
    %253 = math.tanh %247 : vector<1x128xf32>
    %254 = vector.extract_strided_slice %252 {offsets = [0, 0], sizes = [1, 32], strides = [1, 1]} : vector<1x128xf32> to vector<1x32xf32>
    %255 = vector.extract_strided_slice %252 {offsets = [0, 32], sizes = [1, 32], strides = [1, 1]} : vector<1x128xf32> to vector<1x32xf32>
    %256 = vector.extract_strided_slice %252 {offsets = [0, 96], sizes = [1, 32], strides = [1, 1]} : vector<1x128xf32> to vector<1x32xf32>
    %257 = vector.extract_strided_slice %253 {offsets = [0, 64], sizes = [1, 32], strides = [1, 1]} : vector<1x128xf32> to vector<1x32xf32>
    %258 = arith.mulf %255, %231 : vector<1x32xf32>
    %259 = arith.mulf %254, %257 : vector<1x32xf32>
    %260 = arith.addf %258, %259 : vector<1x32xf32>
    %261 = math.tanh %260 : vector<1x32xf32>
    %262 = arith.mulf %256, %261 : vector<1x32xf32>
    %c9_i32 = arith.constant 9 : i32
    %263 = arith.index_cast %c9_i32 : i32 to index
    %264 = memref.load %arg0[%263] : memref<32xi32, #tpu.memory_space<smem>>
    %265 = arith.index_cast %c9_i32 : i32 to index
    %c0_74 = arith.constant 0 : index
    %c0_75 = arith.constant 0 : index
    %266 = vector.load %arg1[%265, %c0_74, %c0_75] : memref<32x1x32xf32, #tpu.memory_space<vmem>>, vector<1x1x32xf32>
    %267 = vector.shape_cast %266 : vector<1x1x32xf32> to vector<1x32xf32>
    %268 = tpu.concatenate %267, %262 in 1 : vector<1x32xf32>, vector<1x32xf32> -> vector<1x64xf32>
    %269 = arith.index_cast %264 : i32 to index
    %c0_76 = arith.constant 0 : index
    %c0_77 = arith.constant 0 : index
    %270 = vector.load %arg2[%269, %c0_76, %c0_77] : memref<36x64x128xf32, #tpu.memory_space<vmem>>, vector<1x64x128xf32>
    %271 = vector.shape_cast %270 : vector<1x64x128xf32> to vector<64x128xf32>
    %cst_78 = arith.constant dense<0.000000e+00> : vector<1x128xf32>
    %272 = tpu.matmul %268, %271, %cst_78 {dimension_numbers = #tpu.dot_dimension_numbers<[1], [0], [0], [1], [0, 0, 1, 1], [], []>} : vector<1x64xf32>, vector<64x128xf32>, vector<1x128xf32> -> vector<1x128xf32>
    %273 = arith.index_cast %264 : i32 to index
    %c0_79 = arith.constant 0 : index
    %c0_80 = arith.constant 0 : index
    %274 = vector.load %arg3[%273, %c0_79, %c0_80] : memref<36x1x128xf32, #tpu.memory_space<vmem>>, vector<1x1x128xf32>
    %275 = vector.shape_cast %274 : vector<1x1x128xf32> to vector<1x128xf32>
    %276 = arith.addf %272, %275 : vector<1x128xf32>
    %277 = arith.negf %276 : vector<1x128xf32>
    %278 = math.exp %277 : vector<1x128xf32>
    %cst_81 = arith.constant 1.000000e+00 : f32
    %279 = vector.broadcast %cst_81 : f32 to vector<1x128xf32>
    %280 = arith.addf %279, %278 : vector<1x128xf32>
    %281 = arith.divf %279, %280 : vector<1x128xf32>
    %282 = math.tanh %276 : vector<1x128xf32>
    %283 = vector.extract_strided_slice %281 {offsets = [0, 0], sizes = [1, 32], strides = [1, 1]} : vector<1x128xf32> to vector<1x32xf32>
    %284 = vector.extract_strided_slice %281 {offsets = [0, 32], sizes = [1, 32], strides = [1, 1]} : vector<1x128xf32> to vector<1x32xf32>
    %285 = vector.extract_strided_slice %281 {offsets = [0, 96], sizes = [1, 32], strides = [1, 1]} : vector<1x128xf32> to vector<1x32xf32>
    %286 = vector.extract_strided_slice %282 {offsets = [0, 64], sizes = [1, 32], strides = [1, 1]} : vector<1x128xf32> to vector<1x32xf32>
    %287 = arith.mulf %284, %260 : vector<1x32xf32>
    %288 = arith.mulf %283, %286 : vector<1x32xf32>
    %289 = arith.addf %287, %288 : vector<1x32xf32>
    %290 = math.tanh %289 : vector<1x32xf32>
    %291 = arith.mulf %285, %290 : vector<1x32xf32>
    %c10_i32 = arith.constant 10 : i32
    %292 = arith.index_cast %c10_i32 : i32 to index
    %293 = memref.load %arg0[%292] : memref<32xi32, #tpu.memory_space<smem>>
    %294 = arith.index_cast %c10_i32 : i32 to index
    %c0_82 = arith.constant 0 : index
    %c0_83 = arith.constant 0 : index
    %295 = vector.load %arg1[%294, %c0_82, %c0_83] : memref<32x1x32xf32, #tpu.memory_space<vmem>>, vector<1x1x32xf32>
    %296 = vector.shape_cast %295 : vector<1x1x32xf32> to vector<1x32xf32>
    %297 = tpu.concatenate %296, %291 in 1 : vector<1x32xf32>, vector<1x32xf32> -> vector<1x64xf32>
    %298 = arith.index_cast %293 : i32 to index
    %c0_84 = arith.constant 0 : index
    %c0_85 = arith.constant 0 : index
    %299 = vector.load %arg2[%298, %c0_84, %c0_85] : memref<36x64x128xf32, #tpu.memory_space<vmem>>, vector<1x64x128xf32>
    %300 = vector.shape_cast %299 : vector<1x64x128xf32> to vector<64x128xf32>
    %cst_86 = arith.constant dense<0.000000e+00> : vector<1x128xf32>
    %301 = tpu.matmul %297, %300, %cst_86 {dimension_numbers = #tpu.dot_dimension_numbers<[1], [0], [0], [1], [0, 0, 1, 1], [], []>} : vector<1x64xf32>, vector<64x128xf32>, vector<1x128xf32> -> vector<1x128xf32>
    %302 = arith.index_cast %293 : i32 to index
    %c0_87 = arith.constant 0 : index
    %c0_88 = arith.constant 0 : index
    %303 = vector.load %arg3[%302, %c0_87, %c0_88] : memref<36x1x128xf32, #tpu.memory_space<vmem>>, vector<1x1x128xf32>
    %304 = vector.shape_cast %303 : vector<1x1x128xf32> to vector<1x128xf32>
    %305 = arith.addf %301, %304 : vector<1x128xf32>
    %306 = arith.negf %305 : vector<1x128xf32>
    %307 = math.exp %306 : vector<1x128xf32>
    %cst_89 = arith.constant 1.000000e+00 : f32
    %308 = vector.broadcast %cst_89 : f32 to vector<1x128xf32>
    %309 = arith.addf %308, %307 : vector<1x128xf32>
    %310 = arith.divf %308, %309 : vector<1x128xf32>
    %311 = math.tanh %305 : vector<1x128xf32>
    %312 = vector.extract_strided_slice %310 {offsets = [0, 0], sizes = [1, 32], strides = [1, 1]} : vector<1x128xf32> to vector<1x32xf32>
    %313 = vector.extract_strided_slice %310 {offsets = [0, 32], sizes = [1, 32], strides = [1, 1]} : vector<1x128xf32> to vector<1x32xf32>
    %314 = vector.extract_strided_slice %310 {offsets = [0, 96], sizes = [1, 32], strides = [1, 1]} : vector<1x128xf32> to vector<1x32xf32>
    %315 = vector.extract_strided_slice %311 {offsets = [0, 64], sizes = [1, 32], strides = [1, 1]} : vector<1x128xf32> to vector<1x32xf32>
    %316 = arith.mulf %313, %289 : vector<1x32xf32>
    %317 = arith.mulf %312, %315 : vector<1x32xf32>
    %318 = arith.addf %316, %317 : vector<1x32xf32>
    %319 = math.tanh %318 : vector<1x32xf32>
    %320 = arith.mulf %314, %319 : vector<1x32xf32>
    %c11_i32 = arith.constant 11 : i32
    %321 = arith.index_cast %c11_i32 : i32 to index
    %322 = memref.load %arg0[%321] : memref<32xi32, #tpu.memory_space<smem>>
    %323 = arith.index_cast %c11_i32 : i32 to index
    %c0_90 = arith.constant 0 : index
    %c0_91 = arith.constant 0 : index
    %324 = vector.load %arg1[%323, %c0_90, %c0_91] : memref<32x1x32xf32, #tpu.memory_space<vmem>>, vector<1x1x32xf32>
    %325 = vector.shape_cast %324 : vector<1x1x32xf32> to vector<1x32xf32>
    %326 = tpu.concatenate %325, %320 in 1 : vector<1x32xf32>, vector<1x32xf32> -> vector<1x64xf32>
    %327 = arith.index_cast %322 : i32 to index
    %c0_92 = arith.constant 0 : index
    %c0_93 = arith.constant 0 : index
    %328 = vector.load %arg2[%327, %c0_92, %c0_93] : memref<36x64x128xf32, #tpu.memory_space<vmem>>, vector<1x64x128xf32>
    %329 = vector.shape_cast %328 : vector<1x64x128xf32> to vector<64x128xf32>
    %cst_94 = arith.constant dense<0.000000e+00> : vector<1x128xf32>
    %330 = tpu.matmul %326, %329, %cst_94 {dimension_numbers = #tpu.dot_dimension_numbers<[1], [0], [0], [1], [0, 0, 1, 1], [], []>} : vector<1x64xf32>, vector<64x128xf32>, vector<1x128xf32> -> vector<1x128xf32>
    %331 = arith.index_cast %322 : i32 to index
    %c0_95 = arith.constant 0 : index
    %c0_96 = arith.constant 0 : index
    %332 = vector.load %arg3[%331, %c0_95, %c0_96] : memref<36x1x128xf32, #tpu.memory_space<vmem>>, vector<1x1x128xf32>
    %333 = vector.shape_cast %332 : vector<1x1x128xf32> to vector<1x128xf32>
    %334 = arith.addf %330, %333 : vector<1x128xf32>
    %335 = arith.negf %334 : vector<1x128xf32>
    %336 = math.exp %335 : vector<1x128xf32>
    %cst_97 = arith.constant 1.000000e+00 : f32
    %337 = vector.broadcast %cst_97 : f32 to vector<1x128xf32>
    %338 = arith.addf %337, %336 : vector<1x128xf32>
    %339 = arith.divf %337, %338 : vector<1x128xf32>
    %340 = math.tanh %334 : vector<1x128xf32>
    %341 = vector.extract_strided_slice %339 {offsets = [0, 0], sizes = [1, 32], strides = [1, 1]} : vector<1x128xf32> to vector<1x32xf32>
    %342 = vector.extract_strided_slice %339 {offsets = [0, 32], sizes = [1, 32], strides = [1, 1]} : vector<1x128xf32> to vector<1x32xf32>
    %343 = vector.extract_strided_slice %339 {offsets = [0, 96], sizes = [1, 32], strides = [1, 1]} : vector<1x128xf32> to vector<1x32xf32>
    %344 = vector.extract_strided_slice %340 {offsets = [0, 64], sizes = [1, 32], strides = [1, 1]} : vector<1x128xf32> to vector<1x32xf32>
    %345 = arith.mulf %342, %318 : vector<1x32xf32>
    %346 = arith.mulf %341, %344 : vector<1x32xf32>
    %347 = arith.addf %345, %346 : vector<1x32xf32>
    %348 = math.tanh %347 : vector<1x32xf32>
    %349 = arith.mulf %343, %348 : vector<1x32xf32>
    %c12_i32 = arith.constant 12 : i32
    %350 = arith.index_cast %c12_i32 : i32 to index
    %351 = memref.load %arg0[%350] : memref<32xi32, #tpu.memory_space<smem>>
    %352 = arith.index_cast %c12_i32 : i32 to index
    %c0_98 = arith.constant 0 : index
    %c0_99 = arith.constant 0 : index
    %353 = vector.load %arg1[%352, %c0_98, %c0_99] : memref<32x1x32xf32, #tpu.memory_space<vmem>>, vector<1x1x32xf32>
    %354 = vector.shape_cast %353 : vector<1x1x32xf32> to vector<1x32xf32>
    %355 = tpu.concatenate %354, %349 in 1 : vector<1x32xf32>, vector<1x32xf32> -> vector<1x64xf32>
    %356 = arith.index_cast %351 : i32 to index
    %c0_100 = arith.constant 0 : index
    %c0_101 = arith.constant 0 : index
    %357 = vector.load %arg2[%356, %c0_100, %c0_101] : memref<36x64x128xf32, #tpu.memory_space<vmem>>, vector<1x64x128xf32>
    %358 = vector.shape_cast %357 : vector<1x64x128xf32> to vector<64x128xf32>
    %cst_102 = arith.constant dense<0.000000e+00> : vector<1x128xf32>
    %359 = tpu.matmul %355, %358, %cst_102 {dimension_numbers = #tpu.dot_dimension_numbers<[1], [0], [0], [1], [0, 0, 1, 1], [], []>} : vector<1x64xf32>, vector<64x128xf32>, vector<1x128xf32> -> vector<1x128xf32>
    %360 = arith.index_cast %351 : i32 to index
    %c0_103 = arith.constant 0 : index
    %c0_104 = arith.constant 0 : index
    %361 = vector.load %arg3[%360, %c0_103, %c0_104] : memref<36x1x128xf32, #tpu.memory_space<vmem>>, vector<1x1x128xf32>
    %362 = vector.shape_cast %361 : vector<1x1x128xf32> to vector<1x128xf32>
    %363 = arith.addf %359, %362 : vector<1x128xf32>
    %364 = arith.negf %363 : vector<1x128xf32>
    %365 = math.exp %364 : vector<1x128xf32>
    %cst_105 = arith.constant 1.000000e+00 : f32
    %366 = vector.broadcast %cst_105 : f32 to vector<1x128xf32>
    %367 = arith.addf %366, %365 : vector<1x128xf32>
    %368 = arith.divf %366, %367 : vector<1x128xf32>
    %369 = math.tanh %363 : vector<1x128xf32>
    %370 = vector.extract_strided_slice %368 {offsets = [0, 0], sizes = [1, 32], strides = [1, 1]} : vector<1x128xf32> to vector<1x32xf32>
    %371 = vector.extract_strided_slice %368 {offsets = [0, 32], sizes = [1, 32], strides = [1, 1]} : vector<1x128xf32> to vector<1x32xf32>
    %372 = vector.extract_strided_slice %368 {offsets = [0, 96], sizes = [1, 32], strides = [1, 1]} : vector<1x128xf32> to vector<1x32xf32>
    %373 = vector.extract_strided_slice %369 {offsets = [0, 64], sizes = [1, 32], strides = [1, 1]} : vector<1x128xf32> to vector<1x32xf32>
    %374 = arith.mulf %371, %347 : vector<1x32xf32>
    %375 = arith.mulf %370, %373 : vector<1x32xf32>
    %376 = arith.addf %374, %375 : vector<1x32xf32>
    %377 = math.tanh %376 : vector<1x32xf32>
    %378 = arith.mulf %372, %377 : vector<1x32xf32>
    %c13_i32 = arith.constant 13 : i32
    %379 = arith.index_cast %c13_i32 : i32 to index
    %380 = memref.load %arg0[%379] : memref<32xi32, #tpu.memory_space<smem>>
    %381 = arith.index_cast %c13_i32 : i32 to index
    %c0_106 = arith.constant 0 : index
    %c0_107 = arith.constant 0 : index
    %382 = vector.load %arg1[%381, %c0_106, %c0_107] : memref<32x1x32xf32, #tpu.memory_space<vmem>>, vector<1x1x32xf32>
    %383 = vector.shape_cast %382 : vector<1x1x32xf32> to vector<1x32xf32>
    %384 = tpu.concatenate %383, %378 in 1 : vector<1x32xf32>, vector<1x32xf32> -> vector<1x64xf32>
    %385 = arith.index_cast %380 : i32 to index
    %c0_108 = arith.constant 0 : index
    %c0_109 = arith.constant 0 : index
    %386 = vector.load %arg2[%385, %c0_108, %c0_109] : memref<36x64x128xf32, #tpu.memory_space<vmem>>, vector<1x64x128xf32>
    %387 = vector.shape_cast %386 : vector<1x64x128xf32> to vector<64x128xf32>
    %cst_110 = arith.constant dense<0.000000e+00> : vector<1x128xf32>
    %388 = tpu.matmul %384, %387, %cst_110 {dimension_numbers = #tpu.dot_dimension_numbers<[1], [0], [0], [1], [0, 0, 1, 1], [], []>} : vector<1x64xf32>, vector<64x128xf32>, vector<1x128xf32> -> vector<1x128xf32>
    %389 = arith.index_cast %380 : i32 to index
    %c0_111 = arith.constant 0 : index
    %c0_112 = arith.constant 0 : index
    %390 = vector.load %arg3[%389, %c0_111, %c0_112] : memref<36x1x128xf32, #tpu.memory_space<vmem>>, vector<1x1x128xf32>
    %391 = vector.shape_cast %390 : vector<1x1x128xf32> to vector<1x128xf32>
    %392 = arith.addf %388, %391 : vector<1x128xf32>
    %393 = arith.negf %392 : vector<1x128xf32>
    %394 = math.exp %393 : vector<1x128xf32>
    %cst_113 = arith.constant 1.000000e+00 : f32
    %395 = vector.broadcast %cst_113 : f32 to vector<1x128xf32>
    %396 = arith.addf %395, %394 : vector<1x128xf32>
    %397 = arith.divf %395, %396 : vector<1x128xf32>
    %398 = math.tanh %392 : vector<1x128xf32>
    %399 = vector.extract_strided_slice %397 {offsets = [0, 0], sizes = [1, 32], strides = [1, 1]} : vector<1x128xf32> to vector<1x32xf32>
    %400 = vector.extract_strided_slice %397 {offsets = [0, 32], sizes = [1, 32], strides = [1, 1]} : vector<1x128xf32> to vector<1x32xf32>
    %401 = vector.extract_strided_slice %397 {offsets = [0, 96], sizes = [1, 32], strides = [1, 1]} : vector<1x128xf32> to vector<1x32xf32>
    %402 = vector.extract_strided_slice %398 {offsets = [0, 64], sizes = [1, 32], strides = [1, 1]} : vector<1x128xf32> to vector<1x32xf32>
    %403 = arith.mulf %400, %376 : vector<1x32xf32>
    %404 = arith.mulf %399, %402 : vector<1x32xf32>
    %405 = arith.addf %403, %404 : vector<1x32xf32>
    %406 = math.tanh %405 : vector<1x32xf32>
    %407 = arith.mulf %401, %406 : vector<1x32xf32>
    %c14_i32 = arith.constant 14 : i32
    %408 = arith.index_cast %c14_i32 : i32 to index
    %409 = memref.load %arg0[%408] : memref<32xi32, #tpu.memory_space<smem>>
    %410 = arith.index_cast %c14_i32 : i32 to index
    %c0_114 = arith.constant 0 : index
    %c0_115 = arith.constant 0 : index
    %411 = vector.load %arg1[%410, %c0_114, %c0_115] : memref<32x1x32xf32, #tpu.memory_space<vmem>>, vector<1x1x32xf32>
    %412 = vector.shape_cast %411 : vector<1x1x32xf32> to vector<1x32xf32>
    %413 = tpu.concatenate %412, %407 in 1 : vector<1x32xf32>, vector<1x32xf32> -> vector<1x64xf32>
    %414 = arith.index_cast %409 : i32 to index
    %c0_116 = arith.constant 0 : index
    %c0_117 = arith.constant 0 : index
    %415 = vector.load %arg2[%414, %c0_116, %c0_117] : memref<36x64x128xf32, #tpu.memory_space<vmem>>, vector<1x64x128xf32>
    %416 = vector.shape_cast %415 : vector<1x64x128xf32> to vector<64x128xf32>
    %cst_118 = arith.constant dense<0.000000e+00> : vector<1x128xf32>
    %417 = tpu.matmul %413, %416, %cst_118 {dimension_numbers = #tpu.dot_dimension_numbers<[1], [0], [0], [1], [0, 0, 1, 1], [], []>} : vector<1x64xf32>, vector<64x128xf32>, vector<1x128xf32> -> vector<1x128xf32>
    %418 = arith.index_cast %409 : i32 to index
    %c0_119 = arith.constant 0 : index
    %c0_120 = arith.constant 0 : index
    %419 = vector.load %arg3[%418, %c0_119, %c0_120] : memref<36x1x128xf32, #tpu.memory_space<vmem>>, vector<1x1x128xf32>
    %420 = vector.shape_cast %419 : vector<1x1x128xf32> to vector<1x128xf32>
    %421 = arith.addf %417, %420 : vector<1x128xf32>
    %422 = arith.negf %421 : vector<1x128xf32>
    %423 = math.exp %422 : vector<1x128xf32>
    %cst_121 = arith.constant 1.000000e+00 : f32
    %424 = vector.broadcast %cst_121 : f32 to vector<1x128xf32>
    %425 = arith.addf %424, %423 : vector<1x128xf32>
    %426 = arith.divf %424, %425 : vector<1x128xf32>
    %427 = math.tanh %421 : vector<1x128xf32>
    %428 = vector.extract_strided_slice %426 {offsets = [0, 0], sizes = [1, 32], strides = [1, 1]} : vector<1x128xf32> to vector<1x32xf32>
    %429 = vector.extract_strided_slice %426 {offsets = [0, 32], sizes = [1, 32], strides = [1, 1]} : vector<1x128xf32> to vector<1x32xf32>
    %430 = vector.extract_strided_slice %426 {offsets = [0, 96], sizes = [1, 32], strides = [1, 1]} : vector<1x128xf32> to vector<1x32xf32>
    %431 = vector.extract_strided_slice %427 {offsets = [0, 64], sizes = [1, 32], strides = [1, 1]} : vector<1x128xf32> to vector<1x32xf32>
    %432 = arith.mulf %429, %405 : vector<1x32xf32>
    %433 = arith.mulf %428, %431 : vector<1x32xf32>
    %434 = arith.addf %432, %433 : vector<1x32xf32>
    %435 = math.tanh %434 : vector<1x32xf32>
    %436 = arith.mulf %430, %435 : vector<1x32xf32>
    %c15_i32 = arith.constant 15 : i32
    %437 = arith.index_cast %c15_i32 : i32 to index
    %438 = memref.load %arg0[%437] : memref<32xi32, #tpu.memory_space<smem>>
    %439 = arith.index_cast %c15_i32 : i32 to index
    %c0_122 = arith.constant 0 : index
    %c0_123 = arith.constant 0 : index
    %440 = vector.load %arg1[%439, %c0_122, %c0_123] : memref<32x1x32xf32, #tpu.memory_space<vmem>>, vector<1x1x32xf32>
    %441 = vector.shape_cast %440 : vector<1x1x32xf32> to vector<1x32xf32>
    %442 = tpu.concatenate %441, %436 in 1 : vector<1x32xf32>, vector<1x32xf32> -> vector<1x64xf32>
    %443 = arith.index_cast %438 : i32 to index
    %c0_124 = arith.constant 0 : index
    %c0_125 = arith.constant 0 : index
    %444 = vector.load %arg2[%443, %c0_124, %c0_125] : memref<36x64x128xf32, #tpu.memory_space<vmem>>, vector<1x64x128xf32>
    %445 = vector.shape_cast %444 : vector<1x64x128xf32> to vector<64x128xf32>
    %cst_126 = arith.constant dense<0.000000e+00> : vector<1x128xf32>
    %446 = tpu.matmul %442, %445, %cst_126 {dimension_numbers = #tpu.dot_dimension_numbers<[1], [0], [0], [1], [0, 0, 1, 1], [], []>} : vector<1x64xf32>, vector<64x128xf32>, vector<1x128xf32> -> vector<1x128xf32>
    %447 = arith.index_cast %438 : i32 to index
    %c0_127 = arith.constant 0 : index
    %c0_128 = arith.constant 0 : index
    %448 = vector.load %arg3[%447, %c0_127, %c0_128] : memref<36x1x128xf32, #tpu.memory_space<vmem>>, vector<1x1x128xf32>
    %449 = vector.shape_cast %448 : vector<1x1x128xf32> to vector<1x128xf32>
    %450 = arith.addf %446, %449 : vector<1x128xf32>
    %451 = arith.negf %450 : vector<1x128xf32>
    %452 = math.exp %451 : vector<1x128xf32>
    %cst_129 = arith.constant 1.000000e+00 : f32
    %453 = vector.broadcast %cst_129 : f32 to vector<1x128xf32>
    %454 = arith.addf %453, %452 : vector<1x128xf32>
    %455 = arith.divf %453, %454 : vector<1x128xf32>
    %456 = math.tanh %450 : vector<1x128xf32>
    %457 = vector.extract_strided_slice %455 {offsets = [0, 0], sizes = [1, 32], strides = [1, 1]} : vector<1x128xf32> to vector<1x32xf32>
    %458 = vector.extract_strided_slice %455 {offsets = [0, 32], sizes = [1, 32], strides = [1, 1]} : vector<1x128xf32> to vector<1x32xf32>
    %459 = vector.extract_strided_slice %455 {offsets = [0, 96], sizes = [1, 32], strides = [1, 1]} : vector<1x128xf32> to vector<1x32xf32>
    %460 = vector.extract_strided_slice %456 {offsets = [0, 64], sizes = [1, 32], strides = [1, 1]} : vector<1x128xf32> to vector<1x32xf32>
    %461 = arith.mulf %458, %434 : vector<1x32xf32>
    %462 = arith.mulf %457, %460 : vector<1x32xf32>
    %463 = arith.addf %461, %462 : vector<1x32xf32>
    %464 = math.tanh %463 : vector<1x32xf32>
    %465 = arith.mulf %459, %464 : vector<1x32xf32>
    %c16_i32 = arith.constant 16 : i32
    %466 = arith.index_cast %c16_i32 : i32 to index
    %467 = memref.load %arg0[%466] : memref<32xi32, #tpu.memory_space<smem>>
    %468 = arith.index_cast %c16_i32 : i32 to index
    %c0_130 = arith.constant 0 : index
    %c0_131 = arith.constant 0 : index
    %469 = vector.load %arg1[%468, %c0_130, %c0_131] : memref<32x1x32xf32, #tpu.memory_space<vmem>>, vector<1x1x32xf32>
    %470 = vector.shape_cast %469 : vector<1x1x32xf32> to vector<1x32xf32>
    %471 = tpu.concatenate %470, %465 in 1 : vector<1x32xf32>, vector<1x32xf32> -> vector<1x64xf32>
    %472 = arith.index_cast %467 : i32 to index
    %c0_132 = arith.constant 0 : index
    %c0_133 = arith.constant 0 : index
    %473 = vector.load %arg2[%472, %c0_132, %c0_133] : memref<36x64x128xf32, #tpu.memory_space<vmem>>, vector<1x64x128xf32>
    %474 = vector.shape_cast %473 : vector<1x64x128xf32> to vector<64x128xf32>
    %cst_134 = arith.constant dense<0.000000e+00> : vector<1x128xf32>
    %475 = tpu.matmul %471, %474, %cst_134 {dimension_numbers = #tpu.dot_dimension_numbers<[1], [0], [0], [1], [0, 0, 1, 1], [], []>} : vector<1x64xf32>, vector<64x128xf32>, vector<1x128xf32> -> vector<1x128xf32>
    %476 = arith.index_cast %467 : i32 to index
    %c0_135 = arith.constant 0 : index
    %c0_136 = arith.constant 0 : index
    %477 = vector.load %arg3[%476, %c0_135, %c0_136] : memref<36x1x128xf32, #tpu.memory_space<vmem>>, vector<1x1x128xf32>
    %478 = vector.shape_cast %477 : vector<1x1x128xf32> to vector<1x128xf32>
    %479 = arith.addf %475, %478 : vector<1x128xf32>
    %480 = arith.negf %479 : vector<1x128xf32>
    %481 = math.exp %480 : vector<1x128xf32>
    %cst_137 = arith.constant 1.000000e+00 : f32
    %482 = vector.broadcast %cst_137 : f32 to vector<1x128xf32>
    %483 = arith.addf %482, %481 : vector<1x128xf32>
    %484 = arith.divf %482, %483 : vector<1x128xf32>
    %485 = math.tanh %479 : vector<1x128xf32>
    %486 = vector.extract_strided_slice %484 {offsets = [0, 0], sizes = [1, 32], strides = [1, 1]} : vector<1x128xf32> to vector<1x32xf32>
    %487 = vector.extract_strided_slice %484 {offsets = [0, 32], sizes = [1, 32], strides = [1, 1]} : vector<1x128xf32> to vector<1x32xf32>
    %488 = vector.extract_strided_slice %484 {offsets = [0, 96], sizes = [1, 32], strides = [1, 1]} : vector<1x128xf32> to vector<1x32xf32>
    %489 = vector.extract_strided_slice %485 {offsets = [0, 64], sizes = [1, 32], strides = [1, 1]} : vector<1x128xf32> to vector<1x32xf32>
    %490 = arith.mulf %487, %463 : vector<1x32xf32>
    %491 = arith.mulf %486, %489 : vector<1x32xf32>
    %492 = arith.addf %490, %491 : vector<1x32xf32>
    %493 = math.tanh %492 : vector<1x32xf32>
    %494 = arith.mulf %488, %493 : vector<1x32xf32>
    %c17_i32 = arith.constant 17 : i32
    %495 = arith.index_cast %c17_i32 : i32 to index
    %496 = memref.load %arg0[%495] : memref<32xi32, #tpu.memory_space<smem>>
    %497 = arith.index_cast %c17_i32 : i32 to index
    %c0_138 = arith.constant 0 : index
    %c0_139 = arith.constant 0 : index
    %498 = vector.load %arg1[%497, %c0_138, %c0_139] : memref<32x1x32xf32, #tpu.memory_space<vmem>>, vector<1x1x32xf32>
    %499 = vector.shape_cast %498 : vector<1x1x32xf32> to vector<1x32xf32>
    %500 = tpu.concatenate %499, %494 in 1 : vector<1x32xf32>, vector<1x32xf32> -> vector<1x64xf32>
    %501 = arith.index_cast %496 : i32 to index
    %c0_140 = arith.constant 0 : index
    %c0_141 = arith.constant 0 : index
    %502 = vector.load %arg2[%501, %c0_140, %c0_141] : memref<36x64x128xf32, #tpu.memory_space<vmem>>, vector<1x64x128xf32>
    %503 = vector.shape_cast %502 : vector<1x64x128xf32> to vector<64x128xf32>
    %cst_142 = arith.constant dense<0.000000e+00> : vector<1x128xf32>
    %504 = tpu.matmul %500, %503, %cst_142 {dimension_numbers = #tpu.dot_dimension_numbers<[1], [0], [0], [1], [0, 0, 1, 1], [], []>} : vector<1x64xf32>, vector<64x128xf32>, vector<1x128xf32> -> vector<1x128xf32>
    %505 = arith.index_cast %496 : i32 to index
    %c0_143 = arith.constant 0 : index
    %c0_144 = arith.constant 0 : index
    %506 = vector.load %arg3[%505, %c0_143, %c0_144] : memref<36x1x128xf32, #tpu.memory_space<vmem>>, vector<1x1x128xf32>
    %507 = vector.shape_cast %506 : vector<1x1x128xf32> to vector<1x128xf32>
    %508 = arith.addf %504, %507 : vector<1x128xf32>
    %509 = arith.negf %508 : vector<1x128xf32>
    %510 = math.exp %509 : vector<1x128xf32>
    %cst_145 = arith.constant 1.000000e+00 : f32
    %511 = vector.broadcast %cst_145 : f32 to vector<1x128xf32>
    %512 = arith.addf %511, %510 : vector<1x128xf32>
    %513 = arith.divf %511, %512 : vector<1x128xf32>
    %514 = math.tanh %508 : vector<1x128xf32>
    %515 = vector.extract_strided_slice %513 {offsets = [0, 0], sizes = [1, 32], strides = [1, 1]} : vector<1x128xf32> to vector<1x32xf32>
    %516 = vector.extract_strided_slice %513 {offsets = [0, 32], sizes = [1, 32], strides = [1, 1]} : vector<1x128xf32> to vector<1x32xf32>
    %517 = vector.extract_strided_slice %513 {offsets = [0, 96], sizes = [1, 32], strides = [1, 1]} : vector<1x128xf32> to vector<1x32xf32>
    %518 = vector.extract_strided_slice %514 {offsets = [0, 64], sizes = [1, 32], strides = [1, 1]} : vector<1x128xf32> to vector<1x32xf32>
    %519 = arith.mulf %516, %492 : vector<1x32xf32>
    %520 = arith.mulf %515, %518 : vector<1x32xf32>
    %521 = arith.addf %519, %520 : vector<1x32xf32>
    %522 = math.tanh %521 : vector<1x32xf32>
    %523 = arith.mulf %517, %522 : vector<1x32xf32>
    %c18_i32 = arith.constant 18 : i32
    %524 = arith.index_cast %c18_i32 : i32 to index
    %525 = memref.load %arg0[%524] : memref<32xi32, #tpu.memory_space<smem>>
    %526 = arith.index_cast %c18_i32 : i32 to index
    %c0_146 = arith.constant 0 : index
    %c0_147 = arith.constant 0 : index
    %527 = vector.load %arg1[%526, %c0_146, %c0_147] : memref<32x1x32xf32, #tpu.memory_space<vmem>>, vector<1x1x32xf32>
    %528 = vector.shape_cast %527 : vector<1x1x32xf32> to vector<1x32xf32>
    %529 = tpu.concatenate %528, %523 in 1 : vector<1x32xf32>, vector<1x32xf32> -> vector<1x64xf32>
    %530 = arith.index_cast %525 : i32 to index
    %c0_148 = arith.constant 0 : index
    %c0_149 = arith.constant 0 : index
    %531 = vector.load %arg2[%530, %c0_148, %c0_149] : memref<36x64x128xf32, #tpu.memory_space<vmem>>, vector<1x64x128xf32>
    %532 = vector.shape_cast %531 : vector<1x64x128xf32> to vector<64x128xf32>
    %cst_150 = arith.constant dense<0.000000e+00> : vector<1x128xf32>
    %533 = tpu.matmul %529, %532, %cst_150 {dimension_numbers = #tpu.dot_dimension_numbers<[1], [0], [0], [1], [0, 0, 1, 1], [], []>} : vector<1x64xf32>, vector<64x128xf32>, vector<1x128xf32> -> vector<1x128xf32>
    %534 = arith.index_cast %525 : i32 to index
    %c0_151 = arith.constant 0 : index
    %c0_152 = arith.constant 0 : index
    %535 = vector.load %arg3[%534, %c0_151, %c0_152] : memref<36x1x128xf32, #tpu.memory_space<vmem>>, vector<1x1x128xf32>
    %536 = vector.shape_cast %535 : vector<1x1x128xf32> to vector<1x128xf32>
    %537 = arith.addf %533, %536 : vector<1x128xf32>
    %538 = arith.negf %537 : vector<1x128xf32>
    %539 = math.exp %538 : vector<1x128xf32>
    %cst_153 = arith.constant 1.000000e+00 : f32
    %540 = vector.broadcast %cst_153 : f32 to vector<1x128xf32>
    %541 = arith.addf %540, %539 : vector<1x128xf32>
    %542 = arith.divf %540, %541 : vector<1x128xf32>
    %543 = math.tanh %537 : vector<1x128xf32>
    %544 = vector.extract_strided_slice %542 {offsets = [0, 0], sizes = [1, 32], strides = [1, 1]} : vector<1x128xf32> to vector<1x32xf32>
    %545 = vector.extract_strided_slice %542 {offsets = [0, 32], sizes = [1, 32], strides = [1, 1]} : vector<1x128xf32> to vector<1x32xf32>
    %546 = vector.extract_strided_slice %542 {offsets = [0, 96], sizes = [1, 32], strides = [1, 1]} : vector<1x128xf32> to vector<1x32xf32>
    %547 = vector.extract_strided_slice %543 {offsets = [0, 64], sizes = [1, 32], strides = [1, 1]} : vector<1x128xf32> to vector<1x32xf32>
    %548 = arith.mulf %545, %521 : vector<1x32xf32>
    %549 = arith.mulf %544, %547 : vector<1x32xf32>
    %550 = arith.addf %548, %549 : vector<1x32xf32>
    %551 = math.tanh %550 : vector<1x32xf32>
    %552 = arith.mulf %546, %551 : vector<1x32xf32>
    %c19_i32 = arith.constant 19 : i32
    %553 = arith.index_cast %c19_i32 : i32 to index
    %554 = memref.load %arg0[%553] : memref<32xi32, #tpu.memory_space<smem>>
    %555 = arith.index_cast %c19_i32 : i32 to index
    %c0_154 = arith.constant 0 : index
    %c0_155 = arith.constant 0 : index
    %556 = vector.load %arg1[%555, %c0_154, %c0_155] : memref<32x1x32xf32, #tpu.memory_space<vmem>>, vector<1x1x32xf32>
    %557 = vector.shape_cast %556 : vector<1x1x32xf32> to vector<1x32xf32>
    %558 = tpu.concatenate %557, %552 in 1 : vector<1x32xf32>, vector<1x32xf32> -> vector<1x64xf32>
    %559 = arith.index_cast %554 : i32 to index
    %c0_156 = arith.constant 0 : index
    %c0_157 = arith.constant 0 : index
    %560 = vector.load %arg2[%559, %c0_156, %c0_157] : memref<36x64x128xf32, #tpu.memory_space<vmem>>, vector<1x64x128xf32>
    %561 = vector.shape_cast %560 : vector<1x64x128xf32> to vector<64x128xf32>
    %cst_158 = arith.constant dense<0.000000e+00> : vector<1x128xf32>
    %562 = tpu.matmul %558, %561, %cst_158 {dimension_numbers = #tpu.dot_dimension_numbers<[1], [0], [0], [1], [0, 0, 1, 1], [], []>} : vector<1x64xf32>, vector<64x128xf32>, vector<1x128xf32> -> vector<1x128xf32>
    %563 = arith.index_cast %554 : i32 to index
    %c0_159 = arith.constant 0 : index
    %c0_160 = arith.constant 0 : index
    %564 = vector.load %arg3[%563, %c0_159, %c0_160] : memref<36x1x128xf32, #tpu.memory_space<vmem>>, vector<1x1x128xf32>
    %565 = vector.shape_cast %564 : vector<1x1x128xf32> to vector<1x128xf32>
    %566 = arith.addf %562, %565 : vector<1x128xf32>
    %567 = arith.negf %566 : vector<1x128xf32>
    %568 = math.exp %567 : vector<1x128xf32>
    %cst_161 = arith.constant 1.000000e+00 : f32
    %569 = vector.broadcast %cst_161 : f32 to vector<1x128xf32>
    %570 = arith.addf %569, %568 : vector<1x128xf32>
    %571 = arith.divf %569, %570 : vector<1x128xf32>
    %572 = math.tanh %566 : vector<1x128xf32>
    %573 = vector.extract_strided_slice %571 {offsets = [0, 0], sizes = [1, 32], strides = [1, 1]} : vector<1x128xf32> to vector<1x32xf32>
    %574 = vector.extract_strided_slice %571 {offsets = [0, 32], sizes = [1, 32], strides = [1, 1]} : vector<1x128xf32> to vector<1x32xf32>
    %575 = vector.extract_strided_slice %571 {offsets = [0, 96], sizes = [1, 32], strides = [1, 1]} : vector<1x128xf32> to vector<1x32xf32>
    %576 = vector.extract_strided_slice %572 {offsets = [0, 64], sizes = [1, 32], strides = [1, 1]} : vector<1x128xf32> to vector<1x32xf32>
    %577 = arith.mulf %574, %550 : vector<1x32xf32>
    %578 = arith.mulf %573, %576 : vector<1x32xf32>
    %579 = arith.addf %577, %578 : vector<1x32xf32>
    %580 = math.tanh %579 : vector<1x32xf32>
    %581 = arith.mulf %575, %580 : vector<1x32xf32>
    %c20_i32 = arith.constant 20 : i32
    %582 = arith.index_cast %c20_i32 : i32 to index
    %583 = memref.load %arg0[%582] : memref<32xi32, #tpu.memory_space<smem>>
    %584 = arith.index_cast %c20_i32 : i32 to index
    %c0_162 = arith.constant 0 : index
    %c0_163 = arith.constant 0 : index
    %585 = vector.load %arg1[%584, %c0_162, %c0_163] : memref<32x1x32xf32, #tpu.memory_space<vmem>>, vector<1x1x32xf32>
    %586 = vector.shape_cast %585 : vector<1x1x32xf32> to vector<1x32xf32>
    %587 = tpu.concatenate %586, %581 in 1 : vector<1x32xf32>, vector<1x32xf32> -> vector<1x64xf32>
    %588 = arith.index_cast %583 : i32 to index
    %c0_164 = arith.constant 0 : index
    %c0_165 = arith.constant 0 : index
    %589 = vector.load %arg2[%588, %c0_164, %c0_165] : memref<36x64x128xf32, #tpu.memory_space<vmem>>, vector<1x64x128xf32>
    %590 = vector.shape_cast %589 : vector<1x64x128xf32> to vector<64x128xf32>
    %cst_166 = arith.constant dense<0.000000e+00> : vector<1x128xf32>
    %591 = tpu.matmul %587, %590, %cst_166 {dimension_numbers = #tpu.dot_dimension_numbers<[1], [0], [0], [1], [0, 0, 1, 1], [], []>} : vector<1x64xf32>, vector<64x128xf32>, vector<1x128xf32> -> vector<1x128xf32>
    %592 = arith.index_cast %583 : i32 to index
    %c0_167 = arith.constant 0 : index
    %c0_168 = arith.constant 0 : index
    %593 = vector.load %arg3[%592, %c0_167, %c0_168] : memref<36x1x128xf32, #tpu.memory_space<vmem>>, vector<1x1x128xf32>
    %594 = vector.shape_cast %593 : vector<1x1x128xf32> to vector<1x128xf32>
    %595 = arith.addf %591, %594 : vector<1x128xf32>
    %596 = arith.negf %595 : vector<1x128xf32>
    %597 = math.exp %596 : vector<1x128xf32>
    %cst_169 = arith.constant 1.000000e+00 : f32
    %598 = vector.broadcast %cst_169 : f32 to vector<1x128xf32>
    %599 = arith.addf %598, %597 : vector<1x128xf32>
    %600 = arith.divf %598, %599 : vector<1x128xf32>
    %601 = math.tanh %595 : vector<1x128xf32>
    %602 = vector.extract_strided_slice %600 {offsets = [0, 0], sizes = [1, 32], strides = [1, 1]} : vector<1x128xf32> to vector<1x32xf32>
    %603 = vector.extract_strided_slice %600 {offsets = [0, 32], sizes = [1, 32], strides = [1, 1]} : vector<1x128xf32> to vector<1x32xf32>
    %604 = vector.extract_strided_slice %600 {offsets = [0, 96], sizes = [1, 32], strides = [1, 1]} : vector<1x128xf32> to vector<1x32xf32>
    %605 = vector.extract_strided_slice %601 {offsets = [0, 64], sizes = [1, 32], strides = [1, 1]} : vector<1x128xf32> to vector<1x32xf32>
    %606 = arith.mulf %603, %579 : vector<1x32xf32>
    %607 = arith.mulf %602, %605 : vector<1x32xf32>
    %608 = arith.addf %606, %607 : vector<1x32xf32>
    %609 = math.tanh %608 : vector<1x32xf32>
    %610 = arith.mulf %604, %609 : vector<1x32xf32>
    %c21_i32 = arith.constant 21 : i32
    %611 = arith.index_cast %c21_i32 : i32 to index
    %612 = memref.load %arg0[%611] : memref<32xi32, #tpu.memory_space<smem>>
    %613 = arith.index_cast %c21_i32 : i32 to index
    %c0_170 = arith.constant 0 : index
    %c0_171 = arith.constant 0 : index
    %614 = vector.load %arg1[%613, %c0_170, %c0_171] : memref<32x1x32xf32, #tpu.memory_space<vmem>>, vector<1x1x32xf32>
    %615 = vector.shape_cast %614 : vector<1x1x32xf32> to vector<1x32xf32>
    %616 = tpu.concatenate %615, %610 in 1 : vector<1x32xf32>, vector<1x32xf32> -> vector<1x64xf32>
    %617 = arith.index_cast %612 : i32 to index
    %c0_172 = arith.constant 0 : index
    %c0_173 = arith.constant 0 : index
    %618 = vector.load %arg2[%617, %c0_172, %c0_173] : memref<36x64x128xf32, #tpu.memory_space<vmem>>, vector<1x64x128xf32>
    %619 = vector.shape_cast %618 : vector<1x64x128xf32> to vector<64x128xf32>
    %cst_174 = arith.constant dense<0.000000e+00> : vector<1x128xf32>
    %620 = tpu.matmul %616, %619, %cst_174 {dimension_numbers = #tpu.dot_dimension_numbers<[1], [0], [0], [1], [0, 0, 1, 1], [], []>} : vector<1x64xf32>, vector<64x128xf32>, vector<1x128xf32> -> vector<1x128xf32>
    %621 = arith.index_cast %612 : i32 to index
    %c0_175 = arith.constant 0 : index
    %c0_176 = arith.constant 0 : index
    %622 = vector.load %arg3[%621, %c0_175, %c0_176] : memref<36x1x128xf32, #tpu.memory_space<vmem>>, vector<1x1x128xf32>
    %623 = vector.shape_cast %622 : vector<1x1x128xf32> to vector<1x128xf32>
    %624 = arith.addf %620, %623 : vector<1x128xf32>
    %625 = arith.negf %624 : vector<1x128xf32>
    %626 = math.exp %625 : vector<1x128xf32>
    %cst_177 = arith.constant 1.000000e+00 : f32
    %627 = vector.broadcast %cst_177 : f32 to vector<1x128xf32>
    %628 = arith.addf %627, %626 : vector<1x128xf32>
    %629 = arith.divf %627, %628 : vector<1x128xf32>
    %630 = math.tanh %624 : vector<1x128xf32>
    %631 = vector.extract_strided_slice %629 {offsets = [0, 0], sizes = [1, 32], strides = [1, 1]} : vector<1x128xf32> to vector<1x32xf32>
    %632 = vector.extract_strided_slice %629 {offsets = [0, 32], sizes = [1, 32], strides = [1, 1]} : vector<1x128xf32> to vector<1x32xf32>
    %633 = vector.extract_strided_slice %629 {offsets = [0, 96], sizes = [1, 32], strides = [1, 1]} : vector<1x128xf32> to vector<1x32xf32>
    %634 = vector.extract_strided_slice %630 {offsets = [0, 64], sizes = [1, 32], strides = [1, 1]} : vector<1x128xf32> to vector<1x32xf32>
    %635 = arith.mulf %632, %608 : vector<1x32xf32>
    %636 = arith.mulf %631, %634 : vector<1x32xf32>
    %637 = arith.addf %635, %636 : vector<1x32xf32>
    %638 = math.tanh %637 : vector<1x32xf32>
    %639 = arith.mulf %633, %638 : vector<1x32xf32>
    %c22_i32 = arith.constant 22 : i32
    %640 = arith.index_cast %c22_i32 : i32 to index
    %641 = memref.load %arg0[%640] : memref<32xi32, #tpu.memory_space<smem>>
    %642 = arith.index_cast %c22_i32 : i32 to index
    %c0_178 = arith.constant 0 : index
    %c0_179 = arith.constant 0 : index
    %643 = vector.load %arg1[%642, %c0_178, %c0_179] : memref<32x1x32xf32, #tpu.memory_space<vmem>>, vector<1x1x32xf32>
    %644 = vector.shape_cast %643 : vector<1x1x32xf32> to vector<1x32xf32>
    %645 = tpu.concatenate %644, %639 in 1 : vector<1x32xf32>, vector<1x32xf32> -> vector<1x64xf32>
    %646 = arith.index_cast %641 : i32 to index
    %c0_180 = arith.constant 0 : index
    %c0_181 = arith.constant 0 : index
    %647 = vector.load %arg2[%646, %c0_180, %c0_181] : memref<36x64x128xf32, #tpu.memory_space<vmem>>, vector<1x64x128xf32>
    %648 = vector.shape_cast %647 : vector<1x64x128xf32> to vector<64x128xf32>
    %cst_182 = arith.constant dense<0.000000e+00> : vector<1x128xf32>
    %649 = tpu.matmul %645, %648, %cst_182 {dimension_numbers = #tpu.dot_dimension_numbers<[1], [0], [0], [1], [0, 0, 1, 1], [], []>} : vector<1x64xf32>, vector<64x128xf32>, vector<1x128xf32> -> vector<1x128xf32>
    %650 = arith.index_cast %641 : i32 to index
    %c0_183 = arith.constant 0 : index
    %c0_184 = arith.constant 0 : index
    %651 = vector.load %arg3[%650, %c0_183, %c0_184] : memref<36x1x128xf32, #tpu.memory_space<vmem>>, vector<1x1x128xf32>
    %652 = vector.shape_cast %651 : vector<1x1x128xf32> to vector<1x128xf32>
    %653 = arith.addf %649, %652 : vector<1x128xf32>
    %654 = arith.negf %653 : vector<1x128xf32>
    %655 = math.exp %654 : vector<1x128xf32>
    %cst_185 = arith.constant 1.000000e+00 : f32
    %656 = vector.broadcast %cst_185 : f32 to vector<1x128xf32>
    %657 = arith.addf %656, %655 : vector<1x128xf32>
    %658 = arith.divf %656, %657 : vector<1x128xf32>
    %659 = math.tanh %653 : vector<1x128xf32>
    %660 = vector.extract_strided_slice %658 {offsets = [0, 0], sizes = [1, 32], strides = [1, 1]} : vector<1x128xf32> to vector<1x32xf32>
    %661 = vector.extract_strided_slice %658 {offsets = [0, 32], sizes = [1, 32], strides = [1, 1]} : vector<1x128xf32> to vector<1x32xf32>
    %662 = vector.extract_strided_slice %658 {offsets = [0, 96], sizes = [1, 32], strides = [1, 1]} : vector<1x128xf32> to vector<1x32xf32>
    %663 = vector.extract_strided_slice %659 {offsets = [0, 64], sizes = [1, 32], strides = [1, 1]} : vector<1x128xf32> to vector<1x32xf32>
    %664 = arith.mulf %661, %637 : vector<1x32xf32>
    %665 = arith.mulf %660, %663 : vector<1x32xf32>
    %666 = arith.addf %664, %665 : vector<1x32xf32>
    %667 = math.tanh %666 : vector<1x32xf32>
    %668 = arith.mulf %662, %667 : vector<1x32xf32>
    %c23_i32 = arith.constant 23 : i32
    %669 = arith.index_cast %c23_i32 : i32 to index
    %670 = memref.load %arg0[%669] : memref<32xi32, #tpu.memory_space<smem>>
    %671 = arith.index_cast %c23_i32 : i32 to index
    %c0_186 = arith.constant 0 : index
    %c0_187 = arith.constant 0 : index
    %672 = vector.load %arg1[%671, %c0_186, %c0_187] : memref<32x1x32xf32, #tpu.memory_space<vmem>>, vector<1x1x32xf32>
    %673 = vector.shape_cast %672 : vector<1x1x32xf32> to vector<1x32xf32>
    %674 = tpu.concatenate %673, %668 in 1 : vector<1x32xf32>, vector<1x32xf32> -> vector<1x64xf32>
    %675 = arith.index_cast %670 : i32 to index
    %c0_188 = arith.constant 0 : index
    %c0_189 = arith.constant 0 : index
    %676 = vector.load %arg2[%675, %c0_188, %c0_189] : memref<36x64x128xf32, #tpu.memory_space<vmem>>, vector<1x64x128xf32>
    %677 = vector.shape_cast %676 : vector<1x64x128xf32> to vector<64x128xf32>
    %cst_190 = arith.constant dense<0.000000e+00> : vector<1x128xf32>
    %678 = tpu.matmul %674, %677, %cst_190 {dimension_numbers = #tpu.dot_dimension_numbers<[1], [0], [0], [1], [0, 0, 1, 1], [], []>} : vector<1x64xf32>, vector<64x128xf32>, vector<1x128xf32> -> vector<1x128xf32>
    %679 = arith.index_cast %670 : i32 to index
    %c0_191 = arith.constant 0 : index
    %c0_192 = arith.constant 0 : index
    %680 = vector.load %arg3[%679, %c0_191, %c0_192] : memref<36x1x128xf32, #tpu.memory_space<vmem>>, vector<1x1x128xf32>
    %681 = vector.shape_cast %680 : vector<1x1x128xf32> to vector<1x128xf32>
    %682 = arith.addf %678, %681 : vector<1x128xf32>
    %683 = arith.negf %682 : vector<1x128xf32>
    %684 = math.exp %683 : vector<1x128xf32>
    %cst_193 = arith.constant 1.000000e+00 : f32
    %685 = vector.broadcast %cst_193 : f32 to vector<1x128xf32>
    %686 = arith.addf %685, %684 : vector<1x128xf32>
    %687 = arith.divf %685, %686 : vector<1x128xf32>
    %688 = math.tanh %682 : vector<1x128xf32>
    %689 = vector.extract_strided_slice %687 {offsets = [0, 0], sizes = [1, 32], strides = [1, 1]} : vector<1x128xf32> to vector<1x32xf32>
    %690 = vector.extract_strided_slice %687 {offsets = [0, 32], sizes = [1, 32], strides = [1, 1]} : vector<1x128xf32> to vector<1x32xf32>
    %691 = vector.extract_strided_slice %687 {offsets = [0, 96], sizes = [1, 32], strides = [1, 1]} : vector<1x128xf32> to vector<1x32xf32>
    %692 = vector.extract_strided_slice %688 {offsets = [0, 64], sizes = [1, 32], strides = [1, 1]} : vector<1x128xf32> to vector<1x32xf32>
    %693 = arith.mulf %690, %666 : vector<1x32xf32>
    %694 = arith.mulf %689, %692 : vector<1x32xf32>
    %695 = arith.addf %693, %694 : vector<1x32xf32>
    %696 = math.tanh %695 : vector<1x32xf32>
    %697 = arith.mulf %691, %696 : vector<1x32xf32>
    %c24_i32 = arith.constant 24 : i32
    %698 = arith.index_cast %c24_i32 : i32 to index
    %699 = memref.load %arg0[%698] : memref<32xi32, #tpu.memory_space<smem>>
    %700 = arith.index_cast %c24_i32 : i32 to index
    %c0_194 = arith.constant 0 : index
    %c0_195 = arith.constant 0 : index
    %701 = vector.load %arg1[%700, %c0_194, %c0_195] : memref<32x1x32xf32, #tpu.memory_space<vmem>>, vector<1x1x32xf32>
    %702 = vector.shape_cast %701 : vector<1x1x32xf32> to vector<1x32xf32>
    %703 = tpu.concatenate %702, %697 in 1 : vector<1x32xf32>, vector<1x32xf32> -> vector<1x64xf32>
    %704 = arith.index_cast %699 : i32 to index
    %c0_196 = arith.constant 0 : index
    %c0_197 = arith.constant 0 : index
    %705 = vector.load %arg2[%704, %c0_196, %c0_197] : memref<36x64x128xf32, #tpu.memory_space<vmem>>, vector<1x64x128xf32>
    %706 = vector.shape_cast %705 : vector<1x64x128xf32> to vector<64x128xf32>
    %cst_198 = arith.constant dense<0.000000e+00> : vector<1x128xf32>
    %707 = tpu.matmul %703, %706, %cst_198 {dimension_numbers = #tpu.dot_dimension_numbers<[1], [0], [0], [1], [0, 0, 1, 1], [], []>} : vector<1x64xf32>, vector<64x128xf32>, vector<1x128xf32> -> vector<1x128xf32>
    %708 = arith.index_cast %699 : i32 to index
    %c0_199 = arith.constant 0 : index
    %c0_200 = arith.constant 0 : index
    %709 = vector.load %arg3[%708, %c0_199, %c0_200] : memref<36x1x128xf32, #tpu.memory_space<vmem>>, vector<1x1x128xf32>
    %710 = vector.shape_cast %709 : vector<1x1x128xf32> to vector<1x128xf32>
    %711 = arith.addf %707, %710 : vector<1x128xf32>
    %712 = arith.negf %711 : vector<1x128xf32>
    %713 = math.exp %712 : vector<1x128xf32>
    %cst_201 = arith.constant 1.000000e+00 : f32
    %714 = vector.broadcast %cst_201 : f32 to vector<1x128xf32>
    %715 = arith.addf %714, %713 : vector<1x128xf32>
    %716 = arith.divf %714, %715 : vector<1x128xf32>
    %717 = math.tanh %711 : vector<1x128xf32>
    %718 = vector.extract_strided_slice %716 {offsets = [0, 0], sizes = [1, 32], strides = [1, 1]} : vector<1x128xf32> to vector<1x32xf32>
    %719 = vector.extract_strided_slice %716 {offsets = [0, 32], sizes = [1, 32], strides = [1, 1]} : vector<1x128xf32> to vector<1x32xf32>
    %720 = vector.extract_strided_slice %716 {offsets = [0, 96], sizes = [1, 32], strides = [1, 1]} : vector<1x128xf32> to vector<1x32xf32>
    %721 = vector.extract_strided_slice %717 {offsets = [0, 64], sizes = [1, 32], strides = [1, 1]} : vector<1x128xf32> to vector<1x32xf32>
    %722 = arith.mulf %719, %695 : vector<1x32xf32>
    %723 = arith.mulf %718, %721 : vector<1x32xf32>
    %724 = arith.addf %722, %723 : vector<1x32xf32>
    %725 = math.tanh %724 : vector<1x32xf32>
    %726 = arith.mulf %720, %725 : vector<1x32xf32>
    %c25_i32 = arith.constant 25 : i32
    %727 = arith.index_cast %c25_i32 : i32 to index
    %728 = memref.load %arg0[%727] : memref<32xi32, #tpu.memory_space<smem>>
    %729 = arith.index_cast %c25_i32 : i32 to index
    %c0_202 = arith.constant 0 : index
    %c0_203 = arith.constant 0 : index
    %730 = vector.load %arg1[%729, %c0_202, %c0_203] : memref<32x1x32xf32, #tpu.memory_space<vmem>>, vector<1x1x32xf32>
    %731 = vector.shape_cast %730 : vector<1x1x32xf32> to vector<1x32xf32>
    %732 = tpu.concatenate %731, %726 in 1 : vector<1x32xf32>, vector<1x32xf32> -> vector<1x64xf32>
    %733 = arith.index_cast %728 : i32 to index
    %c0_204 = arith.constant 0 : index
    %c0_205 = arith.constant 0 : index
    %734 = vector.load %arg2[%733, %c0_204, %c0_205] : memref<36x64x128xf32, #tpu.memory_space<vmem>>, vector<1x64x128xf32>
    %735 = vector.shape_cast %734 : vector<1x64x128xf32> to vector<64x128xf32>
    %cst_206 = arith.constant dense<0.000000e+00> : vector<1x128xf32>
    %736 = tpu.matmul %732, %735, %cst_206 {dimension_numbers = #tpu.dot_dimension_numbers<[1], [0], [0], [1], [0, 0, 1, 1], [], []>} : vector<1x64xf32>, vector<64x128xf32>, vector<1x128xf32> -> vector<1x128xf32>
    %737 = arith.index_cast %728 : i32 to index
    %c0_207 = arith.constant 0 : index
    %c0_208 = arith.constant 0 : index
    %738 = vector.load %arg3[%737, %c0_207, %c0_208] : memref<36x1x128xf32, #tpu.memory_space<vmem>>, vector<1x1x128xf32>
    %739 = vector.shape_cast %738 : vector<1x1x128xf32> to vector<1x128xf32>
    %740 = arith.addf %736, %739 : vector<1x128xf32>
    %741 = arith.negf %740 : vector<1x128xf32>
    %742 = math.exp %741 : vector<1x128xf32>
    %cst_209 = arith.constant 1.000000e+00 : f32
    %743 = vector.broadcast %cst_209 : f32 to vector<1x128xf32>
    %744 = arith.addf %743, %742 : vector<1x128xf32>
    %745 = arith.divf %743, %744 : vector<1x128xf32>
    %746 = math.tanh %740 : vector<1x128xf32>
    %747 = vector.extract_strided_slice %745 {offsets = [0, 0], sizes = [1, 32], strides = [1, 1]} : vector<1x128xf32> to vector<1x32xf32>
    %748 = vector.extract_strided_slice %745 {offsets = [0, 32], sizes = [1, 32], strides = [1, 1]} : vector<1x128xf32> to vector<1x32xf32>
    %749 = vector.extract_strided_slice %745 {offsets = [0, 96], sizes = [1, 32], strides = [1, 1]} : vector<1x128xf32> to vector<1x32xf32>
    %750 = vector.extract_strided_slice %746 {offsets = [0, 64], sizes = [1, 32], strides = [1, 1]} : vector<1x128xf32> to vector<1x32xf32>
    %751 = arith.mulf %748, %724 : vector<1x32xf32>
    %752 = arith.mulf %747, %750 : vector<1x32xf32>
    %753 = arith.addf %751, %752 : vector<1x32xf32>
    %754 = math.tanh %753 : vector<1x32xf32>
    %755 = arith.mulf %749, %754 : vector<1x32xf32>
    %c26_i32 = arith.constant 26 : i32
    %756 = arith.index_cast %c26_i32 : i32 to index
    %757 = memref.load %arg0[%756] : memref<32xi32, #tpu.memory_space<smem>>
    %758 = arith.index_cast %c26_i32 : i32 to index
    %c0_210 = arith.constant 0 : index
    %c0_211 = arith.constant 0 : index
    %759 = vector.load %arg1[%758, %c0_210, %c0_211] : memref<32x1x32xf32, #tpu.memory_space<vmem>>, vector<1x1x32xf32>
    %760 = vector.shape_cast %759 : vector<1x1x32xf32> to vector<1x32xf32>
    %761 = tpu.concatenate %760, %755 in 1 : vector<1x32xf32>, vector<1x32xf32> -> vector<1x64xf32>
    %762 = arith.index_cast %757 : i32 to index
    %c0_212 = arith.constant 0 : index
    %c0_213 = arith.constant 0 : index
    %763 = vector.load %arg2[%762, %c0_212, %c0_213] : memref<36x64x128xf32, #tpu.memory_space<vmem>>, vector<1x64x128xf32>
    %764 = vector.shape_cast %763 : vector<1x64x128xf32> to vector<64x128xf32>
    %cst_214 = arith.constant dense<0.000000e+00> : vector<1x128xf32>
    %765 = tpu.matmul %761, %764, %cst_214 {dimension_numbers = #tpu.dot_dimension_numbers<[1], [0], [0], [1], [0, 0, 1, 1], [], []>} : vector<1x64xf32>, vector<64x128xf32>, vector<1x128xf32> -> vector<1x128xf32>
    %766 = arith.index_cast %757 : i32 to index
    %c0_215 = arith.constant 0 : index
    %c0_216 = arith.constant 0 : index
    %767 = vector.load %arg3[%766, %c0_215, %c0_216] : memref<36x1x128xf32, #tpu.memory_space<vmem>>, vector<1x1x128xf32>
    %768 = vector.shape_cast %767 : vector<1x1x128xf32> to vector<1x128xf32>
    %769 = arith.addf %765, %768 : vector<1x128xf32>
    %770 = arith.negf %769 : vector<1x128xf32>
    %771 = math.exp %770 : vector<1x128xf32>
    %cst_217 = arith.constant 1.000000e+00 : f32
    %772 = vector.broadcast %cst_217 : f32 to vector<1x128xf32>
    %773 = arith.addf %772, %771 : vector<1x128xf32>
    %774 = arith.divf %772, %773 : vector<1x128xf32>
    %775 = math.tanh %769 : vector<1x128xf32>
    %776 = vector.extract_strided_slice %774 {offsets = [0, 0], sizes = [1, 32], strides = [1, 1]} : vector<1x128xf32> to vector<1x32xf32>
    %777 = vector.extract_strided_slice %774 {offsets = [0, 32], sizes = [1, 32], strides = [1, 1]} : vector<1x128xf32> to vector<1x32xf32>
    %778 = vector.extract_strided_slice %774 {offsets = [0, 96], sizes = [1, 32], strides = [1, 1]} : vector<1x128xf32> to vector<1x32xf32>
    %779 = vector.extract_strided_slice %775 {offsets = [0, 64], sizes = [1, 32], strides = [1, 1]} : vector<1x128xf32> to vector<1x32xf32>
    %780 = arith.mulf %777, %753 : vector<1x32xf32>
    %781 = arith.mulf %776, %779 : vector<1x32xf32>
    %782 = arith.addf %780, %781 : vector<1x32xf32>
    %783 = math.tanh %782 : vector<1x32xf32>
    %784 = arith.mulf %778, %783 : vector<1x32xf32>
    %c27_i32 = arith.constant 27 : i32
    %785 = arith.index_cast %c27_i32 : i32 to index
    %786 = memref.load %arg0[%785] : memref<32xi32, #tpu.memory_space<smem>>
    %787 = arith.index_cast %c27_i32 : i32 to index
    %c0_218 = arith.constant 0 : index
    %c0_219 = arith.constant 0 : index
    %788 = vector.load %arg1[%787, %c0_218, %c0_219] : memref<32x1x32xf32, #tpu.memory_space<vmem>>, vector<1x1x32xf32>
    %789 = vector.shape_cast %788 : vector<1x1x32xf32> to vector<1x32xf32>
    %790 = tpu.concatenate %789, %784 in 1 : vector<1x32xf32>, vector<1x32xf32> -> vector<1x64xf32>
    %791 = arith.index_cast %786 : i32 to index
    %c0_220 = arith.constant 0 : index
    %c0_221 = arith.constant 0 : index
    %792 = vector.load %arg2[%791, %c0_220, %c0_221] : memref<36x64x128xf32, #tpu.memory_space<vmem>>, vector<1x64x128xf32>
    %793 = vector.shape_cast %792 : vector<1x64x128xf32> to vector<64x128xf32>
    %cst_222 = arith.constant dense<0.000000e+00> : vector<1x128xf32>
    %794 = tpu.matmul %790, %793, %cst_222 {dimension_numbers = #tpu.dot_dimension_numbers<[1], [0], [0], [1], [0, 0, 1, 1], [], []>} : vector<1x64xf32>, vector<64x128xf32>, vector<1x128xf32> -> vector<1x128xf32>
    %795 = arith.index_cast %786 : i32 to index
    %c0_223 = arith.constant 0 : index
    %c0_224 = arith.constant 0 : index
    %796 = vector.load %arg3[%795, %c0_223, %c0_224] : memref<36x1x128xf32, #tpu.memory_space<vmem>>, vector<1x1x128xf32>
    %797 = vector.shape_cast %796 : vector<1x1x128xf32> to vector<1x128xf32>
    %798 = arith.addf %794, %797 : vector<1x128xf32>
    %799 = arith.negf %798 : vector<1x128xf32>
    %800 = math.exp %799 : vector<1x128xf32>
    %cst_225 = arith.constant 1.000000e+00 : f32
    %801 = vector.broadcast %cst_225 : f32 to vector<1x128xf32>
    %802 = arith.addf %801, %800 : vector<1x128xf32>
    %803 = arith.divf %801, %802 : vector<1x128xf32>
    %804 = math.tanh %798 : vector<1x128xf32>
    %805 = vector.extract_strided_slice %803 {offsets = [0, 0], sizes = [1, 32], strides = [1, 1]} : vector<1x128xf32> to vector<1x32xf32>
    %806 = vector.extract_strided_slice %803 {offsets = [0, 32], sizes = [1, 32], strides = [1, 1]} : vector<1x128xf32> to vector<1x32xf32>
    %807 = vector.extract_strided_slice %803 {offsets = [0, 96], sizes = [1, 32], strides = [1, 1]} : vector<1x128xf32> to vector<1x32xf32>
    %808 = vector.extract_strided_slice %804 {offsets = [0, 64], sizes = [1, 32], strides = [1, 1]} : vector<1x128xf32> to vector<1x32xf32>
    %809 = arith.mulf %806, %782 : vector<1x32xf32>
    %810 = arith.mulf %805, %808 : vector<1x32xf32>
    %811 = arith.addf %809, %810 : vector<1x32xf32>
    %812 = math.tanh %811 : vector<1x32xf32>
    %813 = arith.mulf %807, %812 : vector<1x32xf32>
    %c28_i32 = arith.constant 28 : i32
    %814 = arith.index_cast %c28_i32 : i32 to index
    %815 = memref.load %arg0[%814] : memref<32xi32, #tpu.memory_space<smem>>
    %816 = arith.index_cast %c28_i32 : i32 to index
    %c0_226 = arith.constant 0 : index
    %c0_227 = arith.constant 0 : index
    %817 = vector.load %arg1[%816, %c0_226, %c0_227] : memref<32x1x32xf32, #tpu.memory_space<vmem>>, vector<1x1x32xf32>
    %818 = vector.shape_cast %817 : vector<1x1x32xf32> to vector<1x32xf32>
    %819 = tpu.concatenate %818, %813 in 1 : vector<1x32xf32>, vector<1x32xf32> -> vector<1x64xf32>
    %820 = arith.index_cast %815 : i32 to index
    %c0_228 = arith.constant 0 : index
    %c0_229 = arith.constant 0 : index
    %821 = vector.load %arg2[%820, %c0_228, %c0_229] : memref<36x64x128xf32, #tpu.memory_space<vmem>>, vector<1x64x128xf32>
    %822 = vector.shape_cast %821 : vector<1x64x128xf32> to vector<64x128xf32>
    %cst_230 = arith.constant dense<0.000000e+00> : vector<1x128xf32>
    %823 = tpu.matmul %819, %822, %cst_230 {dimension_numbers = #tpu.dot_dimension_numbers<[1], [0], [0], [1], [0, 0, 1, 1], [], []>} : vector<1x64xf32>, vector<64x128xf32>, vector<1x128xf32> -> vector<1x128xf32>
    %824 = arith.index_cast %815 : i32 to index
    %c0_231 = arith.constant 0 : index
    %c0_232 = arith.constant 0 : index
    %825 = vector.load %arg3[%824, %c0_231, %c0_232] : memref<36x1x128xf32, #tpu.memory_space<vmem>>, vector<1x1x128xf32>
    %826 = vector.shape_cast %825 : vector<1x1x128xf32> to vector<1x128xf32>
    %827 = arith.addf %823, %826 : vector<1x128xf32>
    %828 = arith.negf %827 : vector<1x128xf32>
    %829 = math.exp %828 : vector<1x128xf32>
    %cst_233 = arith.constant 1.000000e+00 : f32
    %830 = vector.broadcast %cst_233 : f32 to vector<1x128xf32>
    %831 = arith.addf %830, %829 : vector<1x128xf32>
    %832 = arith.divf %830, %831 : vector<1x128xf32>
    %833 = math.tanh %827 : vector<1x128xf32>
    %834 = vector.extract_strided_slice %832 {offsets = [0, 0], sizes = [1, 32], strides = [1, 1]} : vector<1x128xf32> to vector<1x32xf32>
    %835 = vector.extract_strided_slice %832 {offsets = [0, 32], sizes = [1, 32], strides = [1, 1]} : vector<1x128xf32> to vector<1x32xf32>
    %836 = vector.extract_strided_slice %832 {offsets = [0, 96], sizes = [1, 32], strides = [1, 1]} : vector<1x128xf32> to vector<1x32xf32>
    %837 = vector.extract_strided_slice %833 {offsets = [0, 64], sizes = [1, 32], strides = [1, 1]} : vector<1x128xf32> to vector<1x32xf32>
    %838 = arith.mulf %835, %811 : vector<1x32xf32>
    %839 = arith.mulf %834, %837 : vector<1x32xf32>
    %840 = arith.addf %838, %839 : vector<1x32xf32>
    %841 = math.tanh %840 : vector<1x32xf32>
    %842 = arith.mulf %836, %841 : vector<1x32xf32>
    %c29_i32 = arith.constant 29 : i32
    %843 = arith.index_cast %c29_i32 : i32 to index
    %844 = memref.load %arg0[%843] : memref<32xi32, #tpu.memory_space<smem>>
    %845 = arith.index_cast %c29_i32 : i32 to index
    %c0_234 = arith.constant 0 : index
    %c0_235 = arith.constant 0 : index
    %846 = vector.load %arg1[%845, %c0_234, %c0_235] : memref<32x1x32xf32, #tpu.memory_space<vmem>>, vector<1x1x32xf32>
    %847 = vector.shape_cast %846 : vector<1x1x32xf32> to vector<1x32xf32>
    %848 = tpu.concatenate %847, %842 in 1 : vector<1x32xf32>, vector<1x32xf32> -> vector<1x64xf32>
    %849 = arith.index_cast %844 : i32 to index
    %c0_236 = arith.constant 0 : index
    %c0_237 = arith.constant 0 : index
    %850 = vector.load %arg2[%849, %c0_236, %c0_237] : memref<36x64x128xf32, #tpu.memory_space<vmem>>, vector<1x64x128xf32>
    %851 = vector.shape_cast %850 : vector<1x64x128xf32> to vector<64x128xf32>
    %cst_238 = arith.constant dense<0.000000e+00> : vector<1x128xf32>
    %852 = tpu.matmul %848, %851, %cst_238 {dimension_numbers = #tpu.dot_dimension_numbers<[1], [0], [0], [1], [0, 0, 1, 1], [], []>} : vector<1x64xf32>, vector<64x128xf32>, vector<1x128xf32> -> vector<1x128xf32>
    %853 = arith.index_cast %844 : i32 to index
    %c0_239 = arith.constant 0 : index
    %c0_240 = arith.constant 0 : index
    %854 = vector.load %arg3[%853, %c0_239, %c0_240] : memref<36x1x128xf32, #tpu.memory_space<vmem>>, vector<1x1x128xf32>
    %855 = vector.shape_cast %854 : vector<1x1x128xf32> to vector<1x128xf32>
    %856 = arith.addf %852, %855 : vector<1x128xf32>
    %857 = arith.negf %856 : vector<1x128xf32>
    %858 = math.exp %857 : vector<1x128xf32>
    %cst_241 = arith.constant 1.000000e+00 : f32
    %859 = vector.broadcast %cst_241 : f32 to vector<1x128xf32>
    %860 = arith.addf %859, %858 : vector<1x128xf32>
    %861 = arith.divf %859, %860 : vector<1x128xf32>
    %862 = math.tanh %856 : vector<1x128xf32>
    %863 = vector.extract_strided_slice %861 {offsets = [0, 0], sizes = [1, 32], strides = [1, 1]} : vector<1x128xf32> to vector<1x32xf32>
    %864 = vector.extract_strided_slice %861 {offsets = [0, 32], sizes = [1, 32], strides = [1, 1]} : vector<1x128xf32> to vector<1x32xf32>
    %865 = vector.extract_strided_slice %861 {offsets = [0, 96], sizes = [1, 32], strides = [1, 1]} : vector<1x128xf32> to vector<1x32xf32>
    %866 = vector.extract_strided_slice %862 {offsets = [0, 64], sizes = [1, 32], strides = [1, 1]} : vector<1x128xf32> to vector<1x32xf32>
    %867 = arith.mulf %864, %840 : vector<1x32xf32>
    %868 = arith.mulf %863, %866 : vector<1x32xf32>
    %869 = arith.addf %867, %868 : vector<1x32xf32>
    %870 = math.tanh %869 : vector<1x32xf32>
    %871 = arith.mulf %865, %870 : vector<1x32xf32>
    %c30_i32 = arith.constant 30 : i32
    %872 = arith.index_cast %c30_i32 : i32 to index
    %873 = memref.load %arg0[%872] : memref<32xi32, #tpu.memory_space<smem>>
    %874 = arith.index_cast %c30_i32 : i32 to index
    %c0_242 = arith.constant 0 : index
    %c0_243 = arith.constant 0 : index
    %875 = vector.load %arg1[%874, %c0_242, %c0_243] : memref<32x1x32xf32, #tpu.memory_space<vmem>>, vector<1x1x32xf32>
    %876 = vector.shape_cast %875 : vector<1x1x32xf32> to vector<1x32xf32>
    %877 = tpu.concatenate %876, %871 in 1 : vector<1x32xf32>, vector<1x32xf32> -> vector<1x64xf32>
    %878 = arith.index_cast %873 : i32 to index
    %c0_244 = arith.constant 0 : index
    %c0_245 = arith.constant 0 : index
    %879 = vector.load %arg2[%878, %c0_244, %c0_245] : memref<36x64x128xf32, #tpu.memory_space<vmem>>, vector<1x64x128xf32>
    %880 = vector.shape_cast %879 : vector<1x64x128xf32> to vector<64x128xf32>
    %cst_246 = arith.constant dense<0.000000e+00> : vector<1x128xf32>
    %881 = tpu.matmul %877, %880, %cst_246 {dimension_numbers = #tpu.dot_dimension_numbers<[1], [0], [0], [1], [0, 0, 1, 1], [], []>} : vector<1x64xf32>, vector<64x128xf32>, vector<1x128xf32> -> vector<1x128xf32>
    %882 = arith.index_cast %873 : i32 to index
    %c0_247 = arith.constant 0 : index
    %c0_248 = arith.constant 0 : index
    %883 = vector.load %arg3[%882, %c0_247, %c0_248] : memref<36x1x128xf32, #tpu.memory_space<vmem>>, vector<1x1x128xf32>
    %884 = vector.shape_cast %883 : vector<1x1x128xf32> to vector<1x128xf32>
    %885 = arith.addf %881, %884 : vector<1x128xf32>
    %886 = arith.negf %885 : vector<1x128xf32>
    %887 = math.exp %886 : vector<1x128xf32>
    %cst_249 = arith.constant 1.000000e+00 : f32
    %888 = vector.broadcast %cst_249 : f32 to vector<1x128xf32>
    %889 = arith.addf %888, %887 : vector<1x128xf32>
    %890 = arith.divf %888, %889 : vector<1x128xf32>
    %891 = math.tanh %885 : vector<1x128xf32>
    %892 = vector.extract_strided_slice %890 {offsets = [0, 0], sizes = [1, 32], strides = [1, 1]} : vector<1x128xf32> to vector<1x32xf32>
    %893 = vector.extract_strided_slice %890 {offsets = [0, 32], sizes = [1, 32], strides = [1, 1]} : vector<1x128xf32> to vector<1x32xf32>
    %894 = vector.extract_strided_slice %890 {offsets = [0, 96], sizes = [1, 32], strides = [1, 1]} : vector<1x128xf32> to vector<1x32xf32>
    %895 = vector.extract_strided_slice %891 {offsets = [0, 64], sizes = [1, 32], strides = [1, 1]} : vector<1x128xf32> to vector<1x32xf32>
    %896 = arith.mulf %893, %869 : vector<1x32xf32>
    %897 = arith.mulf %892, %895 : vector<1x32xf32>
    %898 = arith.addf %896, %897 : vector<1x32xf32>
    %899 = math.tanh %898 : vector<1x32xf32>
    %900 = arith.mulf %894, %899 : vector<1x32xf32>
    %c31_i32 = arith.constant 31 : i32
    %901 = arith.index_cast %c31_i32 : i32 to index
    %902 = memref.load %arg0[%901] : memref<32xi32, #tpu.memory_space<smem>>
    %903 = arith.index_cast %c31_i32 : i32 to index
    %c0_250 = arith.constant 0 : index
    %c0_251 = arith.constant 0 : index
    %904 = vector.load %arg1[%903, %c0_250, %c0_251] : memref<32x1x32xf32, #tpu.memory_space<vmem>>, vector<1x1x32xf32>
    %905 = vector.shape_cast %904 : vector<1x1x32xf32> to vector<1x32xf32>
    %906 = tpu.concatenate %905, %900 in 1 : vector<1x32xf32>, vector<1x32xf32> -> vector<1x64xf32>
    %907 = arith.index_cast %902 : i32 to index
    %c0_252 = arith.constant 0 : index
    %c0_253 = arith.constant 0 : index
    %908 = vector.load %arg2[%907, %c0_252, %c0_253] : memref<36x64x128xf32, #tpu.memory_space<vmem>>, vector<1x64x128xf32>
    %909 = vector.shape_cast %908 : vector<1x64x128xf32> to vector<64x128xf32>
    %cst_254 = arith.constant dense<0.000000e+00> : vector<1x128xf32>
    %910 = tpu.matmul %906, %909, %cst_254 {dimension_numbers = #tpu.dot_dimension_numbers<[1], [0], [0], [1], [0, 0, 1, 1], [], []>} : vector<1x64xf32>, vector<64x128xf32>, vector<1x128xf32> -> vector<1x128xf32>
    %911 = arith.index_cast %902 : i32 to index
    %c0_255 = arith.constant 0 : index
    %c0_256 = arith.constant 0 : index
    %912 = vector.load %arg3[%911, %c0_255, %c0_256] : memref<36x1x128xf32, #tpu.memory_space<vmem>>, vector<1x1x128xf32>
    %913 = vector.shape_cast %912 : vector<1x1x128xf32> to vector<1x128xf32>
    %914 = arith.addf %910, %913 : vector<1x128xf32>
    %915 = arith.negf %914 : vector<1x128xf32>
    %916 = math.exp %915 : vector<1x128xf32>
    %cst_257 = arith.constant 1.000000e+00 : f32
    %917 = vector.broadcast %cst_257 : f32 to vector<1x128xf32>
    %918 = arith.addf %917, %916 : vector<1x128xf32>
    %919 = arith.divf %917, %918 : vector<1x128xf32>
    %920 = math.tanh %914 : vector<1x128xf32>
    %921 = vector.extract_strided_slice %919 {offsets = [0, 0], sizes = [1, 32], strides = [1, 1]} : vector<1x128xf32> to vector<1x32xf32>
    %922 = vector.extract_strided_slice %919 {offsets = [0, 32], sizes = [1, 32], strides = [1, 1]} : vector<1x128xf32> to vector<1x32xf32>
    %923 = vector.extract_strided_slice %919 {offsets = [0, 96], sizes = [1, 32], strides = [1, 1]} : vector<1x128xf32> to vector<1x32xf32>
    %924 = vector.extract_strided_slice %920 {offsets = [0, 64], sizes = [1, 32], strides = [1, 1]} : vector<1x128xf32> to vector<1x32xf32>
    %925 = arith.mulf %922, %898 : vector<1x32xf32>
    %926 = arith.mulf %921, %924 : vector<1x32xf32>
    %927 = arith.addf %925, %926 : vector<1x32xf32>
    %928 = math.tanh %927 : vector<1x32xf32>
    %929 = arith.mulf %923, %928 : vector<1x32xf32>
    %c32_i32 = arith.constant 32 : i32
    %c0_258 = arith.constant 0 : index
    %c0_259 = arith.constant 0 : index
    %930 = vector.load %arg6[%c0_258, %c0_259] : memref<32x8xf32, #tpu.memory_space<vmem>>, vector<32x8xf32>
    %cst_260 = arith.constant dense<0.000000e+00> : vector<1x8xf32>
    %931 = tpu.matmul %929, %930, %cst_260 {dimension_numbers = #tpu.dot_dimension_numbers<[1], [0], [0], [1], [0, 0, 1, 1], [], []>} : vector<1x32xf32>, vector<32x8xf32>, vector<1x8xf32> -> vector<1x8xf32>
    %c0_261 = arith.constant 0 : index
    %c0_262 = arith.constant 0 : index
    %932 = vector.load %arg7[%c0_261, %c0_262] : memref<1x8xf32, #tpu.memory_space<vmem>>, vector<1x8xf32>
    %933 = arith.addf %931, %932 : vector<1x8xf32>
    %934 = arith.negf %933 : vector<1x8xf32>
    %935 = math.exp %934 : vector<1x8xf32>
    %cst_263 = arith.constant 1.000000e+00 : f32
    %936 = vector.broadcast %cst_263 : f32 to vector<1x8xf32>
    %937 = arith.addf %936, %935 : vector<1x8xf32>
    %938 = arith.divf %936, %937 : vector<1x8xf32>
    %c0_264 = arith.constant 0 : index
    %c0_265 = arith.constant 0 : index
    %939 = vector.load %arg8[%c0_264, %c0_265] : memref<1x8xf32, #tpu.memory_space<vmem>>, vector<1x8xf32>
    tpu.vector_store %arg8[%c0_264, %c0_265], %938 {strides = array<i32>} : memref<1x8xf32, #tpu.memory_space<vmem>>, vector<1x8xf32>,
    %c0_266 = arith.constant 0 : index
    %c0_267 = arith.constant 0 : index
    %940 = vector.load %arg9[%c0_266, %c0_267] : memref<1x32xf32, #tpu.memory_space<vmem>>, vector<1x32xf32>
    tpu.vector_store %arg9[%c0_266, %c0_267], %929 {strides = array<i32>} : memref<1x32xf32, #tpu.memory_space<vmem>>, vector<1x32xf32>,
    %c0_268 = arith.constant 0 : index
    %c0_269 = arith.constant 0 : index
    %941 = vector.load %arg10[%c0_268, %c0_269] : memref<1x32xf32, #tpu.memory_space<vmem>>, vector<1x32xf32>
    tpu.vector_store %arg10[%c0_268, %c0_269], %927 {strides = array<i32>} : memref<1x32xf32, #tpu.memory_space<vmem>>, vector<1x32xf32>,
    return
  }
}

</mosaic_0001>

<llo_original>
// kernel: pos_lstm_forward.1
$region0: #{pos_lstm_forward.1}
  #allocation0 [shape = 'u32[]', space=smem, size = 0x4, offset = 0x4, fixed_abs, tag = 'smem constant byte address 0x4 - core index']
  #allocation1 [shape = 'u32[72,128]{1,0:T(1,128)}', space=vmem, size = 0x9000, scoped, tag = 'internal scratch']
  %s0 = inlined_call_operand.hbm [shape: s32[32], index: 0, kind: input, shape index: {}]
  %s1 = inlined_call_operand.hbm [shape: f32[32,1,32], index: 1, kind: input, shape index: {}]
  %s2 = inlined_call_operand.hbm [shape: f32[36,64,128], index: 2, kind: input, shape index: {}]
  %s3 = inlined_call_operand.hbm [shape: f32[36,1,128], index: 3, kind: input, shape index: {}]
  %s4 = inlined_call_operand.hbm [shape: f32[1,32], index: 4, kind: input, shape index: {}]
  %s5 = inlined_call_operand.hbm [shape: f32[1,32], index: 5, kind: input, shape index: {}]
  %s6 = inlined_call_operand.vmem [shape: f32[32,8], index: 6, kind: input, shape index: {}]
  %s7 = inlined_call_operand.hbm [shape: f32[1,8], index: 7, kind: input, shape index: {}]
  %s8 = inlined_call_operand.vmem [shape: f32[1,8], index: 8, kind: output, shape index: {0}]
  %s9 = inlined_call_operand.hbm [shape: f32[1,32], index: 9, kind: output, shape index: {1}]
  %s10 = inlined_call_operand.hbm [shape: f32[1,32], index: 10, kind: output, shape index: {2}]
  %11 = xla_tuple %s8, %s9, %s10
  %s12 = sld [smem:[#allocation0]]
  $region86: #{pos_lstm_forward.1} parent=0
    _
  %s14 = ssub.s32 1, %s12
  %s15 = scalar_select 0, %s14, %s12
  $region1: #{pos_lstm_forward.1} parent=0
    #allocation2 [shape = 'u8[512]{0}', space=smem, size = 0x200, scoped, tag = 'input window, operand 0, single buffered']
    #allocation3 [shape = 's32[1]{0}', space=sflag, size = 0x4, scoped, tag = 'scoped memory for pos_lstm_forward.1']
    #allocation4 [shape = 's32[1]{0}', space=sflag, size = 0x4, scoped, tag = 'scoped memory for pos_lstm_forward.1']
    #allocation5 [shape = 's32[1]{0}', space=sflag, size = 0x4, scoped, tag = 'scoped memory for pos_lstm_forward.1']
    #allocation6 [shape = 'u8[16384]{0}', space=vmem, size = 0x4000, scoped, tag = 'input window, operand 1, single buffered']
    #allocation7 [shape = 'u8[1179648]{0}', space=vmem, size = 0x120000, scoped, tag = 'input window, operand 2, single buffered']
    #allocation8 [shape = 's32[1]{0}', space=sflag, size = 0x4, scoped, tag = 'scoped memory for pos_lstm_forward.1']
    #allocation9 [shape = 'u8[18432]{0}', space=vmem, size = 0x4800, scoped, tag = 'input window, operand 3, single buffered']
    #allocation10 [shape = 'u8[512]{0}', space=vmem, size = 0x400, scoped, tag = 'input window, operand 4, single buffered']
    #allocation11 [shape = 's32[1]{0}', space=sflag, size = 0x4, scoped, tag = 'scoped memory for pos_lstm_forward.1']
    #allocation12 [shape = 'u8[512]{0}', space=vmem, size = 0x400, scoped, tag = 'input window, operand 5, single buffered']
    #allocation13 [shape = 'u8[512]{0}', space=vmem, size = 0x400, scoped, tag = 'input window, operand 7, single buffered']
    #allocation14 [shape = 's32[1]{0}', space=sflag, size = 0x4, scoped, tag = 'scoped memory for pos_lstm_forward.1']
    #allocation15 [shape = 'u8[512]{0}', space=vmem, size = 0x400, scoped, tag = 'output window, operand 1, single buffered']
    #allocation16 [shape = 'u8[512]{0}', space=vmem, size = 0x400, scoped, tag = 'output window, operand 2, single buffered']
    #allocation17 [shape = 's32[1]{0}', space=sflag, size = 0x4, scoped, tag = 'scoped memory for pos_lstm_forward.1']
    %16 = vsyncpa [#allocation5], 0
    %17 = vsyncpa [#allocation3], 0
    %18 = vsyncpa [#allocation8], 0
    %19 = vsyncpa [#allocation11], 0
    %20 = vsyncpa [#allocation14], 0
    %21 = vsyncpa [#allocation4], 0
    %22 = vsyncpa [#allocation17], 0
    // Predicated region
    $region2: #{pos_lstm_forward.1} parent=1 // pred_check
      _
    $region3: #{pos_lstm_forward.1} parent=1 // pred_check_branch
      %24 = sbr.rel (0) target = $region5
    $region4: #{pos_lstm_forward.1} parent=1 // pred_region
      %26 = vsyncadd [#allocation5], 0
      %s28 = sshll.u32 %s0, 4
      %s29 = int_to_ptr.hbm [resolvable:$true] %s28
      %31 = dma.hbm_to_smem %s29, 16, [#allocation2], [#allocation5]
    $region5: #{pos_lstm_forward.1} parent=1 // pred_fallthru
      _
    // Predicated region
    $region6: #{pos_lstm_forward.1} parent=1 // pred_check
      _
    $region7: #{pos_lstm_forward.1} parent=1 // pred_check_branch
      %33 = sbr.rel (0) target = $region9
    $region8: #{pos_lstm_forward.1} parent=1 // pred_region
      %35 = vsyncadd [#allocation3], 0
      %s36 = sshll.u32 %s1, 4
      %s37 = int_to_ptr.hbm [resolvable:$true] %s36
      %s38 = sshll.u32 [#allocation6], 4
      %s39 = int_to_ptr.vmem [resolvable:$true] %s38
      %44 = dma.hbm_to_vmem [thread:$0]  %s37, 512, %s39, [#allocation3], 16, 16, 1
    $region9: #{pos_lstm_forward.1} parent=1 // pred_fallthru
      _
    // Predicated region
    $region10: #{pos_lstm_forward.1} parent=1 // pred_check
      _
    $region11: #{pos_lstm_forward.1} parent=1 // pred_check_branch
      %46 = sbr.rel (0) target = $region13
    $region12: #{pos_lstm_forward.1} parent=1 // pred_region
      %48 = vsyncadd [#allocation8], 0
      %s49 = sshll.u32 %s2, 4
      %s50 = int_to_ptr.hbm [resolvable:$true] %s49
      %s51 = sshll.u32 [#allocation7], 4
      %s52 = int_to_ptr.vmem [resolvable:$true] %s51
      %57 = dma.hbm_to_vmem [thread:$0]  %s50, 36864, %s52, [#allocation8], 128, 128, 8
    $region13: #{pos_lstm_forward.1} parent=1 // pred_fallthru
      _
    // Predicated region
    $region14: #{pos_lstm_forward.1} parent=1 // pred_check
      _
    $region15: #{pos_lstm_forward.1} parent=1 // pred_check_branch
      %59 = sbr.rel (0) target = $region17
    $region16: #{pos_lstm_forward.1} parent=1 // pred_region
      %61 = vsyncadd [#allocation8], 0
      %s62 = sshll.u32 %s3, 4
      %s63 = int_to_ptr.hbm [resolvable:$true] %s62
      %s64 = sshll.u32 [#allocation9], 4
      %s65 = int_to_ptr.vmem [resolvable:$true] %s64
      %70 = dma.hbm_to_vmem [thread:$0]  %s63, 576, %s65, [#allocation8], 16, 16, 1
    $region17: #{pos_lstm_forward.1} parent=1 // pred_fallthru
      _
    // Predicated region
    $region18: #{pos_lstm_forward.1} parent=1 // pred_check
      _
    $region19: #{pos_lstm_forward.1} parent=1 // pred_check_branch
      %72 = sbr.rel (0) target = $region21
    $region20: #{pos_lstm_forward.1} parent=1 // pred_region
      %74 = vsyncadd [#allocation11], 0
      %s76 = sshll.u32 %s4, 4
      %s77 = int_to_ptr.hbm [resolvable:$true] %s76
      %s78 = sshll.u32 [#allocation10], 4
      %s79 = int_to_ptr.vmem [resolvable:$true] %s78
      %81 = dma.hbm_to_vmem [thread:$0]  %s77, 16, %s79, [#allocation11]
    $region21: #{pos_lstm_forward.1} parent=1 // pred_fallthru
      _
    // Predicated region
    $region22: #{pos_lstm_forward.1} parent=1 // pred_check
      _
    $region23: #{pos_lstm_forward.1} parent=1 // pred_check_branch
      %83 = sbr.rel (0) target = $region25
    $region24: #{pos_lstm_forward.1} parent=1 // pred_region
      %85 = vsyncadd [#allocation11], 0
      %s87 = sshll.u32 %s5, 4
      %s88 = int_to_ptr.hbm [resolvable:$true] %s87
      %s89 = sshll.u32 [#allocation12], 4
      %s90 = int_to_ptr.vmem [resolvable:$true] %s89
      %92 = dma.hbm_to_vmem [thread:$0]  %s88, 16, %s90, [#allocation11]
    $region25: #{pos_lstm_forward.1} parent=1 // pred_fallthru
      _
    // Predicated region
    $region26: #{pos_lstm_forward.1} parent=1 // pred_check
      _
    $region27: #{pos_lstm_forward.1} parent=1 // pred_check_branch
      %94 = sbr.rel (0) target = $region29
    $region28: #{pos_lstm_forward.1} parent=1 // pred_region
      _
    $region29: #{pos_lstm_forward.1} parent=1 // pred_fallthru
      _
    // Predicated region
    $region30: #{pos_lstm_forward.1} parent=1 // pred_check
      _
    $region31: #{pos_lstm_forward.1} parent=1 // pred_check_branch
      %96 = sbr.rel (0) target = $region33
    $region32: #{pos_lstm_forward.1} parent=1 // pred_region
      %98 = vsyncadd [#allocation14], 0
      %s100 = sshll.u32 %s7, 4
      %s101 = int_to_ptr.hbm [resolvable:$true] %s100
      %s102 = sshll.u32 [#allocation13], 4
      %s103 = int_to_ptr.vmem [resolvable:$true] %s102
      %105 = dma.hbm_to_vmem [thread:$0]  %s101, 16, %s103, [#allocation14]
    $region33: #{pos_lstm_forward.1} parent=1 // pred_fallthru
      _
    // Predicated region
    $region34: #{pos_lstm_forward.1} parent=1 // pred_check
      _
    $region35: #{pos_lstm_forward.1} parent=1 // pred_check_branch
      %107 = sbr.rel (0) target = $region37
    $region36: #{pos_lstm_forward.1} parent=1 // pred_region
      %109 = dma.done [#allocation5], 16
    $region37: #{pos_lstm_forward.1} parent=1 // pred_fallthru
      _
    // Predicated region
    $region38: #{pos_lstm_forward.1} parent=1 // pred_check
      _
    $region39: #{pos_lstm_forward.1} parent=1 // pred_check_branch
      %111 = sbr.rel (0) target = $region41
    $region40: #{pos_lstm_forward.1} parent=1 // pred_region
      %113 = dma.done [#allocation3], 512
    $region41: #{pos_lstm_forward.1} parent=1 // pred_fallthru
      _
    // Predicated region
    $region42: #{pos_lstm_forward.1} parent=1 // pred_check
      _
    $region43: #{pos_lstm_forward.1} parent=1 // pred_check_branch
      %115 = sbr.rel (0) target = $region45
    $region44: #{pos_lstm_forward.1} parent=1 // pred_region
      %117 = dma.done [#allocation8], 36864
    $region45: #{pos_lstm_forward.1} parent=1 // pred_fallthru
      _
    // Predicated region
    $region46: #{pos_lstm_forward.1} parent=1 // pred_check
      _
    $region47: #{pos_lstm_forward.1} parent=1 // pred_check_branch
      %119 = sbr.rel (0) target = $region49
    $region48: #{pos_lstm_forward.1} parent=1 // pred_region
      %121 = dma.done [#allocation8], 576
    $region49: #{pos_lstm_forward.1} parent=1 // pred_fallthru
      _
    // Predicated region
    $region50: #{pos_lstm_forward.1} parent=1 // pred_check
      _
    $region51: #{pos_lstm_forward.1} parent=1 // pred_check_branch
      %123 = sbr.rel (0) target = $region53
    $region52: #{pos_lstm_forward.1} parent=1 // pred_region
      %125 = dma.done [#allocation11], 16
    $region53: #{pos_lstm_forward.1} parent=1 // pred_fallthru
      _
    // Predicated region
    $region54: #{pos_lstm_forward.1} parent=1 // pred_check
      _
    $region55: #{pos_lstm_forward.1} parent=1 // pred_check_branch
      %127 = sbr.rel (0) target = $region57
    $region56: #{pos_lstm_forward.1} parent=1 // pred_region
      %129 = dma.done [#allocation11], 16
    $region57: #{pos_lstm_forward.1} parent=1 // pred_fallthru
      _
    // Predicated region
    $region58: #{pos_lstm_forward.1} parent=1 // pred_check
      _
    $region59: #{pos_lstm_forward.1} parent=1 // pred_check_branch
      %131 = sbr.rel (0) target = $region61
    $region60: #{pos_lstm_forward.1} parent=1 // pred_region
      %133 = dma.done [#allocation14], 16
    $region61: #{pos_lstm_forward.1} parent=1 // pred_fallthru
      _
    %134 = sfence
    %v135 = vld [vmem:[#allocation10] sm:$0x1]
    %v136 = vld [vmem:[#allocation12] sm:$0x1]
    %s137 = sld [smem:[#allocation2]]
    %v138 = vld [vmem:[#allocation6] sm:$0x1]
    %v140 = vperm.slane %v135, 0
    %141 = vrot.lane.b32.xlu0 %v140, 32
    %v142 = vpop.permute.xlu0 %141
    %vm144 = vcmask 261120
    %v145 = vsel %vm144, %v138, %v142
    %s146 = smul.u32 %s137, 64
    %s147 = scalar_lea.vmem [#allocation7], %s146
    %v148 = vld [vmem:[%s147] sm:$0xff]
    %v149 = vld [vmem:[%s147 + $0x8] sm:$0xff]
    %v150 = vld [vmem:[%s147 + $0x10] sm:$0xff]
    %v151 = vld [vmem:[%s147 + $0x18] sm:$0xff]
    %v152 = vld [vmem:[%s147 + $0x20] sm:$0xff]
    %v153 = vld [vmem:[%s147 + $0x28] sm:$0xff]
    %v154 = vld [vmem:[%s147 + $0x30] sm:$0xff]
    %v155 = vld [vmem:[%s147 + $0x38] sm:$0xff]
    %s156 = scalar_lea.vmem [#allocation9], %s137
    %v157 = vld [vmem:[%s156] sm:$0x1]
    %vm158 = vcmask 523264
    %v160 = vsel %vm158, %v145, 0
    %162 = vmatpush.msra.mxu0 0.0
    %163 = vmatpush.msra.mxu0 0.0
    %164 = vmatpush.msra.mxu0 0.0
    %165 = vmatpush.msra.mxu0 0.0
    %166 = vmatpush.msra.mxu0 0.0
    %167 = vmatpush.msra.mxu0 0.0
    %168 = vmatpush.msra.mxu0 0.0
    %169 = vmatpush.msra.mxu0 0.0
    %170 = vmatpush.msra.mxu0 %v155
    %171 = vmatpush.msra.mxu0 %v154
    %172 = vmatpush.msra.mxu0 %v153
    %173 = vmatpush.msra.mxu0 %v152
    %174 = vmatpush.msra.mxu0 %v151
    %175 = vmatpush.msra.mxu0 %v150
    %176 = vmatpush.msra.mxu0 %v149
    %177 = vmatpush.msra.mxu0 %v148
    %178 = vmatmul.f32.gmra.mxu0 %v160
    %v179 = vpop.f32.mrf.mxu0
    %v180 = vadd.f32 %v157, %v179
    %181 = vdwg.mxu0
    %v182 = vxor.u32 %v180, 2147483648
    %v183 = vmul.f32 %v182, 1.442695
    %v184 = vpow.pop %v183
    %v185 = vadd.f32 %v184, 1.0
    %v186 = vrcp.pop %v185
    %v187 = vmul.f32 %v185, %v186
    %v188 = vsub.f32 1.0, %v187
    %v189 = vmul.f32 %v186, %v188
    %v190 = vadd.f32 %v186, %v189
    %vm191 = vweird.f32 %v185
    %vm192 = vweird.f32 %v186
    %vm193 = vmor %vm191, %vm192
    %v194 = vsel %vm193, %v186, %v190
    %v195 = vand.u32 2147483647, %v185
    %vm196 = vcmp.eq.f32.partialorder %v195, 8.507059e+37
    %v197 = vand.u32 %v185, 2147483648
    %v198 = vor.u32 1.1754944e-38, %v197
    %v199 = vsel %vm196, %v198, %v194
    %v200 = vmul.f32 1.0, %v199
    %v201 = vtanh.pop %v180
    %v203 = vperm.slane %v136, 0
    %204 = vrot.lane.b32.xlu0 %v203, 32
    %v205 = vpop.permute.xlu0 %204
    %v207 = vmul.f32 %v200, %v205
    %209 = vrot.lane.b32.xlu0 %v201, 64
    %v210 = vpop.permute.xlu0 %209
    %v212 = vmul.f32 %v200, %v210
    %214 = vrot.lane.b32.xlu0 %v212, 32
    %v215 = vpop.permute.xlu0 %214
    %v217 = vadd.f32 %v207, %v215
    %v218 = vtanh.pop %v217
    %220 = vrot.lane.b32.xlu0 %v218, 64
    %v221 = vpop.permute.xlu0 %220
    %v223 = vmul.f32 %v200, %v221
    %s224 = sld [smem:[#allocation2 + $0x1]]
    %s225 = scalar_lea.vmem [#allocation6], 1
    %v226 = vld [vmem:[%s225] sm:$0x1]
    %228 = vrot.lane.b32.xlu0 %v223, 64
    %v229 = vpop.permute.xlu0 %228
    %v231 = vsel %vm144, %v226, %v229
    %s232 = smul.u32 %s224, 64
    %s233 = scalar_lea.vmem [#allocation7], %s232
    %v234 = vld [vmem:[%s233] sm:$0xff]
    %v235 = vld [vmem:[%s233 + $0x8] sm:$0xff]
    %v236 = vld [vmem:[%s233 + $0x10] sm:$0xff]
    %v237 = vld [vmem:[%s233 + $0x18] sm:$0xff]
    %v238 = vld [vmem:[%s233 + $0x20] sm:$0xff]
    %v239 = vld [vmem:[%s233 + $0x28] sm:$0xff]
    %v240 = vld [vmem:[%s233 + $0x30] sm:$0xff]
    %v241 = vld [vmem:[%s233 + $0x38] sm:$0xff]
    %s242 = scalar_lea.vmem [#allocation9], %s224
    %v243 = vld [vmem:[%s242] sm:$0x1]
    %v245 = vsel %vm158, %v231, 0
    %247 = vmatpush.msra.mxu0 0.0
    %248 = vmatpush.msra.mxu0 0.0
    %249 = vmatpush.msra.mxu0 0.0
    %250 = vmatpush.msra.mxu0 0.0
    %251 = vmatpush.msra.mxu0 0.0
    %252 = vmatpush.msra.mxu0 0.0
    %253 = vmatpush.msra.mxu0 0.0
    %254 = vmatpush.msra.mxu0 0.0
    %255 = vmatpush.msra.mxu0 %v241
    %256 = vmatpush.msra.mxu0 %v240
    %257 = vmatpush.msra.mxu0 %v239
    %258 = vmatpush.msra.mxu0 %v238
    %259 = vmatpush.msra.mxu0 %v237
    %260 = vmatpush.msra.mxu0 %v236
    %261 = vmatpush.msra.mxu0 %v235
    %262 = vmatpush.msra.mxu0 %v234
    %263 = vmatmul.f32.gmra.mxu0 %v245
    %v264 = vpop.f32.mrf.mxu0
    %v265 = vadd.f32 %v243, %v264
    %266 = vdwg.mxu0
    %v267 = vxor.u32 %v265, 2147483648
    %v268 = vmul.f32 %v267, 1.442695
    %v269 = vpow.pop %v268
    %v270 = vadd.f32 %v269, 1.0
    %v271 = vrcp.pop %v270
    %v272 = vmul.f32 %v270, %v271
    %v273 = vsub.f32 1.0, %v272
    %v274 = vmul.f32 %v271, %v273
    %v275 = vadd.f32 %v271, %v274
    %vm276 = vweird.f32 %v270
    %vm277 = vweird.f32 %v271
    %vm278 = vmor %vm276, %vm277
    %v279 = vsel %vm278, %v271, %v275
    %v280 = vand.u32 2147483647, %v270
    %vm281 = vcmp.eq.f32.partialorder %v280, 8.507059e+37
    %v282 = vand.u32 %v270, 2147483648
    %v283 = vor.u32 1.1754944e-38, %v282
    %v284 = vsel %vm281, %v283, %v279
    %v285 = vmul.f32 1.0, %v284
    %v286 = vtanh.pop %v265
    %v287 = vmul.f32 %v285, %v217
    %289 = vrot.lane.b32.xlu0 %v286, 64
    %v290 = vpop.permute.xlu0 %289
    %v292 = vmul.f32 %v285, %v290
    %294 = vrot.lane.b32.xlu0 %v292, 32
    %v295 = vpop.permute.xlu0 %294
    %v297 = vadd.f32 %v287, %v295
    %v298 = vtanh.pop %v297
    %300 = vrot.lane.b32.xlu0 %v298, 64
    %v301 = vpop.permute.xlu0 %300
    %v303 = vmul.f32 %v285, %v301
    %s304 = sld [smem:[#allocation2 + $0x2]]
    %s305 = scalar_lea.vmem [#allocation6], 2
    %v306 = vld [vmem:[%s305] sm:$0x1]
    %308 = vrot.lane.b32.xlu0 %v303, 64
    %v309 = vpop.permute.xlu0 %308
    %v311 = vsel %vm144, %v306, %v309
    %s312 = smul.u32 %s304, 64
    %s313 = scalar_lea.vmem [#allocation7], %s312
    %v314 = vld [vmem:[%s313] sm:$0xff]
    %v315 = vld [vmem:[%s313 + $0x8] sm:$0xff]
    %v316 = vld [vmem:[%s313 + $0x10] sm:$0xff]
    %v317 = vld [vmem:[%s313 + $0x18] sm:$0xff]
    %v318 = vld [vmem:[%s313 + $0x20] sm:$0xff]
    %v319 = vld [vmem:[%s313 + $0x28] sm:$0xff]
    %v320 = vld [vmem:[%s313 + $0x30] sm:$0xff]
    %v321 = vld [vmem:[%s313 + $0x38] sm:$0xff]
    %s322 = scalar_lea.vmem [#allocation9], %s304
    %v323 = vld [vmem:[%s322] sm:$0x1]
    %v325 = vsel %vm158, %v311, 0
    %327 = vmatpush.msra.mxu0 0.0
    %328 = vmatpush.msra.mxu0 0.0
    %329 = vmatpush.msra.mxu0 0.0
    %330 = vmatpush.msra.mxu0 0.0
    %331 = vmatpush.msra.mxu0 0.0
    %332 = vmatpush.msra.mxu0 0.0
    %333 = vmatpush.msra.mxu0 0.0
    %334 = vmatpush.msra.mxu0 0.0
    %335 = vmatpush.msra.mxu0 %v321
    %336 = vmatpush.msra.mxu0 %v320
    %337 = vmatpush.msra.mxu0 %v319
    %338 = vmatpush.msra.mxu0 %v318
    %339 = vmatpush.msra.mxu0 %v317
    %340 = vmatpush.msra.mxu0 %v316
    %341 = vmatpush.msra.mxu0 %v315
    %342 = vmatpush.msra.mxu0 %v314
    %343 = vmatmul.f32.gmra.mxu0 %v325
    %v344 = vpop.f32.mrf.mxu0
    %v345 = vadd.f32 %v323, %v344
    %346 = vdwg.mxu0
    %v347 = vxor.u32 %v345, 2147483648
    %v348 = vmul.f32 %v347, 1.442695
    %v349 = vpow.pop %v348
    %v350 = vadd.f32 %v349, 1.0
    %v351 = vrcp.pop %v350
    %v352 = vmul.f32 %v350, %v351
    %v353 = vsub.f32 1.0, %v352
    %v354 = vmul.f32 %v351, %v353
    %v355 = vadd.f32 %v351, %v354
    %vm356 = vweird.f32 %v350
    %vm357 = vweird.f32 %v351
    %vm358 = vmor %vm356, %vm357
    %v359 = vsel %vm358, %v351, %v355
    %v360 = vand.u32 2147483647, %v350
    %vm361 = vcmp.eq.f32.partialorder %v360, 8.507059e+37
    %v362 = vand.u32 %v350, 2147483648
    %v363 = vor.u32 1.1754944e-38, %v362
    %v364 = vsel %vm361, %v363, %v359
    %v365 = vmul.f32 1.0, %v364
    %v366 = vtanh.pop %v345
    %v367 = vmul.f32 %v365, %v297
    %369 = vrot.lane.b32.xlu0 %v366, 64
    %v370 = vpop.permute.xlu0 %369
    %v372 = vmul.f32 %v365, %v370
    %374 = vrot.lane.b32.xlu0 %v372, 32
    %v375 = vpop.permute.xlu0 %374
    %v377 = vadd.f32 %v367, %v375
    %v378 = vtanh.pop %v377
    %380 = vrot.lane.b32.xlu0 %v378, 64
    %v381 = vpop.permute.xlu0 %380
    %v383 = vmul.f32 %v365, %v381
    %s384 = sld [smem:[#allocation2 + $0x3]]
    %s385 = scalar_lea.vmem [#allocation6], 3
    %v386 = vld [vmem:[%s385] sm:$0x1]
    %388 = vrot.lane.b32.xlu0 %v383, 64
    %v389 = vpop.permute.xlu0 %388
    %v391 = vsel %vm144, %v386, %v389
    %s392 = smul.u32 %s384, 64
    %s393 = scalar_lea.vmem [#allocation7], %s392
    %v394 = vld [vmem:[%s393] sm:$0xff]
    %v395 = vld [vmem:[%s393 + $0x8] sm:$0xff]
    %v396 = vld [vmem:[%s393 + $0x10] sm:$0xff]
    %v397 = vld [vmem:[%s393 + $0x18] sm:$0xff]
    %v398 = vld [vmem:[%s393 + $0x20] sm:$0xff]
    %v399 = vld [vmem:[%s393 + $0x28] sm:$0xff]
    %v400 = vld [vmem:[%s393 + $0x30] sm:$0xff]
    %v401 = vld [vmem:[%s393 + $0x38] sm:$0xff]
    %s402 = scalar_lea.vmem [#allocation9], %s384
    %v403 = vld [vmem:[%s402] sm:$0x1]
    %v405 = vsel %vm158, %v391, 0
    %407 = vmatpush.msra.mxu0 0.0
    %408 = vmatpush.msra.mxu0 0.0
    %409 = vmatpush.msra.mxu0 0.0
    %410 = vmatpush.msra.mxu0 0.0
    %411 = vmatpush.msra.mxu0 0.0
    %412 = vmatpush.msra.mxu0 0.0
    %413 = vmatpush.msra.mxu0 0.0
    %414 = vmatpush.msra.mxu0 0.0
    %415 = vmatpush.msra.mxu0 %v401
    %416 = vmatpush.msra.mxu0 %v400
    %417 = vmatpush.msra.mxu0 %v399
    %418 = vmatpush.msra.mxu0 %v398
    %419 = vmatpush.msra.mxu0 %v397
    %420 = vmatpush.msra.mxu0 %v396
    %421 = vmatpush.msra.mxu0 %v395
    %422 = vmatpush.msra.mxu0 %v394
    %423 = vmatmul.f32.gmra.mxu0 %v405
    %v424 = vpop.f32.mrf.mxu0
    %v425 = vadd.f32 %v403, %v424
    %426 = vdwg.mxu0
    %v427 = vxor.u32 %v425, 2147483648
    %v428 = vmul.f32 %v427, 1.442695
    %v429 = vpow.pop %v428
    %v430 = vadd.f32 %v429, 1.0
    %v431 = vrcp.pop %v430
    %v432 = vmul.f32 %v430, %v431
    %v433 = vsub.f32 1.0, %v432
    %v434 = vmul.f32 %v431, %v433
    %v435 = vadd.f32 %v431, %v434
    %vm436 = vweird.f32 %v430
    %vm437 = vweird.f32 %v431
    %vm438 = vmor %vm436, %vm437
    %v439 = vsel %vm438, %v431, %v435
    %v440 = vand.u32 2147483647, %v430
    %vm441 = vcmp.eq.f32.partialorder %v440, 8.507059e+37
    %v442 = vand.u32 %v430, 2147483648
    %v443 = vor.u32 1.1754944e-38, %v442
    %v444 = vsel %vm441, %v443, %v439
    %v445 = vmul.f32 1.0, %v444
    %v446 = vtanh.pop %v425
    %v447 = vmul.f32 %v445, %v377
    %449 = vrot.lane.b32.xlu0 %v446, 64
    %v450 = vpop.permute.xlu0 %449
    %v452 = vmul.f32 %v445, %v450
    %454 = vrot.lane.b32.xlu0 %v452, 32
    %v455 = vpop.permute.xlu0 %454
    %v457 = vadd.f32 %v447, %v455
    %v458 = vtanh.pop %v457
    %460 = vrot.lane.b32.xlu0 %v458, 64
    %v461 = vpop.permute.xlu0 %460
    %v463 = vmul.f32 %v445, %v461
    %s464 = sld [smem:[#allocation2 + $0x4]]
    %s465 = scalar_lea.vmem [#allocation6], 4
    %v466 = vld [vmem:[%s465] sm:$0x1]
    %468 = vrot.lane.b32.xlu0 %v463, 64
    %v469 = vpop.permute.xlu0 %468
    %v471 = vsel %vm144, %v466, %v469
    %s472 = smul.u32 %s464, 64
    %s473 = scalar_lea.vmem [#allocation7], %s472
    %v474 = vld [vmem:[%s473] sm:$0xff]
    %v475 = vld [vmem:[%s473 + $0x8] sm:$0xff]
    %v476 = vld [vmem:[%s473 + $0x10] sm:$0xff]
    %v477 = vld [vmem:[%s473 + $0x18] sm:$0xff]
    %v478 = vld [vmem:[%s473 + $0x20] sm:$0xff]
    %v479 = vld [vmem:[%s473 + $0x28] sm:$0xff]
    %v480 = vld [vmem:[%s473 + $0x30] sm:$0xff]
    %v481 = vld [vmem:[%s473 + $0x38] sm:$0xff]
    %s482 = scalar_lea.vmem [#allocation9], %s464
    %v483 = vld [vmem:[%s482] sm:$0x1]
    %v485 = vsel %vm158, %v471, 0
    %487 = vmatpush.msra.mxu0 0.0
    %488 = vmatpush.msra.mxu0 0.0
    %489 = vmatpush.msra.mxu0 0.0
    %490 = vmatpush.msra.mxu0 0.0
    %491 = vmatpush.msra.mxu0 0.0
    %492 = vmatpush.msra.mxu0 0.0
    %493 = vmatpush.msra.mxu0 0.0
    %494 = vmatpush.msra.mxu0 0.0
    %495 = vmatpush.msra.mxu0 %v481
    %496 = vmatpush.msra.mxu0 %v480
    %497 = vmatpush.msra.mxu0 %v479
    %498 = vmatpush.msra.mxu0 %v478
    %499 = vmatpush.msra.mxu0 %v477
    %500 = vmatpush.msra.mxu0 %v476
    %501 = vmatpush.msra.mxu0 %v475
    %502 = vmatpush.msra.mxu0 %v474
    %503 = vmatmul.f32.gmra.mxu0 %v485
    %v504 = vpop.f32.mrf.mxu0
    %v505 = vadd.f32 %v483, %v504
    %506 = vdwg.mxu0
    %v507 = vxor.u32 %v505, 2147483648
    %v508 = vmul.f32 %v507, 1.442695
    %v509 = vpow.pop %v508
    %v510 = vadd.f32 %v509, 1.0
    %v511 = vrcp.pop %v510
    %v512 = vmul.f32 %v510, %v511
    %v513 = vsub.f32 1.0, %v512
    %v514 = vmul.f32 %v511, %v513
    %v515 = vadd.f32 %v511, %v514
    %vm516 = vweird.f32 %v510
    %vm517 = vweird.f32 %v511
    %vm518 = vmor %vm516, %vm517
    %v519 = vsel %vm518, %v511, %v515
    %v520 = vand.u32 2147483647, %v510
    %vm521 = vcmp.eq.f32.partialorder %v520, 8.507059e+37
    %v522 = vand.u32 %v510, 2147483648
    %v523 = vor.u32 1.1754944e-38, %v522
    %v524 = vsel %vm521, %v523, %v519
    %v525 = vmul.f32 1.0, %v524
    %v526 = vtanh.pop %v505
    %v527 = vmul.f32 %v525, %v457
    %529 = vrot.lane.b32.xlu0 %v526, 64
    %v530 = vpop.permute.xlu0 %529
    %v532 = vmul.f32 %v525, %v530
    %534 = vrot.lane.b32.xlu0 %v532, 32
    %v535 = vpop.permute.xlu0 %534
    %v537 = vadd.f32 %v527, %v535
    %v538 = vtanh.pop %v537
    %540 = vrot.lane.b32.xlu0 %v538, 64
    %v541 = vpop.permute.xlu0 %540
    %v543 = vmul.f32 %v525, %v541
    %s544 = sld [smem:[#allocation2 + $0x5]]
    %s545 = scalar_lea.vmem [#allocation6], 5
    %v546 = vld [vmem:[%s545] sm:$0x1]
    %548 = vrot.lane.b32.xlu0 %v543, 64
    %v549 = vpop.permute.xlu0 %548
    %v551 = vsel %vm144, %v546, %v549
    %s552 = smul.u32 %s544, 64
    %s553 = scalar_lea.vmem [#allocation7], %s552
    %v554 = vld [vmem:[%s553] sm:$0xff]
    %v555 = vld [vmem:[%s553 + $0x8] sm:$0xff]
    %v556 = vld [vmem:[%s553 + $0x10] sm:$0xff]
    %v557 = vld [vmem:[%s553 + $0x18] sm:$0xff]
    %v558 = vld [vmem:[%s553 + $0x20] sm:$0xff]
    %v559 = vld [vmem:[%s553 + $0x28] sm:$0xff]
    %v560 = vld [vmem:[%s553 + $0x30] sm:$0xff]
    %v561 = vld [vmem:[%s553 + $0x38] sm:$0xff]
    %s562 = scalar_lea.vmem [#allocation9], %s544
    %v563 = vld [vmem:[%s562] sm:$0x1]
    %v565 = vsel %vm158, %v551, 0
    %567 = vmatpush.msra.mxu0 0.0
    %568 = vmatpush.msra.mxu0 0.0
    %569 = vmatpush.msra.mxu0 0.0
    %570 = vmatpush.msra.mxu0 0.0
    %571 = vmatpush.msra.mxu0 0.0
    %572 = vmatpush.msra.mxu0 0.0
    %573 = vmatpush.msra.mxu0 0.0
    %574 = vmatpush.msra.mxu0 0.0
    %575 = vmatpush.msra.mxu0 %v561
    %576 = vmatpush.msra.mxu0 %v560
    %577 = vmatpush.msra.mxu0 %v559
    %578 = vmatpush.msra.mxu0 %v558
    %579 = vmatpush.msra.mxu0 %v557
    %580 = vmatpush.msra.mxu0 %v556
    %581 = vmatpush.msra.mxu0 %v555
    %582 = vmatpush.msra.mxu0 %v554
    %583 = vmatmul.f32.gmra.mxu0 %v565
    %v584 = vpop.f32.mrf.mxu0
    %v585 = vadd.f32 %v563, %v584
    %586 = vdwg.mxu0
    %v587 = vxor.u32 %v585, 2147483648
    %v588 = vmul.f32 %v587, 1.442695
    %v589 = vpow.pop %v588
    %v590 = vadd.f32 %v589, 1.0
    %v591 = vrcp.pop %v590
    %v592 = vmul.f32 %v590, %v591
    %v593 = vsub.f32 1.0, %v592
    %v594 = vmul.f32 %v591, %v593
    %v595 = vadd.f32 %v591, %v594
    %vm596 = vweird.f32 %v590
    %vm597 = vweird.f32 %v591
    %vm598 = vmor %vm596, %vm597
    %v599 = vsel %vm598, %v591, %v595
    %v600 = vand.u32 2147483647, %v590
    %vm601 = vcmp.eq.f32.partialorder %v600, 8.507059e+37
    %v602 = vand.u32 %v590, 2147483648
    %v603 = vor.u32 1.1754944e-38, %v602
    %v604 = vsel %vm601, %v603, %v599
    %v605 = vmul.f32 1.0, %v604
    %v606 = vtanh.pop %v585
    %v607 = vmul.f32 %v605, %v537
    %609 = vrot.lane.b32.xlu0 %v606, 64
    %v610 = vpop.permute.xlu0 %609
    %v612 = vmul.f32 %v605, %v610
    %614 = vrot.lane.b32.xlu0 %v612, 32
    %v615 = vpop.permute.xlu0 %614
    %v617 = vadd.f32 %v607, %v615
    %v618 = vtanh.pop %v617
    %620 = vrot.lane.b32.xlu0 %v618, 64
    %v621 = vpop.permute.xlu0 %620
    %v623 = vmul.f32 %v605, %v621
    %s624 = sld [smem:[#allocation2 + $0x6]]
    %s625 = scalar_lea.vmem [#allocation6], 6
    %v626 = vld [vmem:[%s625] sm:$0x1]
    %628 = vrot.lane.b32.xlu0 %v623, 64
    %v629 = vpop.permute.xlu0 %628
    %v631 = vsel %vm144, %v626, %v629
    %s632 = smul.u32 %s624, 64
    %s633 = scalar_lea.vmem [#allocation7], %s632
    %v634 = vld [vmem:[%s633] sm:$0xff]
    %v635 = vld [vmem:[%s633 + $0x8] sm:$0xff]
    %v636 = vld [vmem:[%s633 + $0x10] sm:$0xff]
    %v637 = vld [vmem:[%s633 + $0x18] sm:$0xff]
    %v638 = vld [vmem:[%s633 + $0x20] sm:$0xff]
    %v639 = vld [vmem:[%s633 + $0x28] sm:$0xff]
    %v640 = vld [vmem:[%s633 + $0x30] sm:$0xff]
    %v641 = vld [vmem:[%s633 + $0x38] sm:$0xff]
    %s642 = scalar_lea.vmem [#allocation9], %s624
    %v643 = vld [vmem:[%s642] sm:$0x1]
    %v645 = vsel %vm158, %v631, 0
    %647 = vmatpush.msra.mxu0 0.0
    %648 = vmatpush.msra.mxu0 0.0
    %649 = vmatpush.msra.mxu0 0.0
    %650 = vmatpush.msra.mxu0 0.0
    %651 = vmatpush.msra.mxu0 0.0
    %652 = vmatpush.msra.mxu0 0.0
    %653 = vmatpush.msra.mxu0 0.0
    %654 = vmatpush.msra.mxu0 0.0
    %655 = vmatpush.msra.mxu0 %v641
    %656 = vmatpush.msra.mxu0 %v640
    %657 = vmatpush.msra.mxu0 %v639
    %658 = vmatpush.msra.mxu0 %v638
    %659 = vmatpush.msra.mxu0 %v637
    %660 = vmatpush.msra.mxu0 %v636
    %661 = vmatpush.msra.mxu0 %v635
    %662 = vmatpush.msra.mxu0 %v634
    %663 = vmatmul.f32.gmra.mxu0 %v645
    %v664 = vpop.f32.mrf.mxu0
    %v665 = vadd.f32 %v643, %v664
    %666 = vdwg.mxu0
    %v667 = vxor.u32 %v665, 2147483648
    %v668 = vmul.f32 %v667, 1.442695
    %v669 = vpow.pop %v668
    %v670 = vadd.f32 %v669, 1.0
    %v671 = vrcp.pop %v670
    %v672 = vmul.f32 %v670, %v671
    %v673 = vsub.f32 1.0, %v672
    %v674 = vmul.f32 %v671, %v673
    %v675 = vadd.f32 %v671, %v674
    %vm676 = vweird.f32 %v670
    %vm677 = vweird.f32 %v671
    %vm678 = vmor %vm676, %vm677
    %v679 = vsel %vm678, %v671, %v675
    %v680 = vand.u32 2147483647, %v670
    %vm681 = vcmp.eq.f32.partialorder %v680, 8.507059e+37
    %v682 = vand.u32 %v670, 2147483648
    %v683 = vor.u32 1.1754944e-38, %v682
    %v684 = vsel %vm681, %v683, %v679
    %v685 = vmul.f32 1.0, %v684
    %v686 = vtanh.pop %v665
    %v687 = vmul.f32 %v685, %v617
    %689 = vrot.lane.b32.xlu0 %v686, 64
    %v690 = vpop.permute.xlu0 %689
    %v692 = vmul.f32 %v685, %v690
    %694 = vrot.lane.b32.xlu0 %v692, 32
    %v695 = vpop.permute.xlu0 %694
    %v697 = vadd.f32 %v687, %v695
    %v698 = vtanh.pop %v697
    %700 = vrot.lane.b32.xlu0 %v698, 64
    %v701 = vpop.permute.xlu0 %700
    %v703 = vmul.f32 %v685, %v701
    %s704 = sld [smem:[#allocation2 + $0x7]]
    %s705 = scalar_lea.vmem [#allocation6], 7
    %v706 = vld [vmem:[%s705] sm:$0x1]
    %708 = vrot.lane.b32.xlu0 %v703, 64
    %v709 = vpop.permute.xlu0 %708
    %v711 = vsel %vm144, %v706, %v709
    %s712 = smul.u32 %s704, 64
    %s713 = scalar_lea.vmem [#allocation7], %s712
    %v714 = vld [vmem:[%s713] sm:$0xff]
    %v715 = vld [vmem:[%s713 + $0x8] sm:$0xff]
    %v716 = vld [vmem:[%s713 + $0x10] sm:$0xff]
    %v717 = vld [vmem:[%s713 + $0x18] sm:$0xff]
    %v718 = vld [vmem:[%s713 + $0x20] sm:$0xff]
    %v719 = vld [vmem:[%s713 + $0x28] sm:$0xff]
    %v720 = vld [vmem:[%s713 + $0x30] sm:$0xff]
    %v721 = vld [vmem:[%s713 + $0x38] sm:$0xff]
    %s722 = scalar_lea.vmem [#allocation9], %s704
    %v723 = vld [vmem:[%s722] sm:$0x1]
    %v725 = vsel %vm158, %v711, 0
    %727 = vmatpush.msra.mxu0 0.0
    %728 = vmatpush.msra.mxu0 0.0
    %729 = vmatpush.msra.mxu0 0.0
    %730 = vmatpush.msra.mxu0 0.0
    %731 = vmatpush.msra.mxu0 0.0
    %732 = vmatpush.msra.mxu0 0.0
    %733 = vmatpush.msra.mxu0 0.0
    %734 = vmatpush.msra.mxu0 0.0
    %735 = vmatpush.msra.mxu0 %v721
    %736 = vmatpush.msra.mxu0 %v720
    %737 = vmatpush.msra.mxu0 %v719
    %738 = vmatpush.msra.mxu0 %v718
    %739 = vmatpush.msra.mxu0 %v717
    %740 = vmatpush.msra.mxu0 %v716
    %741 = vmatpush.msra.mxu0 %v715
    %742 = vmatpush.msra.mxu0 %v714
    %743 = vmatmul.f32.gmra.mxu0 %v725
    %v744 = vpop.f32.mrf.mxu0
    %v745 = vadd.f32 %v723, %v744
    %746 = vdwg.mxu0
    %v747 = vxor.u32 %v745, 2147483648
    %v748 = vmul.f32 %v747, 1.442695
    %v749 = vpow.pop %v748
    %v750 = vadd.f32 %v749, 1.0
    %v751 = vrcp.pop %v750
    %v752 = vmul.f32 %v750, %v751
    %v753 = vsub.f32 1.0, %v752
    %v754 = vmul.f32 %v751, %v753
    %v755 = vadd.f32 %v751, %v754
    %vm756 = vweird.f32 %v750
    %vm757 = vweird.f32 %v751
    %vm758 = vmor %vm756, %vm757
    %v759 = vsel %vm758, %v751, %v755
    %v760 = vand.u32 2147483647, %v750
    %vm761 = vcmp.eq.f32.partialorder %v760, 8.507059e+37
    %v762 = vand.u32 %v750, 2147483648
    %v763 = vor.u32 1.1754944e-38, %v762
    %v764 = vsel %vm761, %v763, %v759
    %v765 = vmul.f32 1.0, %v764
    %v766 = vtanh.pop %v745
    %v767 = vmul.f32 %v765, %v697
    %769 = vrot.lane.b32.xlu0 %v766, 64
    %v770 = vpop.permute.xlu0 %769
    %v772 = vmul.f32 %v765, %v770
    %774 = vrot.lane.b32.xlu0 %v772, 32
    %v775 = vpop.permute.xlu0 %774
    %v777 = vadd.f32 %v767, %v775
    %v778 = vtanh.pop %v777
    %780 = vrot.lane.b32.xlu0 %v778, 64
    %v781 = vpop.permute.xlu0 %780
    %v783 = vmul.f32 %v765, %v781
    %s784 = sld [smem:[#allocation2 + $0x8]]
    %s785 = scalar_lea.vmem [#allocation6], 8
    %v786 = vld [vmem:[%s785] sm:$0x1]
    %788 = vrot.lane.b32.xlu0 %v783, 64
    %v789 = vpop.permute.xlu0 %788
    %v791 = vsel %vm144, %v786, %v789
    %s792 = smul.u32 %s784, 64
    %s793 = scalar_lea.vmem [#allocation7], %s792
    %v794 = vld [vmem:[%s793] sm:$0xff]
    %v795 = vld [vmem:[%s793 + $0x8] sm:$0xff]
    %v796 = vld [vmem:[%s793 + $0x10] sm:$0xff]
    %v797 = vld [vmem:[%s793 + $0x18] sm:$0xff]
    %v798 = vld [vmem:[%s793 + $0x20] sm:$0xff]
    %v799 = vld [vmem:[%s793 + $0x28] sm:$0xff]
    %v800 = vld [vmem:[%s793 + $0x30] sm:$0xff]
    %v801 = vld [vmem:[%s793 + $0x38] sm:$0xff]
    %s802 = scalar_lea.vmem [#allocation9], %s784
    %v803 = vld [vmem:[%s802] sm:$0x1]
    %v805 = vsel %vm158, %v791, 0
    %807 = vmatpush.msra.mxu0 0.0
    %808 = vmatpush.msra.mxu0 0.0
    %809 = vmatpush.msra.mxu0 0.0
    %810 = vmatpush.msra.mxu0 0.0
    %811 = vmatpush.msra.mxu0 0.0
    %812 = vmatpush.msra.mxu0 0.0
    %813 = vmatpush.msra.mxu0 0.0
    %814 = vmatpush.msra.mxu0 0.0
    %815 = vmatpush.msra.mxu0 %v801
    %816 = vmatpush.msra.mxu0 %v800
    %817 = vmatpush.msra.mxu0 %v799
    %818 = vmatpush.msra.mxu0 %v798
    %819 = vmatpush.msra.mxu0 %v797
    %820 = vmatpush.msra.mxu0 %v796
    %821 = vmatpush.msra.mxu0 %v795
    %822 = vmatpush.msra.mxu0 %v794
    %823 = vmatmul.f32.gmra.mxu0 %v805
    %v824 = vpop.f32.mrf.mxu0
    %v825 = vadd.f32 %v803, %v824
    %826 = vdwg.mxu0
    %v827 = vxor.u32 %v825, 2147483648
    %v828 = vmul.f32 %v827, 1.442695
    %v829 = vpow.pop %v828
    %v830 = vadd.f32 %v829, 1.0
    %v831 = vrcp.pop %v830
    %v832 = vmul.f32 %v830, %v831
    %v833 = vsub.f32 1.0, %v832
    %v834 = vmul.f32 %v831, %v833
    %v835 = vadd.f32 %v831, %v834
    %vm836 = vweird.f32 %v830
    %vm837 = vweird.f32 %v831
    %vm838 = vmor %vm836, %vm837
    %v839 = vsel %vm838, %v831, %v835
    %v840 = vand.u32 2147483647, %v830
    %vm841 = vcmp.eq.f32.partialorder %v840, 8.507059e+37
    %v842 = vand.u32 %v830, 2147483648
    %v843 = vor.u32 1.1754944e-38, %v842
    %v844 = vsel %vm841, %v843, %v839
    %v845 = vmul.f32 1.0, %v844
    %v846 = vtanh.pop %v825
    %v847 = vmul.f32 %v845, %v777
    %849 = vrot.lane.b32.xlu0 %v846, 64
    %v850 = vpop.permute.xlu0 %849
    %v852 = vmul.f32 %v845, %v850
    %854 = vrot.lane.b32.xlu0 %v852, 32
    %v855 = vpop.permute.xlu0 %854
    %v857 = vadd.f32 %v847, %v855
    %v858 = vtanh.pop %v857
    %860 = vrot.lane.b32.xlu0 %v858, 64
    %v861 = vpop.permute.xlu0 %860
    %v863 = vmul.f32 %v845, %v861
    %s864 = sld [smem:[#allocation2 + $0x9]]
    %s865 = scalar_lea.vmem [#allocation6], 9
    %v866 = vld [vmem:[%s865] sm:$0x1]
    %868 = vrot.lane.b32.xlu0 %v863, 64
    %v869 = vpop.permute.xlu0 %868
    %v871 = vsel %vm144, %v866, %v869
    %s872 = smul.u32 %s864, 64
    %s873 = scalar_lea.vmem [#allocation7], %s872
    %v874 = vld [vmem:[%s873] sm:$0xff]
    %v875 = vld [vmem:[%s873 + $0x8] sm:$0xff]
    %v876 = vld [vmem:[%s873 + $0x10] sm:$0xff]
    %v877 = vld [vmem:[%s873 + $0x18] sm:$0xff]
    %v878 = vld [vmem:[%s873 + $0x20] sm:$0xff]
    %v879 = vld [vmem:[%s873 + $0x28] sm:$0xff]
    %v880 = vld [vmem:[%s873 + $0x30] sm:$0xff]
    %v881 = vld [vmem:[%s873 + $0x38] sm:$0xff]
    %s882 = scalar_lea.vmem [#allocation9], %s864
    %v883 = vld [vmem:[%s882] sm:$0x1]
    %v885 = vsel %vm158, %v871, 0
    %887 = vmatpush.msra.mxu0 0.0
    %888 = vmatpush.msra.mxu0 0.0
    %889 = vmatpush.msra.mxu0 0.0
    %890 = vmatpush.msra.mxu0 0.0
    %891 = vmatpush.msra.mxu0 0.0
    %892 = vmatpush.msra.mxu0 0.0
    %893 = vmatpush.msra.mxu0 0.0
    %894 = vmatpush.msra.mxu0 0.0
    %895 = vmatpush.msra.mxu0 %v881
    %896 = vmatpush.msra.mxu0 %v880
    %897 = vmatpush.msra.mxu0 %v879
    %898 = vmatpush.msra.mxu0 %v878
    %899 = vmatpush.msra.mxu0 %v877
    %900 = vmatpush.msra.mxu0 %v876
    %901 = vmatpush.msra.mxu0 %v875
    %902 = vmatpush.msra.mxu0 %v874
    %903 = vmatmul.f32.gmra.mxu0 %v885
    %v904 = vpop.f32.mrf.mxu0
    %v905 = vadd.f32 %v883, %v904
    %906 = vdwg.mxu0
    %v907 = vxor.u32 %v905, 2147483648
    %v908 = vmul.f32 %v907, 1.442695
    %v909 = vpow.pop %v908
    %v910 = vadd.f32 %v909, 1.0
    %v911 = vrcp.pop %v910
    %v912 = vmul.f32 %v910, %v911
    %v913 = vsub.f32 1.0, %v912
    %v914 = vmul.f32 %v911, %v913
    %v915 = vadd.f32 %v911, %v914
    %vm916 = vweird.f32 %v910
    %vm917 = vweird.f32 %v911
    %vm918 = vmor %vm916, %vm917
    %v919 = vsel %vm918, %v911, %v915
    %v920 = vand.u32 2147483647, %v910
    %vm921 = vcmp.eq.f32.partialorder %v920, 8.507059e+37
    %v922 = vand.u32 %v910, 2147483648
    %v923 = vor.u32 1.1754944e-38, %v922
    %v924 = vsel %vm921, %v923, %v919
    %v925 = vmul.f32 1.0, %v924
    %v926 = vtanh.pop %v905
    %v927 = vmul.f32 %v925, %v857
    %929 = vrot.lane.b32.xlu0 %v926, 64
    %v930 = vpop.permute.xlu0 %929
    %v932 = vmul.f32 %v925, %v930
    %934 = vrot.lane.b32.xlu0 %v932, 32
    %v935 = vpop.permute.xlu0 %934
    %v937 = vadd.f32 %v927, %v935
    %v938 = vtanh.pop %v937
    %940 = vrot.lane.b32.xlu0 %v938, 64
    %v941 = vpop.permute.xlu0 %940
    %v943 = vmul.f32 %v925, %v941
    %s944 = sld [smem:[#allocation2 + $0xa]]
    %s945 = scalar_lea.vmem [#allocation6], 10
    %v946 = vld [vmem:[%s945] sm:$0x1]
    %948 = vrot.lane.b32.xlu0 %v943, 64
    %v949 = vpop.permute.xlu0 %948
    %v951 = vsel %vm144, %v946, %v949
    %s952 = smul.u32 %s944, 64
    %s953 = scalar_lea.vmem [#allocation7], %s952
    %v954 = vld [vmem:[%s953] sm:$0xff]
    %v955 = vld [vmem:[%s953 + $0x8] sm:$0xff]
    %v956 = vld [vmem:[%s953 + $0x10] sm:$0xff]
    %v957 = vld [vmem:[%s953 + $0x18] sm:$0xff]
    %v958 = vld [vmem:[%s953 + $0x20] sm:$0xff]
    %v959 = vld [vmem:[%s953 + $0x28] sm:$0xff]
    %v960 = vld [vmem:[%s953 + $0x30] sm:$0xff]
    %v961 = vld [vmem:[%s953 + $0x38] sm:$0xff]
    %s962 = scalar_lea.vmem [#allocation9], %s944
    %v963 = vld [vmem:[%s962] sm:$0x1]
    %v965 = vsel %vm158, %v951, 0
    %967 = vmatpush.msra.mxu0 0.0
    %968 = vmatpush.msra.mxu0 0.0
    %969 = vmatpush.msra.mxu0 0.0
    %970 = vmatpush.msra.mxu0 0.0
    %971 = vmatpush.msra.mxu0 0.0
    %972 = vmatpush.msra.mxu0 0.0
    %973 = vmatpush.msra.mxu0 0.0
    %974 = vmatpush.msra.mxu0 0.0
    %975 = vmatpush.msra.mxu0 %v961
    %976 = vmatpush.msra.mxu0 %v960
    %977 = vmatpush.msra.mxu0 %v959
    %978 = vmatpush.msra.mxu0 %v958
    %979 = vmatpush.msra.mxu0 %v957
    %980 = vmatpush.msra.mxu0 %v956
    %981 = vmatpush.msra.mxu0 %v955
    %982 = vmatpush.msra.mxu0 %v954
    %983 = vmatmul.f32.gmra.mxu0 %v965
    %v984 = vpop.f32.mrf.mxu0
    %v985 = vadd.f32 %v963, %v984
    %986 = vdwg.mxu0
    %v987 = vxor.u32 %v985, 2147483648
    %v988 = vmul.f32 %v987, 1.442695
    %v989 = vpow.pop %v988
    %v990 = vadd.f32 %v989, 1.0
    %v991 = vrcp.pop %v990
    %v992 = vmul.f32 %v990, %v991
    %v993 = vsub.f32 1.0, %v992
    %v994 = vmul.f32 %v991, %v993
    %v995 = vadd.f32 %v991, %v994
    %vm996 = vweird.f32 %v990
    %vm997 = vweird.f32 %v991
    %vm998 = vmor %vm996, %vm997
    %v999 = vsel %vm998, %v991, %v995
    %v1000 = vand.u32 2147483647, %v990
    %vm1001 = vcmp.eq.f32.partialorder %v1000, 8.507059e+37
    %v1002 = vand.u32 %v990, 2147483648
    %v1003 = vor.u32 1.1754944e-38, %v1002
    %v1004 = vsel %vm1001, %v1003, %v999
    %v1005 = vmul.f32 1.0, %v1004
    %v1006 = vtanh.pop %v985
    %v1007 = vmul.f32 %v1005, %v937
    %1009 = vrot.lane.b32.xlu0 %v1006, 64
    %v1010 = vpop.permute.xlu0 %1009
    %v1012 = vmul.f32 %v1005, %v1010
    %1014 = vrot.lane.b32.xlu0 %v1012, 32
    %v1015 = vpop.permute.xlu0 %1014
    %v1017 = vadd.f32 %v1007, %v1015
    %v1018 = vtanh.pop %v1017
    %1020 = vrot.lane.b32.xlu0 %v1018, 64
    %v1021 = vpop.permute.xlu0 %1020
    %v1023 = vmul.f32 %v1005, %v1021
    %s1024 = sld [smem:[#allocation2 + $0xb]]
    %s1025 = scalar_lea.vmem [#allocation6], 11
    %v1026 = vld [vmem:[%s1025] sm:$0x1]
    %1028 = vrot.lane.b32.xlu0 %v1023, 64
    %v1029 = vpop.permute.xlu0 %1028
    %v1031 = vsel %vm144, %v1026, %v1029
    %s1032 = smul.u32 %s1024, 64
    %s1033 = scalar_lea.vmem [#allocation7], %s1032
    %v1034 = vld [vmem:[%s1033] sm:$0xff]
    %v1035 = vld [vmem:[%s1033 + $0x8] sm:$0xff]
    %v1036 = vld [vmem:[%s1033 + $0x10] sm:$0xff]
    %v1037 = vld [vmem:[%s1033 + $0x18] sm:$0xff]
    %v1038 = vld [vmem:[%s1033 + $0x20] sm:$0xff]
    %v1039 = vld [vmem:[%s1033 + $0x28] sm:$0xff]
    %v1040 = vld [vmem:[%s1033 + $0x30] sm:$0xff]
    %v1041 = vld [vmem:[%s1033 + $0x38] sm:$0xff]
    %s1042 = scalar_lea.vmem [#allocation9], %s1024
    %v1043 = vld [vmem:[%s1042] sm:$0x1]
    %v1045 = vsel %vm158, %v1031, 0
    %1047 = vmatpush.msra.mxu0 0.0
    %1048 = vmatpush.msra.mxu0 0.0
    %1049 = vmatpush.msra.mxu0 0.0
    %1050 = vmatpush.msra.mxu0 0.0
    %1051 = vmatpush.msra.mxu0 0.0
    %1052 = vmatpush.msra.mxu0 0.0
    %1053 = vmatpush.msra.mxu0 0.0
    %1054 = vmatpush.msra.mxu0 0.0
    %1055 = vmatpush.msra.mxu0 %v1041
    %1056 = vmatpush.msra.mxu0 %v1040
    %1057 = vmatpush.msra.mxu0 %v1039
    %1058 = vmatpush.msra.mxu0 %v1038
    %1059 = vmatpush.msra.mxu0 %v1037
    %1060 = vmatpush.msra.mxu0 %v1036
    %1061 = vmatpush.msra.mxu0 %v1035
    %1062 = vmatpush.msra.mxu0 %v1034
    %1063 = vmatmul.f32.gmra.mxu0 %v1045
    %v1064 = vpop.f32.mrf.mxu0
    %v1065 = vadd.f32 %v1043, %v1064
    %1066 = vdwg.mxu0
    %v1067 = vxor.u32 %v1065, 2147483648
    %v1068 = vmul.f32 %v1067, 1.442695
    %v1069 = vpow.pop %v1068
    %v1070 = vadd.f32 %v1069, 1.0
    %v1071 = vrcp.pop %v1070
    %v1072 = vmul.f32 %v1070, %v1071
    %v1073 = vsub.f32 1.0, %v1072
    %v1074 = vmul.f32 %v1071, %v1073
    %v1075 = vadd.f32 %v1071, %v1074
    %vm1076 = vweird.f32 %v1070
    %vm1077 = vweird.f32 %v1071
    %vm1078 = vmor %vm1076, %vm1077
    %v1079 = vsel %vm1078, %v1071, %v1075
    %v1080 = vand.u32 2147483647, %v1070
    %vm1081 = vcmp.eq.f32.partialorder %v1080, 8.507059e+37
    %v1082 = vand.u32 %v1070, 2147483648
    %v1083 = vor.u32 1.1754944e-38, %v1082
    %v1084 = vsel %vm1081, %v1083, %v1079
    %v1085 = vmul.f32 1.0, %v1084
    %v1086 = vtanh.pop %v1065
    %v1087 = vmul.f32 %v1085, %v1017
    %1089 = vrot.lane.b32.xlu0 %v1086, 64
    %v1090 = vpop.permute.xlu0 %1089
    %v1092 = vmul.f32 %v1085, %v1090
    %1094 = vrot.lane.b32.xlu0 %v1092, 32
    %v1095 = vpop.permute.xlu0 %1094
    %v1097 = vadd.f32 %v1087, %v1095
    %v1098 = vtanh.pop %v1097
    %1100 = vrot.lane.b32.xlu0 %v1098, 64
    %v1101 = vpop.permute.xlu0 %1100
    %v1103 = vmul.f32 %v1085, %v1101
    %s1104 = sld [smem:[#allocation2 + $0xc]]
    %s1105 = scalar_lea.vmem [#allocation6], 12
    %v1106 = vld [vmem:[%s1105] sm:$0x1]
    %1108 = vrot.lane.b32.xlu0 %v1103, 64
    %v1109 = vpop.permute.xlu0 %1108
    %v1111 = vsel %vm144, %v1106, %v1109
    %s1112 = smul.u32 %s1104, 64
    %s1113 = scalar_lea.vmem [#allocation7], %s1112
    %v1114 = vld [vmem:[%s1113] sm:$0xff]
    %v1115 = vld [vmem:[%s1113 + $0x8] sm:$0xff]
    %v1116 = vld [vmem:[%s1113 + $0x10] sm:$0xff]
    %v1117 = vld [vmem:[%s1113 + $0x18] sm:$0xff]
    %v1118 = vld [vmem:[%s1113 + $0x20] sm:$0xff]
    %v1119 = vld [vmem:[%s1113 + $0x28] sm:$0xff]
    %v1120 = vld [vmem:[%s1113 + $0x30] sm:$0xff]
    %v1121 = vld [vmem:[%s1113 + $0x38] sm:$0xff]
    %s1122 = scalar_lea.vmem [#allocation9], %s1104
    %v1123 = vld [vmem:[%s1122] sm:$0x1]
    %v1125 = vsel %vm158, %v1111, 0
    %1127 = vmatpush.msra.mxu0 0.0
    %1128 = vmatpush.msra.mxu0 0.0
    %1129 = vmatpush.msra.mxu0 0.0
    %1130 = vmatpush.msra.mxu0 0.0
    %1131 = vmatpush.msra.mxu0 0.0
    %1132 = vmatpush.msra.mxu0 0.0
    %1133 = vmatpush.msra.mxu0 0.0
    %1134 = vmatpush.msra.mxu0 0.0
    %1135 = vmatpush.msra.mxu0 %v1121
    %1136 = vmatpush.msra.mxu0 %v1120
    %1137 = vmatpush.msra.mxu0 %v1119
    %1138 = vmatpush.msra.mxu0 %v1118
    %1139 = vmatpush.msra.mxu0 %v1117
    %1140 = vmatpush.msra.mxu0 %v1116
    %1141 = vmatpush.msra.mxu0 %v1115
    %1142 = vmatpush.msra.mxu0 %v1114
    %1143 = vmatmul.f32.gmra.mxu0 %v1125
    %v1144 = vpop.f32.mrf.mxu0
    %v1145 = vadd.f32 %v1123, %v1144
    %1146 = vdwg.mxu0
    %v1147 = vxor.u32 %v1145, 2147483648
    %v1148 = vmul.f32 %v1147, 1.442695
    %v1149 = vpow.pop %v1148
    %v1150 = vadd.f32 %v1149, 1.0
    %v1151 = vrcp.pop %v1150
    %v1152 = vmul.f32 %v1150, %v1151
    %v1153 = vsub.f32 1.0, %v1152
    %v1154 = vmul.f32 %v1151, %v1153
    %v1155 = vadd.f32 %v1151, %v1154
    %vm1156 = vweird.f32 %v1150
    %vm1157 = vweird.f32 %v1151
    %vm1158 = vmor %vm1156, %vm1157
    %v1159 = vsel %vm1158, %v1151, %v1155
    %v1160 = vand.u32 2147483647, %v1150
    %vm1161 = vcmp.eq.f32.partialorder %v1160, 8.507059e+37
    %v1162 = vand.u32 %v1150, 2147483648
    %v1163 = vor.u32 1.1754944e-38, %v1162
    %v1164 = vsel %vm1161, %v1163, %v1159
    %v1165 = vmul.f32 1.0, %v1164
    %v1166 = vtanh.pop %v1145
    %v1167 = vmul.f32 %v1165, %v1097
    %1169 = vrot.lane.b32.xlu0 %v1166, 64
    %v1170 = vpop.permute.xlu0 %1169
    %v1172 = vmul.f32 %v1165, %v1170
    %1174 = vrot.lane.b32.xlu0 %v1172, 32
    %v1175 = vpop.permute.xlu0 %1174
    %v1177 = vadd.f32 %v1167, %v1175
    %v1178 = vtanh.pop %v1177
    %1180 = vrot.lane.b32.xlu0 %v1178, 64
    %v1181 = vpop.permute.xlu0 %1180
    %v1183 = vmul.f32 %v1165, %v1181
    %s1184 = sld [smem:[#allocation2 + $0xd]]
    %s1185 = scalar_lea.vmem [#allocation6], 13
    %v1186 = vld [vmem:[%s1185] sm:$0x1]
    %1188 = vrot.lane.b32.xlu0 %v1183, 64
    %v1189 = vpop.permute.xlu0 %1188
    %v1191 = vsel %vm144, %v1186, %v1189
    %s1192 = smul.u32 %s1184, 64
    %s1193 = scalar_lea.vmem [#allocation7], %s1192
    %v1194 = vld [vmem:[%s1193] sm:$0xff]
    %v1195 = vld [vmem:[%s1193 + $0x8] sm:$0xff]
    %v1196 = vld [vmem:[%s1193 + $0x10] sm:$0xff]
    %v1197 = vld [vmem:[%s1193 + $0x18] sm:$0xff]
    %v1198 = vld [vmem:[%s1193 + $0x20] sm:$0xff]
    %v1199 = vld [vmem:[%s1193 + $0x28] sm:$0xff]
    %v1200 = vld [vmem:[%s1193 + $0x30] sm:$0xff]
    %v1201 = vld [vmem:[%s1193 + $0x38] sm:$0xff]
    %s1202 = scalar_lea.vmem [#allocation9], %s1184
    %v1203 = vld [vmem:[%s1202] sm:$0x1]
    %v1205 = vsel %vm158, %v1191, 0
    %1207 = vmatpush.msra.mxu0 0.0
    %1208 = vmatpush.msra.mxu0 0.0
    %1209 = vmatpush.msra.mxu0 0.0
    %1210 = vmatpush.msra.mxu0 0.0
    %1211 = vmatpush.msra.mxu0 0.0
    %1212 = vmatpush.msra.mxu0 0.0
    %1213 = vmatpush.msra.mxu0 0.0
    %1214 = vmatpush.msra.mxu0 0.0
    %1215 = vmatpush.msra.mxu0 %v1201
    %1216 = vmatpush.msra.mxu0 %v1200
    %1217 = vmatpush.msra.mxu0 %v1199
    %1218 = vmatpush.msra.mxu0 %v1198
    %1219 = vmatpush.msra.mxu0 %v1197
    %1220 = vmatpush.msra.mxu0 %v1196
    %1221 = vmatpush.msra.mxu0 %v1195
    %1222 = vmatpush.msra.mxu0 %v1194
    %1223 = vmatmul.f32.gmra.mxu0 %v1205
    %v1224 = vpop.f32.mrf.mxu0
    %v1225 = vadd.f32 %v1203, %v1224
    %1226 = vdwg.mxu0
    %v1227 = vxor.u32 %v1225, 2147483648
    %v1228 = vmul.f32 %v1227, 1.442695
    %v1229 = vpow.pop %v1228
    %v1230 = vadd.f32 %v1229, 1.0
    %v1231 = vrcp.pop %v1230
    %v1232 = vmul.f32 %v1230, %v1231
    %v1233 = vsub.f32 1.0, %v1232
    %v1234 = vmul.f32 %v1231, %v1233
    %v1235 = vadd.f32 %v1231, %v1234
    %vm1236 = vweird.f32 %v1230
    %vm1237 = vweird.f32 %v1231
    %vm1238 = vmor %vm1236, %vm1237
    %v1239 = vsel %vm1238, %v1231, %v1235
    %v1240 = vand.u32 2147483647, %v1230
    %vm1241 = vcmp.eq.f32.partialorder %v1240, 8.507059e+37
    %v1242 = vand.u32 %v1230, 2147483648
    %v1243 = vor.u32 1.1754944e-38, %v1242
    %v1244 = vsel %vm1241, %v1243, %v1239
    %v1245 = vmul.f32 1.0, %v1244
    %v1246 = vtanh.pop %v1225
    %v1247 = vmul.f32 %v1245, %v1177
    %1249 = vrot.lane.b32.xlu0 %v1246, 64
    %v1250 = vpop.permute.xlu0 %1249
    %v1252 = vmul.f32 %v1245, %v1250
    %1254 = vrot.lane.b32.xlu0 %v1252, 32
    %v1255 = vpop.permute.xlu0 %1254
    %v1257 = vadd.f32 %v1247, %v1255
    %v1258 = vtanh.pop %v1257
    %1260 = vrot.lane.b32.xlu0 %v1258, 64
    %v1261 = vpop.permute.xlu0 %1260
    %v1263 = vmul.f32 %v1245, %v1261
    %s1264 = sld [smem:[#allocation2 + $0xe]]
    %s1265 = scalar_lea.vmem [#allocation6], 14
    %v1266 = vld [vmem:[%s1265] sm:$0x1]
    %1268 = vrot.lane.b32.xlu0 %v1263, 64
    %v1269 = vpop.permute.xlu0 %1268
    %v1271 = vsel %vm144, %v1266, %v1269
    %s1272 = smul.u32 %s1264, 64
    %s1273 = scalar_lea.vmem [#allocation7], %s1272
    %v1274 = vld [vmem:[%s1273] sm:$0xff]
    %v1275 = vld [vmem:[%s1273 + $0x8] sm:$0xff]
    %v1276 = vld [vmem:[%s1273 + $0x10] sm:$0xff]
    %v1277 = vld [vmem:[%s1273 + $0x18] sm:$0xff]
    %v1278 = vld [vmem:[%s1273 + $0x20] sm:$0xff]
    %v1279 = vld [vmem:[%s1273 + $0x28] sm:$0xff]
    %v1280 = vld [vmem:[%s1273 + $0x30] sm:$0xff]
    %v1281 = vld [vmem:[%s1273 + $0x38] sm:$0xff]
    %s1282 = scalar_lea.vmem [#allocation9], %s1264
    %v1283 = vld [vmem:[%s1282] sm:$0x1]
    %v1285 = vsel %vm158, %v1271, 0
    %1287 = vmatpush.msra.mxu0 0.0
    %1288 = vmatpush.msra.mxu0 0.0
    %1289 = vmatpush.msra.mxu0 0.0
    %1290 = vmatpush.msra.mxu0 0.0
    %1291 = vmatpush.msra.mxu0 0.0
    %1292 = vmatpush.msra.mxu0 0.0
    %1293 = vmatpush.msra.mxu0 0.0
    %1294 = vmatpush.msra.mxu0 0.0
    %1295 = vmatpush.msra.mxu0 %v1281
    %1296 = vmatpush.msra.mxu0 %v1280
    %1297 = vmatpush.msra.mxu0 %v1279
    %1298 = vmatpush.msra.mxu0 %v1278
    %1299 = vmatpush.msra.mxu0 %v1277
    %1300 = vmatpush.msra.mxu0 %v1276
    %1301 = vmatpush.msra.mxu0 %v1275
    %1302 = vmatpush.msra.mxu0 %v1274
    %1303 = vmatmul.f32.gmra.mxu0 %v1285
    %v1304 = vpop.f32.mrf.mxu0
    %v1305 = vadd.f32 %v1283, %v1304
    %1306 = vdwg.mxu0
    %v1307 = vxor.u32 %v1305, 2147483648
    %v1308 = vmul.f32 %v1307, 1.442695
    %v1309 = vpow.pop %v1308
    %v1310 = vadd.f32 %v1309, 1.0
    %v1311 = vrcp.pop %v1310
    %v1312 = vmul.f32 %v1310, %v1311
    %v1313 = vsub.f32 1.0, %v1312
    %v1314 = vmul.f32 %v1311, %v1313
    %v1315 = vadd.f32 %v1311, %v1314
    %vm1316 = vweird.f32 %v1310
    %vm1317 = vweird.f32 %v1311
    %vm1318 = vmor %vm1316, %vm1317
    %v1319 = vsel %vm1318, %v1311, %v1315
    %v1320 = vand.u32 2147483647, %v1310
    %vm1321 = vcmp.eq.f32.partialorder %v1320, 8.507059e+37
    %v1322 = vand.u32 %v1310, 2147483648
    %v1323 = vor.u32 1.1754944e-38, %v1322
    %v1324 = vsel %vm1321, %v1323, %v1319
    %v1325 = vmul.f32 1.0, %v1324
    %v1326 = vtanh.pop %v1305
    %v1327 = vmul.f32 %v1325, %v1257
    %1329 = vrot.lane.b32.xlu0 %v1326, 64
    %v1330 = vpop.permute.xlu0 %1329
    %v1332 = vmul.f32 %v1325, %v1330
    %1334 = vrot.lane.b32.xlu0 %v1332, 32
    %v1335 = vpop.permute.xlu0 %1334
    %v1337 = vadd.f32 %v1327, %v1335
    %v1338 = vtanh.pop %v1337
    %1340 = vrot.lane.b32.xlu0 %v1338, 64
    %v1341 = vpop.permute.xlu0 %1340
    %v1343 = vmul.f32 %v1325, %v1341
    %s1344 = sld [smem:[#allocation2 + $0xf]]
    %s1345 = scalar_lea.vmem [#allocation6], 15
    %v1346 = vld [vmem:[%s1345] sm:$0x1]
    %1348 = vrot.lane.b32.xlu0 %v1343, 64
    %v1349 = vpop.permute.xlu0 %1348
    %v1351 = vsel %vm144, %v1346, %v1349
    %s1352 = smul.u32 %s1344, 64
    %s1353 = scalar_lea.vmem [#allocation7], %s1352
    %v1354 = vld [vmem:[%s1353] sm:$0xff]
    %v1355 = vld [vmem:[%s1353 + $0x8] sm:$0xff]
    %v1356 = vld [vmem:[%s1353 + $0x10] sm:$0xff]
    %v1357 = vld [vmem:[%s1353 + $0x18] sm:$0xff]
    %v1358 = vld [vmem:[%s1353 + $0x20] sm:$0xff]
    %v1359 = vld [vmem:[%s1353 + $0x28] sm:$0xff]
    %v1360 = vld [vmem:[%s1353 + $0x30] sm:$0xff]
    %v1361 = vld [vmem:[%s1353 + $0x38] sm:$0xff]
    %s1362 = scalar_lea.vmem [#allocation9], %s1344
    %v1363 = vld [vmem:[%s1362] sm:$0x1]
    %v1365 = vsel %vm158, %v1351, 0
    %1367 = vmatpush.msra.mxu0 0.0
    %1368 = vmatpush.msra.mxu0 0.0
    %1369 = vmatpush.msra.mxu0 0.0
    %1370 = vmatpush.msra.mxu0 0.0
    %1371 = vmatpush.msra.mxu0 0.0
    %1372 = vmatpush.msra.mxu0 0.0
    %1373 = vmatpush.msra.mxu0 0.0
    %1374 = vmatpush.msra.mxu0 0.0
    %1375 = vmatpush.msra.mxu0 %v1361
    %1376 = vmatpush.msra.mxu0 %v1360
    %1377 = vmatpush.msra.mxu0 %v1359
    %1378 = vmatpush.msra.mxu0 %v1358
    %1379 = vmatpush.msra.mxu0 %v1357
    %1380 = vmatpush.msra.mxu0 %v1356
    %1381 = vmatpush.msra.mxu0 %v1355
    %1382 = vmatpush.msra.mxu0 %v1354
    %1383 = vmatmul.f32.gmra.mxu0 %v1365
    %v1384 = vpop.f32.mrf.mxu0
    %v1385 = vadd.f32 %v1363, %v1384
    %1386 = vdwg.mxu0
    %v1387 = vxor.u32 %v1385, 2147483648
    %v1388 = vmul.f32 %v1387, 1.442695
    %v1389 = vpow.pop %v1388
    %v1390 = vadd.f32 %v1389, 1.0
    %v1391 = vrcp.pop %v1390
    %v1392 = vmul.f32 %v1390, %v1391
    %v1393 = vsub.f32 1.0, %v1392
    %v1394 = vmul.f32 %v1391, %v1393
    %v1395 = vadd.f32 %v1391, %v1394
    %vm1396 = vweird.f32 %v1390
    %vm1397 = vweird.f32 %v1391
    %vm1398 = vmor %vm1396, %vm1397
    %v1399 = vsel %vm1398, %v1391, %v1395
    %v1400 = vand.u32 2147483647, %v1390
    %vm1401 = vcmp.eq.f32.partialorder %v1400, 8.507059e+37
    %v1402 = vand.u32 %v1390, 2147483648
    %v1403 = vor.u32 1.1754944e-38, %v1402
    %v1404 = vsel %vm1401, %v1403, %v1399
    %v1405 = vmul.f32 1.0, %v1404
    %v1406 = vtanh.pop %v1385
    %v1407 = vmul.f32 %v1405, %v1337
    %1409 = vrot.lane.b32.xlu0 %v1406, 64
    %v1410 = vpop.permute.xlu0 %1409
    %v1412 = vmul.f32 %v1405, %v1410
    %1414 = vrot.lane.b32.xlu0 %v1412, 32
    %v1415 = vpop.permute.xlu0 %1414
    %v1417 = vadd.f32 %v1407, %v1415
    %v1418 = vtanh.pop %v1417
    %1420 = vrot.lane.b32.xlu0 %v1418, 64
    %v1421 = vpop.permute.xlu0 %1420
    %v1423 = vmul.f32 %v1405, %v1421
    %s1424 = sld [smem:[#allocation2 + $0x10]]
    %s1425 = scalar_lea.vmem [#allocation6], 16
    %v1426 = vld [vmem:[%s1425] sm:$0x1]
    %1428 = vrot.lane.b32.xlu0 %v1423, 64
    %v1429 = vpop.permute.xlu0 %1428
    %v1431 = vsel %vm144, %v1426, %v1429
    %s1432 = smul.u32 %s1424, 64
    %s1433 = scalar_lea.vmem [#allocation7], %s1432
    %v1434 = vld [vmem:[%s1433] sm:$0xff]
    %v1435 = vld [vmem:[%s1433 + $0x8] sm:$0xff]
    %v1436 = vld [vmem:[%s1433 + $0x10] sm:$0xff]
    %v1437 = vld [vmem:[%s1433 + $0x18] sm:$0xff]
    %v1438 = vld [vmem:[%s1433 + $0x20] sm:$0xff]
    %v1439 = vld [vmem:[%s1433 + $0x28] sm:$0xff]
    %v1440 = vld [vmem:[%s1433 + $0x30] sm:$0xff]
    %v1441 = vld [vmem:[%s1433 + $0x38] sm:$0xff]
    %s1442 = scalar_lea.vmem [#allocation9], %s1424
    %v1443 = vld [vmem:[%s1442] sm:$0x1]
    %v1445 = vsel %vm158, %v1431, 0
    %1447 = vmatpush.msra.mxu0 0.0
    %1448 = vmatpush.msra.mxu0 0.0
    %1449 = vmatpush.msra.mxu0 0.0
    %1450 = vmatpush.msra.mxu0 0.0
    %1451 = vmatpush.msra.mxu0 0.0
    %1452 = vmatpush.msra.mxu0 0.0
    %1453 = vmatpush.msra.mxu0 0.0
    %1454 = vmatpush.msra.mxu0 0.0
    %1455 = vmatpush.msra.mxu0 %v1441
    %1456 = vmatpush.msra.mxu0 %v1440
    %1457 = vmatpush.msra.mxu0 %v1439
    %1458 = vmatpush.msra.mxu0 %v1438
    %1459 = vmatpush.msra.mxu0 %v1437
    %1460 = vmatpush.msra.mxu0 %v1436
    %1461 = vmatpush.msra.mxu0 %v1435
    %1462 = vmatpush.msra.mxu0 %v1434
    %1463 = vmatmul.f32.gmra.mxu0 %v1445
    %v1464 = vpop.f32.mrf.mxu0
    %v1465 = vadd.f32 %v1443, %v1464
    %1466 = vdwg.mxu0
    %v1467 = vxor.u32 %v1465, 2147483648
    %v1468 = vmul.f32 %v1467, 1.442695
    %v1469 = vpow.pop %v1468
    %v1470 = vadd.f32 %v1469, 1.0
    %v1471 = vrcp.pop %v1470
    %v1472 = vmul.f32 %v1470, %v1471
    %v1473 = vsub.f32 1.0, %v1472
    %v1474 = vmul.f32 %v1471, %v1473
    %v1475 = vadd.f32 %v1471, %v1474
    %vm1476 = vweird.f32 %v1470
    %vm1477 = vweird.f32 %v1471
    %vm1478 = vmor %vm1476, %vm1477
    %v1479 = vsel %vm1478, %v1471, %v1475
    %v1480 = vand.u32 2147483647, %v1470
    %vm1481 = vcmp.eq.f32.partialorder %v1480, 8.507059e+37
    %v1482 = vand.u32 %v1470, 2147483648
    %v1483 = vor.u32 1.1754944e-38, %v1482
    %v1484 = vsel %vm1481, %v1483, %v1479
    %v1485 = vmul.f32 1.0, %v1484
    %v1486 = vtanh.pop %v1465
    %v1487 = vmul.f32 %v1485, %v1417
    %1489 = vrot.lane.b32.xlu0 %v1486, 64
    %v1490 = vpop.permute.xlu0 %1489
    %v1492 = vmul.f32 %v1485, %v1490
    %1494 = vrot.lane.b32.xlu0 %v1492, 32
    %v1495 = vpop.permute.xlu0 %1494
    %v1497 = vadd.f32 %v1487, %v1495
    %v1498 = vtanh.pop %v1497
    %1500 = vrot.lane.b32.xlu0 %v1498, 64
    %v1501 = vpop.permute.xlu0 %1500
    %v1503 = vmul.f32 %v1485, %v1501
    %s1504 = sld [smem:[#allocation2 + $0x11]]
    %s1505 = scalar_lea.vmem [#allocation6], 17
    %v1506 = vld [vmem:[%s1505] sm:$0x1]
    %1508 = vrot.lane.b32.xlu0 %v1503, 64
    %v1509 = vpop.permute.xlu0 %1508
    %v1511 = vsel %vm144, %v1506, %v1509
    %s1512 = smul.u32 %s1504, 64
    %s1513 = scalar_lea.vmem [#allocation7], %s1512
    %v1514 = vld [vmem:[%s1513] sm:$0xff]
    %v1515 = vld [vmem:[%s1513 + $0x8] sm:$0xff]
    %v1516 = vld [vmem:[%s1513 + $0x10] sm:$0xff]
    %v1517 = vld [vmem:[%s1513 + $0x18] sm:$0xff]
    %v1518 = vld [vmem:[%s1513 + $0x20] sm:$0xff]
    %v1519 = vld [vmem:[%s1513 + $0x28] sm:$0xff]
    %v1520 = vld [vmem:[%s1513 + $0x30] sm:$0xff]
    %v1521 = vld [vmem:[%s1513 + $0x38] sm:$0xff]
    %s1522 = scalar_lea.vmem [#allocation9], %s1504
    %v1523 = vld [vmem:[%s1522] sm:$0x1]
    %v1525 = vsel %vm158, %v1511, 0
    %1527 = vmatpush.msra.mxu0 0.0
    %1528 = vmatpush.msra.mxu0 0.0
    %1529 = vmatpush.msra.mxu0 0.0
    %1530 = vmatpush.msra.mxu0 0.0
    %1531 = vmatpush.msra.mxu0 0.0
    %1532 = vmatpush.msra.mxu0 0.0
    %1533 = vmatpush.msra.mxu0 0.0
    %1534 = vmatpush.msra.mxu0 0.0
    %1535 = vmatpush.msra.mxu0 %v1521
    %1536 = vmatpush.msra.mxu0 %v1520
    %1537 = vmatpush.msra.mxu0 %v1519
    %1538 = vmatpush.msra.mxu0 %v1518
    %1539 = vmatpush.msra.mxu0 %v1517
    %1540 = vmatpush.msra.mxu0 %v1516
    %1541 = vmatpush.msra.mxu0 %v1515
    %1542 = vmatpush.msra.mxu0 %v1514
    %1543 = vmatmul.f32.gmra.mxu0 %v1525
    %v1544 = vpop.f32.mrf.mxu0
    %v1545 = vadd.f32 %v1523, %v1544
    %1546 = vdwg.mxu0
    %v1547 = vxor.u32 %v1545, 2147483648
    %v1548 = vmul.f32 %v1547, 1.442695
    %v1549 = vpow.pop %v1548
    %v1550 = vadd.f32 %v1549, 1.0
    %v1551 = vrcp.pop %v1550
    %v1552 = vmul.f32 %v1550, %v1551
    %v1553 = vsub.f32 1.0, %v1552
    %v1554 = vmul.f32 %v1551, %v1553
    %v1555 = vadd.f32 %v1551, %v1554
    %vm1556 = vweird.f32 %v1550
    %vm1557 = vweird.f32 %v1551
    %vm1558 = vmor %vm1556, %vm1557
    %v1559 = vsel %vm1558, %v1551, %v1555
    %v1560 = vand.u32 2147483647, %v1550
    %vm1561 = vcmp.eq.f32.partialorder %v1560, 8.507059e+37
    %v1562 = vand.u32 %v1550, 2147483648
    %v1563 = vor.u32 1.1754944e-38, %v1562
    %v1564 = vsel %vm1561, %v1563, %v1559
    %v1565 = vmul.f32 1.0, %v1564
    %v1566 = vtanh.pop %v1545
    %v1567 = vmul.f32 %v1565, %v1497
    %1569 = vrot.lane.b32.xlu0 %v1566, 64
    %v1570 = vpop.permute.xlu0 %1569
    %v1572 = vmul.f32 %v1565, %v1570
    %1574 = vrot.lane.b32.xlu0 %v1572, 32
    %v1575 = vpop.permute.xlu0 %1574
    %v1577 = vadd.f32 %v1567, %v1575
    %v1578 = vtanh.pop %v1577
    %1580 = vrot.lane.b32.xlu0 %v1578, 64
    %v1581 = vpop.permute.xlu0 %1580
    %v1583 = vmul.f32 %v1565, %v1581
    %s1584 = sld [smem:[#allocation2 + $0x12]]
    %s1585 = scalar_lea.vmem [#allocation6], 18
    %v1586 = vld [vmem:[%s1585] sm:$0x1]
    %1588 = vrot.lane.b32.xlu0 %v1583, 64
    %v1589 = vpop.permute.xlu0 %1588
    %v1591 = vsel %vm144, %v1586, %v1589
    %s1592 = smul.u32 %s1584, 64
    %s1593 = scalar_lea.vmem [#allocation7], %s1592
    %v1594 = vld [vmem:[%s1593] sm:$0xff]
    %v1595 = vld [vmem:[%s1593 + $0x8] sm:$0xff]
    %v1596 = vld [vmem:[%s1593 + $0x10] sm:$0xff]
    %v1597 = vld [vmem:[%s1593 + $0x18] sm:$0xff]
    %v1598 = vld [vmem:[%s1593 + $0x20] sm:$0xff]
    %v1599 = vld [vmem:[%s1593 + $0x28] sm:$0xff]
    %v1600 = vld [vmem:[%s1593 + $0x30] sm:$0xff]
    %v1601 = vld [vmem:[%s1593 + $0x38] sm:$0xff]
    %s1602 = scalar_lea.vmem [#allocation9], %s1584
    %v1603 = vld [vmem:[%s1602] sm:$0x1]
    %v1605 = vsel %vm158, %v1591, 0
    %1607 = vmatpush.msra.mxu0 0.0
    %1608 = vmatpush.msra.mxu0 0.0
    %1609 = vmatpush.msra.mxu0 0.0
    %1610 = vmatpush.msra.mxu0 0.0
    %1611 = vmatpush.msra.mxu0 0.0
    %1612 = vmatpush.msra.mxu0 0.0
    %1613 = vmatpush.msra.mxu0 0.0
    %1614 = vmatpush.msra.mxu0 0.0
    %1615 = vmatpush.msra.mxu0 %v1601
    %1616 = vmatpush.msra.mxu0 %v1600
    %1617 = vmatpush.msra.mxu0 %v1599
    %1618 = vmatpush.msra.mxu0 %v1598
    %1619 = vmatpush.msra.mxu0 %v1597
    %1620 = vmatpush.msra.mxu0 %v1596
    %1621 = vmatpush.msra.mxu0 %v1595
    %1622 = vmatpush.msra.mxu0 %v1594
    %1623 = vmatmul.f32.gmra.mxu0 %v1605
    %v1624 = vpop.f32.mrf.mxu0
    %v1625 = vadd.f32 %v1603, %v1624
    %1626 = vdwg.mxu0
    %v1627 = vxor.u32 %v1625, 2147483648
    %v1628 = vmul.f32 %v1627, 1.442695
    %v1629 = vpow.pop %v1628
    %v1630 = vadd.f32 %v1629, 1.0
    %v1631 = vrcp.pop %v1630
    %v1632 = vmul.f32 %v1630, %v1631
    %v1633 = vsub.f32 1.0, %v1632
    %v1634 = vmul.f32 %v1631, %v1633
    %v1635 = vadd.f32 %v1631, %v1634
    %vm1636 = vweird.f32 %v1630
    %vm1637 = vweird.f32 %v1631
    %vm1638 = vmor %vm1636, %vm1637
    %v1639 = vsel %vm1638, %v1631, %v1635
    %v1640 = vand.u32 2147483647, %v1630
    %vm1641 = vcmp.eq.f32.partialorder %v1640, 8.507059e+37
    %v1642 = vand.u32 %v1630, 2147483648
    %v1643 = vor.u32 1.1754944e-38, %v1642
    %v1644 = vsel %vm1641, %v1643, %v1639
    %v1645 = vmul.f32 1.0, %v1644
    %v1646 = vtanh.pop %v1625
    %v1647 = vmul.f32 %v1645, %v1577
    %1649 = vrot.lane.b32.xlu0 %v1646, 64
    %v1650 = vpop.permute.xlu0 %1649
    %v1652 = vmul.f32 %v1645, %v1650
    %1654 = vrot.lane.b32.xlu0 %v1652, 32
    %v1655 = vpop.permute.xlu0 %1654
    %v1657 = vadd.f32 %v1647, %v1655
    %v1658 = vtanh.pop %v1657
    %1660 = vrot.lane.b32.xlu0 %v1658, 64
    %v1661 = vpop.permute.xlu0 %1660
    %v1663 = vmul.f32 %v1645, %v1661
    %s1664 = sld [smem:[#allocation2 + $0x13]]
    %s1665 = scalar_lea.vmem [#allocation6], 19
    %v1666 = vld [vmem:[%s1665] sm:$0x1]
    %1668 = vrot.lane.b32.xlu0 %v1663, 64
    %v1669 = vpop.permute.xlu0 %1668
    %v1671 = vsel %vm144, %v1666, %v1669
    %s1672 = smul.u32 %s1664, 64
    %s1673 = scalar_lea.vmem [#allocation7], %s1672
    %v1674 = vld [vmem:[%s1673] sm:$0xff]
    %v1675 = vld [vmem:[%s1673 + $0x8] sm:$0xff]
    %v1676 = vld [vmem:[%s1673 + $0x10] sm:$0xff]
    %v1677 = vld [vmem:[%s1673 + $0x18] sm:$0xff]
    %v1678 = vld [vmem:[%s1673 + $0x20] sm:$0xff]
    %v1679 = vld [vmem:[%s1673 + $0x28] sm:$0xff]
    %v1680 = vld [vmem:[%s1673 + $0x30] sm:$0xff]
    %v1681 = vld [vmem:[%s1673 + $0x38] sm:$0xff]
    %s1682 = scalar_lea.vmem [#allocation9], %s1664
    %v1683 = vld [vmem:[%s1682] sm:$0x1]
    %v1685 = vsel %vm158, %v1671, 0
    %1687 = vmatpush.msra.mxu0 0.0
    %1688 = vmatpush.msra.mxu0 0.0
    %1689 = vmatpush.msra.mxu0 0.0
    %1690 = vmatpush.msra.mxu0 0.0
    %1691 = vmatpush.msra.mxu0 0.0
    %1692 = vmatpush.msra.mxu0 0.0
    %1693 = vmatpush.msra.mxu0 0.0
    %1694 = vmatpush.msra.mxu0 0.0
    %1695 = vmatpush.msra.mxu0 %v1681
    %1696 = vmatpush.msra.mxu0 %v1680
    %1697 = vmatpush.msra.mxu0 %v1679
    %1698 = vmatpush.msra.mxu0 %v1678
    %1699 = vmatpush.msra.mxu0 %v1677
    %1700 = vmatpush.msra.mxu0 %v1676
    %1701 = vmatpush.msra.mxu0 %v1675
    %1702 = vmatpush.msra.mxu0 %v1674
    %1703 = vmatmul.f32.gmra.mxu0 %v1685
    %v1704 = vpop.f32.mrf.mxu0
    %v1705 = vadd.f32 %v1683, %v1704
    %1706 = vdwg.mxu0
    %v1707 = vxor.u32 %v1705, 2147483648
    %v1708 = vmul.f32 %v1707, 1.442695
    %v1709 = vpow.pop %v1708
    %v1710 = vadd.f32 %v1709, 1.0
    %v1711 = vrcp.pop %v1710
    %v1712 = vmul.f32 %v1710, %v1711
    %v1713 = vsub.f32 1.0, %v1712
    %v1714 = vmul.f32 %v1711, %v1713
    %v1715 = vadd.f32 %v1711, %v1714
    %vm1716 = vweird.f32 %v1710
    %vm1717 = vweird.f32 %v1711
    %vm1718 = vmor %vm1716, %vm1717
    %v1719 = vsel %vm1718, %v1711, %v1715
    %v1720 = vand.u32 2147483647, %v1710
    %vm1721 = vcmp.eq.f32.partialorder %v1720, 8.507059e+37
    %v1722 = vand.u32 %v1710, 2147483648
    %v1723 = vor.u32 1.1754944e-38, %v1722
    %v1724 = vsel %vm1721, %v1723, %v1719
    %v1725 = vmul.f32 1.0, %v1724
    %v1726 = vtanh.pop %v1705
    %v1727 = vmul.f32 %v1725, %v1657
    %1729 = vrot.lane.b32.xlu0 %v1726, 64
    %v1730 = vpop.permute.xlu0 %1729
    %v1732 = vmul.f32 %v1725, %v1730
    %1734 = vrot.lane.b32.xlu0 %v1732, 32
    %v1735 = vpop.permute.xlu0 %1734
    %v1737 = vadd.f32 %v1727, %v1735
    %v1738 = vtanh.pop %v1737
    %1740 = vrot.lane.b32.xlu0 %v1738, 64
    %v1741 = vpop.permute.xlu0 %1740
    %v1743 = vmul.f32 %v1725, %v1741
    %s1744 = sld [smem:[#allocation2 + $0x14]]
    %s1745 = scalar_lea.vmem [#allocation6], 20
    %v1746 = vld [vmem:[%s1745] sm:$0x1]
    %1748 = vrot.lane.b32.xlu0 %v1743, 64
    %v1749 = vpop.permute.xlu0 %1748
    %v1751 = vsel %vm144, %v1746, %v1749
    %s1752 = smul.u32 %s1744, 64
    %s1753 = scalar_lea.vmem [#allocation7], %s1752
    %v1754 = vld [vmem:[%s1753] sm:$0xff]
    %v1755 = vld [vmem:[%s1753 + $0x8] sm:$0xff]
    %v1756 = vld [vmem:[%s1753 + $0x10] sm:$0xff]
    %v1757 = vld [vmem:[%s1753 + $0x18] sm:$0xff]
    %v1758 = vld [vmem:[%s1753 + $0x20] sm:$0xff]
    %v1759 = vld [vmem:[%s1753 + $0x28] sm:$0xff]
    %v1760 = vld [vmem:[%s1753 + $0x30] sm:$0xff]
    %v1761 = vld [vmem:[%s1753 + $0x38] sm:$0xff]
    %s1762 = scalar_lea.vmem [#allocation9], %s1744
    %v1763 = vld [vmem:[%s1762] sm:$0x1]
    %v1765 = vsel %vm158, %v1751, 0
    %1767 = vmatpush.msra.mxu0 0.0
    %1768 = vmatpush.msra.mxu0 0.0
    %1769 = vmatpush.msra.mxu0 0.0
    %1770 = vmatpush.msra.mxu0 0.0
    %1771 = vmatpush.msra.mxu0 0.0
    %1772 = vmatpush.msra.mxu0 0.0
    %1773 = vmatpush.msra.mxu0 0.0
    %1774 = vmatpush.msra.mxu0 0.0
    %1775 = vmatpush.msra.mxu0 %v1761
    %1776 = vmatpush.msra.mxu0 %v1760
    %1777 = vmatpush.msra.mxu0 %v1759
    %1778 = vmatpush.msra.mxu0 %v1758
    %1779 = vmatpush.msra.mxu0 %v1757
    %1780 = vmatpush.msra.mxu0 %v1756
    %1781 = vmatpush.msra.mxu0 %v1755
    %1782 = vmatpush.msra.mxu0 %v1754
    %1783 = vmatmul.f32.gmra.mxu0 %v1765
    %v1784 = vpop.f32.mrf.mxu0
    %v1785 = vadd.f32 %v1763, %v1784
    %1786 = vdwg.mxu0
    %v1787 = vxor.u32 %v1785, 2147483648
    %v1788 = vmul.f32 %v1787, 1.442695
    %v1789 = vpow.pop %v1788
    %v1790 = vadd.f32 %v1789, 1.0
    %v1791 = vrcp.pop %v1790
    %v1792 = vmul.f32 %v1790, %v1791
    %v1793 = vsub.f32 1.0, %v1792
    %v1794 = vmul.f32 %v1791, %v1793
    %v1795 = vadd.f32 %v1791, %v1794
    %vm1796 = vweird.f32 %v1790
    %vm1797 = vweird.f32 %v1791
    %vm1798 = vmor %vm1796, %vm1797
    %v1799 = vsel %vm1798, %v1791, %v1795
    %v1800 = vand.u32 2147483647, %v1790
    %vm1801 = vcmp.eq.f32.partialorder %v1800, 8.507059e+37
    %v1802 = vand.u32 %v1790, 2147483648
    %v1803 = vor.u32 1.1754944e-38, %v1802
    %v1804 = vsel %vm1801, %v1803, %v1799
    %v1805 = vmul.f32 1.0, %v1804
    %v1806 = vtanh.pop %v1785
    %v1807 = vmul.f32 %v1805, %v1737
    %1809 = vrot.lane.b32.xlu0 %v1806, 64
    %v1810 = vpop.permute.xlu0 %1809
    %v1812 = vmul.f32 %v1805, %v1810
    %1814 = vrot.lane.b32.xlu0 %v1812, 32
    %v1815 = vpop.permute.xlu0 %1814
    %v1817 = vadd.f32 %v1807, %v1815
    %v1818 = vtanh.pop %v1817
    %1820 = vrot.lane.b32.xlu0 %v1818, 64
    %v1821 = vpop.permute.xlu0 %1820
    %v1823 = vmul.f32 %v1805, %v1821
    %s1824 = sld [smem:[#allocation2 + $0x15]]
    %s1825 = scalar_lea.vmem [#allocation6], 21
    %v1826 = vld [vmem:[%s1825] sm:$0x1]
    %1828 = vrot.lane.b32.xlu0 %v1823, 64
    %v1829 = vpop.permute.xlu0 %1828
    %v1831 = vsel %vm144, %v1826, %v1829
    %s1832 = smul.u32 %s1824, 64
    %s1833 = scalar_lea.vmem [#allocation7], %s1832
    %v1834 = vld [vmem:[%s1833] sm:$0xff]
    %v1835 = vld [vmem:[%s1833 + $0x8] sm:$0xff]
    %v1836 = vld [vmem:[%s1833 + $0x10] sm:$0xff]
    %v1837 = vld [vmem:[%s1833 + $0x18] sm:$0xff]
    %v1838 = vld [vmem:[%s1833 + $0x20] sm:$0xff]
    %v1839 = vld [vmem:[%s1833 + $0x28] sm:$0xff]
    %v1840 = vld [vmem:[%s1833 + $0x30] sm:$0xff]
    %v1841 = vld [vmem:[%s1833 + $0x38] sm:$0xff]
    %s1842 = scalar_lea.vmem [#allocation9], %s1824
    %v1843 = vld [vmem:[%s1842] sm:$0x1]
    %v1845 = vsel %vm158, %v1831, 0
    %1847 = vmatpush.msra.mxu0 0.0
    %1848 = vmatpush.msra.mxu0 0.0
    %1849 = vmatpush.msra.mxu0 0.0
    %1850 = vmatpush.msra.mxu0 0.0
    %1851 = vmatpush.msra.mxu0 0.0
    %1852 = vmatpush.msra.mxu0 0.0
    %1853 = vmatpush.msra.mxu0 0.0
    %1854 = vmatpush.msra.mxu0 0.0
    %1855 = vmatpush.msra.mxu0 %v1841
    %1856 = vmatpush.msra.mxu0 %v1840
    %1857 = vmatpush.msra.mxu0 %v1839
    %1858 = vmatpush.msra.mxu0 %v1838
    %1859 = vmatpush.msra.mxu0 %v1837
    %1860 = vmatpush.msra.mxu0 %v1836
    %1861 = vmatpush.msra.mxu0 %v1835
    %1862 = vmatpush.msra.mxu0 %v1834
    %1863 = vmatmul.f32.gmra.mxu0 %v1845
    %v1864 = vpop.f32.mrf.mxu0
    %v1865 = vadd.f32 %v1843, %v1864
    %1866 = vdwg.mxu0
    %v1867 = vxor.u32 %v1865, 2147483648
    %v1868 = vmul.f32 %v1867, 1.442695
    %v1869 = vpow.pop %v1868
    %v1870 = vadd.f32 %v1869, 1.0
    %v1871 = vrcp.pop %v1870
    %v1872 = vmul.f32 %v1870, %v1871
    %v1873 = vsub.f32 1.0, %v1872
    %v1874 = vmul.f32 %v1871, %v1873
    %v1875 = vadd.f32 %v1871, %v1874
    %vm1876 = vweird.f32 %v1870
    %vm1877 = vweird.f32 %v1871
    %vm1878 = vmor %vm1876, %vm1877
    %v1879 = vsel %vm1878, %v1871, %v1875
    %v1880 = vand.u32 2147483647, %v1870
    %vm1881 = vcmp.eq.f32.partialorder %v1880, 8.507059e+37
    %v1882 = vand.u32 %v1870, 2147483648
    %v1883 = vor.u32 1.1754944e-38, %v1882
    %v1884 = vsel %vm1881, %v1883, %v1879
    %v1885 = vmul.f32 1.0, %v1884
    %v1886 = vtanh.pop %v1865
    %v1887 = vmul.f32 %v1885, %v1817
    %1889 = vrot.lane.b32.xlu0 %v1886, 64
    %v1890 = vpop.permute.xlu0 %1889
    %v1892 = vmul.f32 %v1885, %v1890
    %1894 = vrot.lane.b32.xlu0 %v1892, 32
    %v1895 = vpop.permute.xlu0 %1894
    %v1897 = vadd.f32 %v1887, %v1895
    %v1898 = vtanh.pop %v1897
    %1900 = vrot.lane.b32.xlu0 %v1898, 64
    %v1901 = vpop.permute.xlu0 %1900
    %v1903 = vmul.f32 %v1885, %v1901
    %s1904 = sld [smem:[#allocation2 + $0x16]]
    %s1905 = scalar_lea.vmem [#allocation6], 22
    %v1906 = vld [vmem:[%s1905] sm:$0x1]
    %1908 = vrot.lane.b32.xlu0 %v1903, 64
    %v1909 = vpop.permute.xlu0 %1908
    %v1911 = vsel %vm144, %v1906, %v1909
    %s1912 = smul.u32 %s1904, 64
    %s1913 = scalar_lea.vmem [#allocation7], %s1912
    %v1914 = vld [vmem:[%s1913] sm:$0xff]
    %v1915 = vld [vmem:[%s1913 + $0x8] sm:$0xff]
    %v1916 = vld [vmem:[%s1913 + $0x10] sm:$0xff]
    %v1917 = vld [vmem:[%s1913 + $0x18] sm:$0xff]
    %v1918 = vld [vmem:[%s1913 + $0x20] sm:$0xff]
    %v1919 = vld [vmem:[%s1913 + $0x28] sm:$0xff]
    %v1920 = vld [vmem:[%s1913 + $0x30] sm:$0xff]
    %v1921 = vld [vmem:[%s1913 + $0x38] sm:$0xff]
    %s1922 = scalar_lea.vmem [#allocation9], %s1904
    %v1923 = vld [vmem:[%s1922] sm:$0x1]
    %v1925 = vsel %vm158, %v1911, 0
    %1927 = vmatpush.msra.mxu0 0.0
    %1928 = vmatpush.msra.mxu0 0.0
    %1929 = vmatpush.msra.mxu0 0.0
    %1930 = vmatpush.msra.mxu0 0.0
    %1931 = vmatpush.msra.mxu0 0.0
    %1932 = vmatpush.msra.mxu0 0.0
    %1933 = vmatpush.msra.mxu0 0.0
    %1934 = vmatpush.msra.mxu0 0.0
    %1935 = vmatpush.msra.mxu0 %v1921
    %1936 = vmatpush.msra.mxu0 %v1920
    %1937 = vmatpush.msra.mxu0 %v1919
    %1938 = vmatpush.msra.mxu0 %v1918
    %1939 = vmatpush.msra.mxu0 %v1917
    %1940 = vmatpush.msra.mxu0 %v1916
    %1941 = vmatpush.msra.mxu0 %v1915
    %1942 = vmatpush.msra.mxu0 %v1914
    %1943 = vmatmul.f32.gmra.mxu0 %v1925
    %v1944 = vpop.f32.mrf.mxu0
    %v1945 = vadd.f32 %v1923, %v1944
    %1946 = vdwg.mxu0
    %v1947 = vxor.u32 %v1945, 2147483648
    %v1948 = vmul.f32 %v1947, 1.442695
    %v1949 = vpow.pop %v1948
    %v1950 = vadd.f32 %v1949, 1.0
    %v1951 = vrcp.pop %v1950
    %v1952 = vmul.f32 %v1950, %v1951
    %v1953 = vsub.f32 1.0, %v1952
    %v1954 = vmul.f32 %v1951, %v1953
    %v1955 = vadd.f32 %v1951, %v1954
    %vm1956 = vweird.f32 %v1950
    %vm1957 = vweird.f32 %v1951
    %vm1958 = vmor %vm1956, %vm1957
    %v1959 = vsel %vm1958, %v1951, %v1955
    %v1960 = vand.u32 2147483647, %v1950
    %vm1961 = vcmp.eq.f32.partialorder %v1960, 8.507059e+37
    %v1962 = vand.u32 %v1950, 2147483648
    %v1963 = vor.u32 1.1754944e-38, %v1962
    %v1964 = vsel %vm1961, %v1963, %v1959
    %v1965 = vmul.f32 1.0, %v1964
    %v1966 = vtanh.pop %v1945
    %v1967 = vmul.f32 %v1965, %v1897
    %1969 = vrot.lane.b32.xlu0 %v1966, 64
    %v1970 = vpop.permute.xlu0 %1969
    %v1972 = vmul.f32 %v1965, %v1970
    %1974 = vrot.lane.b32.xlu0 %v1972, 32
    %v1975 = vpop.permute.xlu0 %1974
    %v1977 = vadd.f32 %v1967, %v1975
    %v1978 = vtanh.pop %v1977
    %1980 = vrot.lane.b32.xlu0 %v1978, 64
    %v1981 = vpop.permute.xlu0 %1980
    %v1983 = vmul.f32 %v1965, %v1981
    %s1984 = sld [smem:[#allocation2 + $0x17]]
    %s1985 = scalar_lea.vmem [#allocation6], 23
    %v1986 = vld [vmem:[%s1985] sm:$0x1]
    %1988 = vrot.lane.b32.xlu0 %v1983, 64
    %v1989 = vpop.permute.xlu0 %1988
    %v1991 = vsel %vm144, %v1986, %v1989
    %s1992 = smul.u32 %s1984, 64
    %s1993 = scalar_lea.vmem [#allocation7], %s1992
    %v1994 = vld [vmem:[%s1993] sm:$0xff]
    %v1995 = vld [vmem:[%s1993 + $0x8] sm:$0xff]
    %v1996 = vld [vmem:[%s1993 + $0x10] sm:$0xff]
    %v1997 = vld [vmem:[%s1993 + $0x18] sm:$0xff]
    %v1998 = vld [vmem:[%s1993 + $0x20] sm:$0xff]
    %v1999 = vld [vmem:[%s1993 + $0x28] sm:$0xff]
    %v2000 = vld [vmem:[%s1993 + $0x30] sm:$0xff]
    %v2001 = vld [vmem:[%s1993 + $0x38] sm:$0xff]
    %s2002 = scalar_lea.vmem [#allocation9], %s1984
    %v2003 = vld [vmem:[%s2002] sm:$0x1]
    %v2005 = vsel %vm158, %v1991, 0
    %2007 = vmatpush.msra.mxu0 0.0
    %2008 = vmatpush.msra.mxu0 0.0
    %2009 = vmatpush.msra.mxu0 0.0
    %2010 = vmatpush.msra.mxu0 0.0
    %2011 = vmatpush.msra.mxu0 0.0
    %2012 = vmatpush.msra.mxu0 0.0
    %2013 = vmatpush.msra.mxu0 0.0
    %2014 = vmatpush.msra.mxu0 0.0
    %2015 = vmatpush.msra.mxu0 %v2001
    %2016 = vmatpush.msra.mxu0 %v2000
    %2017 = vmatpush.msra.mxu0 %v1999
    %2018 = vmatpush.msra.mxu0 %v1998
    %2019 = vmatpush.msra.mxu0 %v1997
    %2020 = vmatpush.msra.mxu0 %v1996
    %2021 = vmatpush.msra.mxu0 %v1995
    %2022 = vmatpush.msra.mxu0 %v1994
    %2023 = vmatmul.f32.gmra.mxu0 %v2005
    %v2024 = vpop.f32.mrf.mxu0
    %v2025 = vadd.f32 %v2003, %v2024
    %2026 = vdwg.mxu0
    %v2027 = vxor.u32 %v2025, 2147483648
    %v2028 = vmul.f32 %v2027, 1.442695
    %v2029 = vpow.pop %v2028
    %v2030 = vadd.f32 %v2029, 1.0
    %v2031 = vrcp.pop %v2030
    %v2032 = vmul.f32 %v2030, %v2031
    %v2033 = vsub.f32 1.0, %v2032
    %v2034 = vmul.f32 %v2031, %v2033
    %v2035 = vadd.f32 %v2031, %v2034
    %vm2036 = vweird.f32 %v2030
    %vm2037 = vweird.f32 %v2031
    %vm2038 = vmor %vm2036, %vm2037
    %v2039 = vsel %vm2038, %v2031, %v2035
    %v2040 = vand.u32 2147483647, %v2030
    %vm2041 = vcmp.eq.f32.partialorder %v2040, 8.507059e+37
    %v2042 = vand.u32 %v2030, 2147483648
    %v2043 = vor.u32 1.1754944e-38, %v2042
    %v2044 = vsel %vm2041, %v2043, %v2039
    %v2045 = vmul.f32 1.0, %v2044
    %v2046 = vtanh.pop %v2025
    %v2047 = vmul.f32 %v2045, %v1977
    %2049 = vrot.lane.b32.xlu0 %v2046, 64
    %v2050 = vpop.permute.xlu0 %2049
    %v2052 = vmul.f32 %v2045, %v2050
    %2054 = vrot.lane.b32.xlu0 %v2052, 32
    %v2055 = vpop.permute.xlu0 %2054
    %v2057 = vadd.f32 %v2047, %v2055
    %v2058 = vtanh.pop %v2057
    %2060 = vrot.lane.b32.xlu0 %v2058, 64
    %v2061 = vpop.permute.xlu0 %2060
    %v2063 = vmul.f32 %v2045, %v2061
    %s2064 = sld [smem:[#allocation2 + $0x18]]
    %s2065 = scalar_lea.vmem [#allocation6], 24
    %v2066 = vld [vmem:[%s2065] sm:$0x1]
    %2068 = vrot.lane.b32.xlu0 %v2063, 64
    %v2069 = vpop.permute.xlu0 %2068
    %v2071 = vsel %vm144, %v2066, %v2069
    %s2072 = smul.u32 %s2064, 64
    %s2073 = scalar_lea.vmem [#allocation7], %s2072
    %v2074 = vld [vmem:[%s2073] sm:$0xff]
    %v2075 = vld [vmem:[%s2073 + $0x8] sm:$0xff]
    %v2076 = vld [vmem:[%s2073 + $0x10] sm:$0xff]
    %v2077 = vld [vmem:[%s2073 + $0x18] sm:$0xff]
    %v2078 = vld [vmem:[%s2073 + $0x20] sm:$0xff]
    %v2079 = vld [vmem:[%s2073 + $0x28] sm:$0xff]
    %v2080 = vld [vmem:[%s2073 + $0x30] sm:$0xff]
    %v2081 = vld [vmem:[%s2073 + $0x38] sm:$0xff]
    %s2082 = scalar_lea.vmem [#allocation9], %s2064
    %v2083 = vld [vmem:[%s2082] sm:$0x1]
    %v2085 = vsel %vm158, %v2071, 0
    %2087 = vmatpush.msra.mxu0 0.0
    %2088 = vmatpush.msra.mxu0 0.0
    %2089 = vmatpush.msra.mxu0 0.0
    %2090 = vmatpush.msra.mxu0 0.0
    %2091 = vmatpush.msra.mxu0 0.0
    %2092 = vmatpush.msra.mxu0 0.0
    %2093 = vmatpush.msra.mxu0 0.0
    %2094 = vmatpush.msra.mxu0 0.0
    %2095 = vmatpush.msra.mxu0 %v2081
    %2096 = vmatpush.msra.mxu0 %v2080
    %2097 = vmatpush.msra.mxu0 %v2079
    %2098 = vmatpush.msra.mxu0 %v2078
    %2099 = vmatpush.msra.mxu0 %v2077
    %2100 = vmatpush.msra.mxu0 %v2076
    %2101 = vmatpush.msra.mxu0 %v2075
    %2102 = vmatpush.msra.mxu0 %v2074
    %2103 = vmatmul.f32.gmra.mxu0 %v2085
    %v2104 = vpop.f32.mrf.mxu0
    %v2105 = vadd.f32 %v2083, %v2104
    %2106 = vdwg.mxu0
    %v2107 = vxor.u32 %v2105, 2147483648
    %v2108 = vmul.f32 %v2107, 1.442695
    %v2109 = vpow.pop %v2108
    %v2110 = vadd.f32 %v2109, 1.0
    %v2111 = vrcp.pop %v2110
    %v2112 = vmul.f32 %v2110, %v2111
    %v2113 = vsub.f32 1.0, %v2112
    %v2114 = vmul.f32 %v2111, %v2113
    %v2115 = vadd.f32 %v2111, %v2114
    %vm2116 = vweird.f32 %v2110
    %vm2117 = vweird.f32 %v2111
    %vm2118 = vmor %vm2116, %vm2117
    %v2119 = vsel %vm2118, %v2111, %v2115
    %v2120 = vand.u32 2147483647, %v2110
    %vm2121 = vcmp.eq.f32.partialorder %v2120, 8.507059e+37
    %v2122 = vand.u32 %v2110, 2147483648
    %v2123 = vor.u32 1.1754944e-38, %v2122
    %v2124 = vsel %vm2121, %v2123, %v2119
    %v2125 = vmul.f32 1.0, %v2124
    %v2126 = vtanh.pop %v2105
    %v2127 = vmul.f32 %v2125, %v2057
    %2129 = vrot.lane.b32.xlu0 %v2126, 64
    %v2130 = vpop.permute.xlu0 %2129
    %v2132 = vmul.f32 %v2125, %v2130
    %2134 = vrot.lane.b32.xlu0 %v2132, 32
    %v2135 = vpop.permute.xlu0 %2134
    %v2137 = vadd.f32 %v2127, %v2135
    %v2138 = vtanh.pop %v2137
    %2140 = vrot.lane.b32.xlu0 %v2138, 64
    %v2141 = vpop.permute.xlu0 %2140
    %v2143 = vmul.f32 %v2125, %v2141
    %s2144 = sld [smem:[#allocation2 + $0x19]]
    %s2145 = scalar_lea.vmem [#allocation6], 25
    %v2146 = vld [vmem:[%s2145] sm:$0x1]
    %2148 = vrot.lane.b32.xlu0 %v2143, 64
    %v2149 = vpop.permute.xlu0 %2148
    %v2151 = vsel %vm144, %v2146, %v2149
    %s2152 = smul.u32 %s2144, 64
    %s2153 = scalar_lea.vmem [#allocation7], %s2152
    %v2154 = vld [vmem:[%s2153] sm:$0xff]
    %v2155 = vld [vmem:[%s2153 + $0x8] sm:$0xff]
    %v2156 = vld [vmem:[%s2153 + $0x10] sm:$0xff]
    %v2157 = vld [vmem:[%s2153 + $0x18] sm:$0xff]
    %v2158 = vld [vmem:[%s2153 + $0x20] sm:$0xff]
    %v2159 = vld [vmem:[%s2153 + $0x28] sm:$0xff]
    %v2160 = vld [vmem:[%s2153 + $0x30] sm:$0xff]
    %v2161 = vld [vmem:[%s2153 + $0x38] sm:$0xff]
    %s2162 = scalar_lea.vmem [#allocation9], %s2144
    %v2163 = vld [vmem:[%s2162] sm:$0x1]
    %v2165 = vsel %vm158, %v2151, 0
    %2167 = vmatpush.msra.mxu0 0.0
    %2168 = vmatpush.msra.mxu0 0.0
    %2169 = vmatpush.msra.mxu0 0.0
    %2170 = vmatpush.msra.mxu0 0.0
    %2171 = vmatpush.msra.mxu0 0.0
    %2172 = vmatpush.msra.mxu0 0.0
    %2173 = vmatpush.msra.mxu0 0.0
    %2174 = vmatpush.msra.mxu0 0.0
    %2175 = vmatpush.msra.mxu0 %v2161
    %2176 = vmatpush.msra.mxu0 %v2160
    %2177 = vmatpush.msra.mxu0 %v2159
    %2178 = vmatpush.msra.mxu0 %v2158
    %2179 = vmatpush.msra.mxu0 %v2157
    %2180 = vmatpush.msra.mxu0 %v2156
    %2181 = vmatpush.msra.mxu0 %v2155
    %2182 = vmatpush.msra.mxu0 %v2154
    %2183 = vmatmul.f32.gmra.mxu0 %v2165
    %v2184 = vpop.f32.mrf.mxu0
    %v2185 = vadd.f32 %v2163, %v2184
    %2186 = vdwg.mxu0
    %v2187 = vxor.u32 %v2185, 2147483648
    %v2188 = vmul.f32 %v2187, 1.442695
    %v2189 = vpow.pop %v2188
    %v2190 = vadd.f32 %v2189, 1.0
    %v2191 = vrcp.pop %v2190
    %v2192 = vmul.f32 %v2190, %v2191
    %v2193 = vsub.f32 1.0, %v2192
    %v2194 = vmul.f32 %v2191, %v2193
    %v2195 = vadd.f32 %v2191, %v2194
    %vm2196 = vweird.f32 %v2190
    %vm2197 = vweird.f32 %v2191
    %vm2198 = vmor %vm2196, %vm2197
    %v2199 = vsel %vm2198, %v2191, %v2195
    %v2200 = vand.u32 2147483647, %v2190
    %vm2201 = vcmp.eq.f32.partialorder %v2200, 8.507059e+37
    %v2202 = vand.u32 %v2190, 2147483648
    %v2203 = vor.u32 1.1754944e-38, %v2202
    %v2204 = vsel %vm2201, %v2203, %v2199
    %v2205 = vmul.f32 1.0, %v2204
    %v2206 = vtanh.pop %v2185
    %v2207 = vmul.f32 %v2205, %v2137
    %2209 = vrot.lane.b32.xlu0 %v2206, 64
    %v2210 = vpop.permute.xlu0 %2209
    %v2212 = vmul.f32 %v2205, %v2210
    %2214 = vrot.lane.b32.xlu0 %v2212, 32
    %v2215 = vpop.permute.xlu0 %2214
    %v2217 = vadd.f32 %v2207, %v2215
    %v2218 = vtanh.pop %v2217
    %2220 = vrot.lane.b32.xlu0 %v2218, 64
    %v2221 = vpop.permute.xlu0 %2220
    %v2223 = vmul.f32 %v2205, %v2221
    %s2224 = sld [smem:[#allocation2 + $0x1a]]
    %s2225 = scalar_lea.vmem [#allocation6], 26
    %v2226 = vld [vmem:[%s2225] sm:$0x1]
    %2228 = vrot.lane.b32.xlu0 %v2223, 64
    %v2229 = vpop.permute.xlu0 %2228
    %v2231 = vsel %vm144, %v2226, %v2229
    %s2232 = smul.u32 %s2224, 64
    %s2233 = scalar_lea.vmem [#allocation7], %s2232
    %v2234 = vld [vmem:[%s2233] sm:$0xff]
    %v2235 = vld [vmem:[%s2233 + $0x8] sm:$0xff]
    %v2236 = vld [vmem:[%s2233 + $0x10] sm:$0xff]
    %v2237 = vld [vmem:[%s2233 + $0x18] sm:$0xff]
    %v2238 = vld [vmem:[%s2233 + $0x20] sm:$0xff]
    %v2239 = vld [vmem:[%s2233 + $0x28] sm:$0xff]
    %v2240 = vld [vmem:[%s2233 + $0x30] sm:$0xff]
    %v2241 = vld [vmem:[%s2233 + $0x38] sm:$0xff]
    %s2242 = scalar_lea.vmem [#allocation9], %s2224
    %v2243 = vld [vmem:[%s2242] sm:$0x1]
    %v2245 = vsel %vm158, %v2231, 0
    %2247 = vmatpush.msra.mxu0 0.0
    %2248 = vmatpush.msra.mxu0 0.0
    %2249 = vmatpush.msra.mxu0 0.0
    %2250 = vmatpush.msra.mxu0 0.0
    %2251 = vmatpush.msra.mxu0 0.0
    %2252 = vmatpush.msra.mxu0 0.0
    %2253 = vmatpush.msra.mxu0 0.0
    %2254 = vmatpush.msra.mxu0 0.0
    %2255 = vmatpush.msra.mxu0 %v2241
    %2256 = vmatpush.msra.mxu0 %v2240
    %2257 = vmatpush.msra.mxu0 %v2239
    %2258 = vmatpush.msra.mxu0 %v2238
    %2259 = vmatpush.msra.mxu0 %v2237
    %2260 = vmatpush.msra.mxu0 %v2236
    %2261 = vmatpush.msra.mxu0 %v2235
    %2262 = vmatpush.msra.mxu0 %v2234
    %2263 = vmatmul.f32.gmra.mxu0 %v2245
    %v2264 = vpop.f32.mrf.mxu0
    %v2265 = vadd.f32 %v2243, %v2264
    %2266 = vdwg.mxu0
    %v2267 = vxor.u32 %v2265, 2147483648
    %v2268 = vmul.f32 %v2267, 1.442695
    %v2269 = vpow.pop %v2268
    %v2270 = vadd.f32 %v2269, 1.0
    %v2271 = vrcp.pop %v2270
    %v2272 = vmul.f32 %v2270, %v2271
    %v2273 = vsub.f32 1.0, %v2272
    %v2274 = vmul.f32 %v2271, %v2273
    %v2275 = vadd.f32 %v2271, %v2274
    %vm2276 = vweird.f32 %v2270
    %vm2277 = vweird.f32 %v2271
    %vm2278 = vmor %vm2276, %vm2277
    %v2279 = vsel %vm2278, %v2271, %v2275
    %v2280 = vand.u32 2147483647, %v2270
    %vm2281 = vcmp.eq.f32.partialorder %v2280, 8.507059e+37
    %v2282 = vand.u32 %v2270, 2147483648
    %v2283 = vor.u32 1.1754944e-38, %v2282
    %v2284 = vsel %vm2281, %v2283, %v2279
    %v2285 = vmul.f32 1.0, %v2284
    %v2286 = vtanh.pop %v2265
    %v2287 = vmul.f32 %v2285, %v2217
    %2289 = vrot.lane.b32.xlu0 %v2286, 64
    %v2290 = vpop.permute.xlu0 %2289
    %v2292 = vmul.f32 %v2285, %v2290
    %2294 = vrot.lane.b32.xlu0 %v2292, 32
    %v2295 = vpop.permute.xlu0 %2294
    %v2297 = vadd.f32 %v2287, %v2295
    %v2298 = vtanh.pop %v2297
    %2300 = vrot.lane.b32.xlu0 %v2298, 64
    %v2301 = vpop.permute.xlu0 %2300
    %v2303 = vmul.f32 %v2285, %v2301
    %s2304 = sld [smem:[#allocation2 + $0x1b]]
    %s2305 = scalar_lea.vmem [#allocation6], 27
    %v2306 = vld [vmem:[%s2305] sm:$0x1]
    %2308 = vrot.lane.b32.xlu0 %v2303, 64
    %v2309 = vpop.permute.xlu0 %2308
    %v2311 = vsel %vm144, %v2306, %v2309
    %s2312 = smul.u32 %s2304, 64
    %s2313 = scalar_lea.vmem [#allocation7], %s2312
    %v2314 = vld [vmem:[%s2313] sm:$0xff]
    %v2315 = vld [vmem:[%s2313 + $0x8] sm:$0xff]
    %v2316 = vld [vmem:[%s2313 + $0x10] sm:$0xff]
    %v2317 = vld [vmem:[%s2313 + $0x18] sm:$0xff]
    %v2318 = vld [vmem:[%s2313 + $0x20] sm:$0xff]
    %v2319 = vld [vmem:[%s2313 + $0x28] sm:$0xff]
    %v2320 = vld [vmem:[%s2313 + $0x30] sm:$0xff]
    %v2321 = vld [vmem:[%s2313 + $0x38] sm:$0xff]
    %s2322 = scalar_lea.vmem [#allocation9], %s2304
    %v2323 = vld [vmem:[%s2322] sm:$0x1]
    %v2325 = vsel %vm158, %v2311, 0
    %2327 = vmatpush.msra.mxu0 0.0
    %2328 = vmatpush.msra.mxu0 0.0
    %2329 = vmatpush.msra.mxu0 0.0
    %2330 = vmatpush.msra.mxu0 0.0
    %2331 = vmatpush.msra.mxu0 0.0
    %2332 = vmatpush.msra.mxu0 0.0
    %2333 = vmatpush.msra.mxu0 0.0
    %2334 = vmatpush.msra.mxu0 0.0
    %2335 = vmatpush.msra.mxu0 %v2321
    %2336 = vmatpush.msra.mxu0 %v2320
    %2337 = vmatpush.msra.mxu0 %v2319
    %2338 = vmatpush.msra.mxu0 %v2318
    %2339 = vmatpush.msra.mxu0 %v2317
    %2340 = vmatpush.msra.mxu0 %v2316
    %2341 = vmatpush.msra.mxu0 %v2315
    %2342 = vmatpush.msra.mxu0 %v2314
    %2343 = vmatmul.f32.gmra.mxu0 %v2325
    %v2344 = vpop.f32.mrf.mxu0
    %v2345 = vadd.f32 %v2323, %v2344
    %2346 = vdwg.mxu0
    %v2347 = vxor.u32 %v2345, 2147483648
    %v2348 = vmul.f32 %v2347, 1.442695
    %v2349 = vpow.pop %v2348
    %v2350 = vadd.f32 %v2349, 1.0
    %v2351 = vrcp.pop %v2350
    %v2352 = vmul.f32 %v2350, %v2351
    %v2353 = vsub.f32 1.0, %v2352
    %v2354 = vmul.f32 %v2351, %v2353
    %v2355 = vadd.f32 %v2351, %v2354
    %vm2356 = vweird.f32 %v2350
    %vm2357 = vweird.f32 %v2351
    %vm2358 = vmor %vm2356, %vm2357
    %v2359 = vsel %vm2358, %v2351, %v2355
    %v2360 = vand.u32 2147483647, %v2350
    %vm2361 = vcmp.eq.f32.partialorder %v2360, 8.507059e+37
    %v2362 = vand.u32 %v2350, 2147483648
    %v2363 = vor.u32 1.1754944e-38, %v2362
    %v2364 = vsel %vm2361, %v2363, %v2359
    %v2365 = vmul.f32 1.0, %v2364
    %v2366 = vtanh.pop %v2345
    %v2367 = vmul.f32 %v2365, %v2297
    %2369 = vrot.lane.b32.xlu0 %v2366, 64
    %v2370 = vpop.permute.xlu0 %2369
    %v2372 = vmul.f32 %v2365, %v2370
    %2374 = vrot.lane.b32.xlu0 %v2372, 32
    %v2375 = vpop.permute.xlu0 %2374
    %v2377 = vadd.f32 %v2367, %v2375
    %v2378 = vtanh.pop %v2377
    %2380 = vrot.lane.b32.xlu0 %v2378, 64
    %v2381 = vpop.permute.xlu0 %2380
    %v2383 = vmul.f32 %v2365, %v2381
    %s2384 = sld [smem:[#allocation2 + $0x1c]]
    %s2385 = scalar_lea.vmem [#allocation6], 28
    %v2386 = vld [vmem:[%s2385] sm:$0x1]
    %2388 = vrot.lane.b32.xlu0 %v2383, 64
    %v2389 = vpop.permute.xlu0 %2388
    %v2391 = vsel %vm144, %v2386, %v2389
    %s2392 = smul.u32 %s2384, 64
    %s2393 = scalar_lea.vmem [#allocation7], %s2392
    %v2394 = vld [vmem:[%s2393] sm:$0xff]
    %v2395 = vld [vmem:[%s2393 + $0x8] sm:$0xff]
    %v2396 = vld [vmem:[%s2393 + $0x10] sm:$0xff]
    %v2397 = vld [vmem:[%s2393 + $0x18] sm:$0xff]
    %v2398 = vld [vmem:[%s2393 + $0x20] sm:$0xff]
    %v2399 = vld [vmem:[%s2393 + $0x28] sm:$0xff]
    %v2400 = vld [vmem:[%s2393 + $0x30] sm:$0xff]
    %v2401 = vld [vmem:[%s2393 + $0x38] sm:$0xff]
    %s2402 = scalar_lea.vmem [#allocation9], %s2384
    %v2403 = vld [vmem:[%s2402] sm:$0x1]
    %v2405 = vsel %vm158, %v2391, 0
    %2407 = vmatpush.msra.mxu0 0.0
    %2408 = vmatpush.msra.mxu0 0.0
    %2409 = vmatpush.msra.mxu0 0.0
    %2410 = vmatpush.msra.mxu0 0.0
    %2411 = vmatpush.msra.mxu0 0.0
    %2412 = vmatpush.msra.mxu0 0.0
    %2413 = vmatpush.msra.mxu0 0.0
    %2414 = vmatpush.msra.mxu0 0.0
    %2415 = vmatpush.msra.mxu0 %v2401
    %2416 = vmatpush.msra.mxu0 %v2400
    %2417 = vmatpush.msra.mxu0 %v2399
    %2418 = vmatpush.msra.mxu0 %v2398
    %2419 = vmatpush.msra.mxu0 %v2397
    %2420 = vmatpush.msra.mxu0 %v2396
    %2421 = vmatpush.msra.mxu0 %v2395
    %2422 = vmatpush.msra.mxu0 %v2394
    %2423 = vmatmul.f32.gmra.mxu0 %v2405
    %v2424 = vpop.f32.mrf.mxu0
    %v2425 = vadd.f32 %v2403, %v2424
    %2426 = vdwg.mxu0
    %v2427 = vxor.u32 %v2425, 2147483648
    %v2428 = vmul.f32 %v2427, 1.442695
    %v2429 = vpow.pop %v2428
    %v2430 = vadd.f32 %v2429, 1.0
    %v2431 = vrcp.pop %v2430
    %v2432 = vmul.f32 %v2430, %v2431
    %v2433 = vsub.f32 1.0, %v2432
    %v2434 = vmul.f32 %v2431, %v2433
    %v2435 = vadd.f32 %v2431, %v2434
    %vm2436 = vweird.f32 %v2430
    %vm2437 = vweird.f32 %v2431
    %vm2438 = vmor %vm2436, %vm2437
    %v2439 = vsel %vm2438, %v2431, %v2435
    %v2440 = vand.u32 2147483647, %v2430
    %vm2441 = vcmp.eq.f32.partialorder %v2440, 8.507059e+37
    %v2442 = vand.u32 %v2430, 2147483648
    %v2443 = vor.u32 1.1754944e-38, %v2442
    %v2444 = vsel %vm2441, %v2443, %v2439
    %v2445 = vmul.f32 1.0, %v2444
    %v2446 = vtanh.pop %v2425
    %v2447 = vmul.f32 %v2445, %v2377
    %2449 = vrot.lane.b32.xlu0 %v2446, 64
    %v2450 = vpop.permute.xlu0 %2449
    %v2452 = vmul.f32 %v2445, %v2450
    %2454 = vrot.lane.b32.xlu0 %v2452, 32
    %v2455 = vpop.permute.xlu0 %2454
    %v2457 = vadd.f32 %v2447, %v2455
    %v2458 = vtanh.pop %v2457
    %2460 = vrot.lane.b32.xlu0 %v2458, 64
    %v2461 = vpop.permute.xlu0 %2460
    %v2463 = vmul.f32 %v2445, %v2461
    %s2464 = sld [smem:[#allocation2 + $0x1d]]
    %s2465 = scalar_lea.vmem [#allocation6], 29
    %v2466 = vld [vmem:[%s2465] sm:$0x1]
    %2468 = vrot.lane.b32.xlu0 %v2463, 64
    %v2469 = vpop.permute.xlu0 %2468
    %v2471 = vsel %vm144, %v2466, %v2469
    %s2472 = smul.u32 %s2464, 64
    %s2473 = scalar_lea.vmem [#allocation7], %s2472
    %v2474 = vld [vmem:[%s2473] sm:$0xff]
    %v2475 = vld [vmem:[%s2473 + $0x8] sm:$0xff]
    %v2476 = vld [vmem:[%s2473 + $0x10] sm:$0xff]
    %v2477 = vld [vmem:[%s2473 + $0x18] sm:$0xff]
    %v2478 = vld [vmem:[%s2473 + $0x20] sm:$0xff]
    %v2479 = vld [vmem:[%s2473 + $0x28] sm:$0xff]
    %v2480 = vld [vmem:[%s2473 + $0x30] sm:$0xff]
    %v2481 = vld [vmem:[%s2473 + $0x38] sm:$0xff]
    %s2482 = scalar_lea.vmem [#allocation9], %s2464
    %v2483 = vld [vmem:[%s2482] sm:$0x1]
    %v2485 = vsel %vm158, %v2471, 0
    %2487 = vmatpush.msra.mxu0 0.0
    %2488 = vmatpush.msra.mxu0 0.0
    %2489 = vmatpush.msra.mxu0 0.0
    %2490 = vmatpush.msra.mxu0 0.0
    %2491 = vmatpush.msra.mxu0 0.0
    %2492 = vmatpush.msra.mxu0 0.0
    %2493 = vmatpush.msra.mxu0 0.0
    %2494 = vmatpush.msra.mxu0 0.0
    %2495 = vmatpush.msra.mxu0 %v2481
    %2496 = vmatpush.msra.mxu0 %v2480
    %2497 = vmatpush.msra.mxu0 %v2479
    %2498 = vmatpush.msra.mxu0 %v2478
    %2499 = vmatpush.msra.mxu0 %v2477
    %2500 = vmatpush.msra.mxu0 %v2476
    %2501 = vmatpush.msra.mxu0 %v2475
    %2502 = vmatpush.msra.mxu0 %v2474
    %2503 = vmatmul.f32.gmra.mxu0 %v2485
    %v2504 = vpop.f32.mrf.mxu0
    %v2505 = vadd.f32 %v2483, %v2504
    %2506 = vdwg.mxu0
    %v2507 = vxor.u32 %v2505, 2147483648
    %v2508 = vmul.f32 %v2507, 1.442695
    %v2509 = vpow.pop %v2508
    %v2510 = vadd.f32 %v2509, 1.0
    %v2511 = vrcp.pop %v2510
    %v2512 = vmul.f32 %v2510, %v2511
    %v2513 = vsub.f32 1.0, %v2512
    %v2514 = vmul.f32 %v2511, %v2513
    %v2515 = vadd.f32 %v2511, %v2514
    %vm2516 = vweird.f32 %v2510
    %vm2517 = vweird.f32 %v2511
    %vm2518 = vmor %vm2516, %vm2517
    %v2519 = vsel %vm2518, %v2511, %v2515
    %v2520 = vand.u32 2147483647, %v2510
    %vm2521 = vcmp.eq.f32.partialorder %v2520, 8.507059e+37
    %v2522 = vand.u32 %v2510, 2147483648
    %v2523 = vor.u32 1.1754944e-38, %v2522
    %v2524 = vsel %vm2521, %v2523, %v2519
    %v2525 = vmul.f32 1.0, %v2524
    %v2526 = vtanh.pop %v2505
    %v2527 = vmul.f32 %v2525, %v2457
    %2529 = vrot.lane.b32.xlu0 %v2526, 64
    %v2530 = vpop.permute.xlu0 %2529
    %v2532 = vmul.f32 %v2525, %v2530
    %2534 = vrot.lane.b32.xlu0 %v2532, 32
    %v2535 = vpop.permute.xlu0 %2534
    %v2537 = vadd.f32 %v2527, %v2535
    %v2538 = vtanh.pop %v2537
    %2540 = vrot.lane.b32.xlu0 %v2538, 64
    %v2541 = vpop.permute.xlu0 %2540
    %v2543 = vmul.f32 %v2525, %v2541
    %s2544 = sld [smem:[#allocation2 + $0x1e]]
    %s2545 = scalar_lea.vmem [#allocation6], 30
    %v2546 = vld [vmem:[%s2545] sm:$0x1]
    %2548 = vrot.lane.b32.xlu0 %v2543, 64
    %v2549 = vpop.permute.xlu0 %2548
    %v2551 = vsel %vm144, %v2546, %v2549
    %s2552 = smul.u32 %s2544, 64
    %s2553 = scalar_lea.vmem [#allocation7], %s2552
    %v2554 = vld [vmem:[%s2553] sm:$0xff]
    %v2555 = vld [vmem:[%s2553 + $0x8] sm:$0xff]
    %v2556 = vld [vmem:[%s2553 + $0x10] sm:$0xff]
    %v2557 = vld [vmem:[%s2553 + $0x18] sm:$0xff]
    %v2558 = vld [vmem:[%s2553 + $0x20] sm:$0xff]
    %v2559 = vld [vmem:[%s2553 + $0x28] sm:$0xff]
    %v2560 = vld [vmem:[%s2553 + $0x30] sm:$0xff]
    %v2561 = vld [vmem:[%s2553 + $0x38] sm:$0xff]
    %s2562 = scalar_lea.vmem [#allocation9], %s2544
    %v2563 = vld [vmem:[%s2562] sm:$0x1]
    %v2565 = vsel %vm158, %v2551, 0
    %2567 = vmatpush.msra.mxu0 0.0
    %2568 = vmatpush.msra.mxu0 0.0
    %2569 = vmatpush.msra.mxu0 0.0
    %2570 = vmatpush.msra.mxu0 0.0
    %2571 = vmatpush.msra.mxu0 0.0
    %2572 = vmatpush.msra.mxu0 0.0
    %2573 = vmatpush.msra.mxu0 0.0
    %2574 = vmatpush.msra.mxu0 0.0
    %2575 = vmatpush.msra.mxu0 %v2561
    %2576 = vmatpush.msra.mxu0 %v2560
    %2577 = vmatpush.msra.mxu0 %v2559
    %2578 = vmatpush.msra.mxu0 %v2558
    %2579 = vmatpush.msra.mxu0 %v2557
    %2580 = vmatpush.msra.mxu0 %v2556
    %2581 = vmatpush.msra.mxu0 %v2555
    %2582 = vmatpush.msra.mxu0 %v2554
    %2583 = vmatmul.f32.gmra.mxu0 %v2565
    %v2584 = vpop.f32.mrf.mxu0
    %v2585 = vadd.f32 %v2563, %v2584
    %2586 = vdwg.mxu0
    %v2587 = vxor.u32 %v2585, 2147483648
    %v2588 = vmul.f32 %v2587, 1.442695
    %v2589 = vpow.pop %v2588
    %v2590 = vadd.f32 %v2589, 1.0
    %v2591 = vrcp.pop %v2590
    %v2592 = vmul.f32 %v2590, %v2591
    %v2593 = vsub.f32 1.0, %v2592
    %v2594 = vmul.f32 %v2591, %v2593
    %v2595 = vadd.f32 %v2591, %v2594
    %vm2596 = vweird.f32 %v2590
    %vm2597 = vweird.f32 %v2591
    %vm2598 = vmor %vm2596, %vm2597
    %v2599 = vsel %vm2598, %v2591, %v2595
    %v2600 = vand.u32 2147483647, %v2590
    %vm2601 = vcmp.eq.f32.partialorder %v2600, 8.507059e+37
    %v2602 = vand.u32 %v2590, 2147483648
    %v2603 = vor.u32 1.1754944e-38, %v2602
    %v2604 = vsel %vm2601, %v2603, %v2599
    %v2605 = vmul.f32 1.0, %v2604
    %v2606 = vtanh.pop %v2585
    %v2607 = vmul.f32 %v2605, %v2537
    %2609 = vrot.lane.b32.xlu0 %v2606, 64
    %v2610 = vpop.permute.xlu0 %2609
    %v2612 = vmul.f32 %v2605, %v2610
    %2614 = vrot.lane.b32.xlu0 %v2612, 32
    %v2615 = vpop.permute.xlu0 %2614
    %v2617 = vadd.f32 %v2607, %v2615
    %v2618 = vtanh.pop %v2617
    %2620 = vrot.lane.b32.xlu0 %v2618, 64
    %v2621 = vpop.permute.xlu0 %2620
    %v2623 = vmul.f32 %v2605, %v2621
    %s2624 = sld [smem:[#allocation2 + $0x1f]]
    %s2625 = scalar_lea.vmem [#allocation6], 31
    %v2626 = vld [vmem:[%s2625] sm:$0x1]
    %2628 = vrot.lane.b32.xlu0 %v2623, 64
    %v2629 = vpop.permute.xlu0 %2628
    %v2631 = vsel %vm144, %v2626, %v2629
    %s2632 = smul.u32 %s2624, 64
    %s2633 = scalar_lea.vmem [#allocation7], %s2632
    %v2634 = vld [vmem:[%s2633] sm:$0xff]
    %v2635 = vld [vmem:[%s2633 + $0x8] sm:$0xff]
    %v2636 = vld [vmem:[%s2633 + $0x10] sm:$0xff]
    %v2637 = vld [vmem:[%s2633 + $0x18] sm:$0xff]
    %v2638 = vld [vmem:[%s2633 + $0x20] sm:$0xff]
    %v2639 = vld [vmem:[%s2633 + $0x28] sm:$0xff]
    %v2640 = vld [vmem:[%s2633 + $0x30] sm:$0xff]
    %v2641 = vld [vmem:[%s2633 + $0x38] sm:$0xff]
    %s2642 = scalar_lea.vmem [#allocation9], %s2624
    %v2643 = vld [vmem:[%s2642] sm:$0x1]
    %v2645 = vsel %vm158, %v2631, 0
    %2647 = vmatpush.msra.mxu0 0.0
    %2648 = vmatpush.msra.mxu0 0.0
    %2649 = vmatpush.msra.mxu0 0.0
    %2650 = vmatpush.msra.mxu0 0.0
    %2651 = vmatpush.msra.mxu0 0.0
    %2652 = vmatpush.msra.mxu0 0.0
    %2653 = vmatpush.msra.mxu0 0.0
    %2654 = vmatpush.msra.mxu0 0.0
    %2655 = vmatpush.msra.mxu0 %v2641
    %2656 = vmatpush.msra.mxu0 %v2640
    %2657 = vmatpush.msra.mxu0 %v2639
    %2658 = vmatpush.msra.mxu0 %v2638
    %2659 = vmatpush.msra.mxu0 %v2637
    %2660 = vmatpush.msra.mxu0 %v2636
    %2661 = vmatpush.msra.mxu0 %v2635
    %2662 = vmatpush.msra.mxu0 %v2634
    %2663 = vmatmul.f32.gmra.mxu0 %v2645
    %v2664 = vpop.f32.mrf.mxu0
    %v2665 = vadd.f32 %v2643, %v2664
    %2666 = vdwg.mxu0
    %v2667 = vxor.u32 %v2665, 2147483648
    %v2668 = vmul.f32 %v2667, 1.442695
    %v2669 = vpow.pop %v2668
    %v2670 = vadd.f32 %v2669, 1.0
    %v2671 = vrcp.pop %v2670
    %v2672 = vmul.f32 %v2670, %v2671
    %v2673 = vsub.f32 1.0, %v2672
    %v2674 = vmul.f32 %v2671, %v2673
    %v2675 = vadd.f32 %v2671, %v2674
    %vm2676 = vweird.f32 %v2670
    %vm2677 = vweird.f32 %v2671
    %vm2678 = vmor %vm2676, %vm2677
    %v2679 = vsel %vm2678, %v2671, %v2675
    %v2680 = vand.u32 2147483647, %v2670
    %vm2681 = vcmp.eq.f32.partialorder %v2680, 8.507059e+37
    %v2682 = vand.u32 %v2670, 2147483648
    %v2683 = vor.u32 1.1754944e-38, %v2682
    %v2684 = vsel %vm2681, %v2683, %v2679
    %v2685 = vmul.f32 1.0, %v2684
    %v2686 = vtanh.pop %v2665
    %v2687 = vmul.f32 %v2685, %v2617
    %2689 = vrot.lane.b32.xlu0 %v2686, 64
    %v2690 = vpop.permute.xlu0 %2689
    %v2692 = vmul.f32 %v2685, %v2690
    %2694 = vrot.lane.b32.xlu0 %v2692, 32
    %v2695 = vpop.permute.xlu0 %2694
    %v2697 = vadd.f32 %v2687, %v2695
    %v2698 = vtanh.pop %v2697
    %2700 = vrot.lane.b32.xlu0 %v2698, 64
    %v2701 = vpop.permute.xlu0 %2700
    %v2703 = vmul.f32 %v2685, %v2701
    %v2704 = vld [vmem:[%s6] sm:$0xff]
    %v2705 = vld [vmem:[%s6 + $0x8] sm:$0xff]
    %v2706 = vld [vmem:[%s6 + $0x10] sm:$0xff]
    %v2707 = vld [vmem:[%s6 + $0x18] sm:$0xff]
    %v2708 = vld [vmem:[#allocation13] sm:$0x1]
    %2710 = vrot.lane.b32.xlu0 %v2703, 32
    %v2711 = vpop.permute.xlu0 %2710
    %v2712 = vsel %vm144, %v2711, 0
    %2714 = vmatpush.msra.mxu0 0.0
    %2715 = vmatpush.msra.mxu0 0.0
    %2716 = vmatpush.msra.mxu0 0.0
    %2717 = vmatpush.msra.mxu0 0.0
    %2718 = vmatpush.msra.mxu0 0.0
    %2719 = vmatpush.msra.mxu0 0.0
    %2720 = vmatpush.msra.mxu0 0.0
    %2721 = vmatpush.msra.mxu0 0.0
    %2722 = vmatpush.msra.mxu0 0.0
    %2723 = vmatpush.msra.mxu0 0.0
    %2724 = vmatpush.msra.mxu0 0.0
    %2725 = vmatpush.msra.mxu0 0.0
    %2726 = vmatpush.msra.mxu0 %v2707
    %2727 = vmatpush.msra.mxu0 %v2706
    %2728 = vmatpush.msra.mxu0 %v2705
    %2729 = vmatpush.msra.mxu0 %v2704
    %2730 = vmatmul.f32.gmra.mxu0 %v2712
    %v2731 = vpop.f32.mrf.mxu0
    %v2732 = vadd.f32 %v2708, %v2731
    %2733 = vdwg.mxu0
    %v2734 = vxor.u32 %v2732, 2147483648
    %v2735 = vmul.f32 %v2734, 1.442695
    %v2736 = vpow.pop %v2735
    %v2737 = vadd.f32 %v2736, 1.0
    %v2738 = vrcp.pop %v2737
    %v2739 = vmul.f32 %v2737, %v2738
    %v2740 = vsub.f32 1.0, %v2739
    %v2741 = vmul.f32 %v2738, %v2740
    %v2742 = vadd.f32 %v2738, %v2741
    %vm2743 = vweird.f32 %v2737
    %vm2744 = vweird.f32 %v2738
    %vm2745 = vmor %vm2743, %vm2744
    %v2746 = vsel %vm2745, %v2738, %v2742
    %v2747 = vand.u32 2147483647, %v2737
    %vm2748 = vcmp.eq.f32.partialorder %v2747, 8.507059e+37
    %v2749 = vand.u32 %v2737, 2147483648
    %v2750 = vor.u32 1.1754944e-38, %v2749
    %v2751 = vsel %vm2748, %v2750, %v2746
    %v2752 = vmul.f32 1.0, %v2751
    %vm2753 = vcmask 57344
    %2754 = vst.msk [vmem:[%s8] sm:$0x1] %vm2753, %v2752
    %vm2756 = vcmask 253952
    %2757 = vst.msk [vmem:[#allocation15] sm:$0x1] %vm2756, %v2711
    %2759 = vrot.lane.b32.xlu0 %v2697, 96
    %v2760 = vpop.permute.xlu0 %2759
    %2762 = vst.msk [vmem:[#allocation16] sm:$0x1] %vm2756, %v2760
    // Predicated region
    $region62: #{pos_lstm_forward.1} parent=1 // pred_check
      _
    $region63: #{pos_lstm_forward.1} parent=1 // pred_check_branch
      %2764 = sbr.rel (0) target = $region65
    $region64: #{pos_lstm_forward.1} parent=1 // pred_region
      _
    $region65: #{pos_lstm_forward.1} parent=1 // pred_fallthru
      _
    // Predicated region
    $region66: #{pos_lstm_forward.1} parent=1 // pred_check
      _
    $region67: #{pos_lstm_forward.1} parent=1 // pred_check_branch
      %2766 = sbr.rel (0) target = $region69
    $region68: #{pos_lstm_forward.1} parent=1 // pred_region
      %2768 = vsyncadd [#allocation4], 0
      %s2770 = sshll.u32 [#allocation15], 4
      %s2771 = int_to_ptr.vmem [resolvable:$true] %s2770
      %s2772 = sshll.u32 %s9, 4
      %s2773 = int_to_ptr.hbm [resolvable:$true] %s2772
      %2775 = dma.vmem_to_hbm [thread:$0]  %s2771, 16, %s2773, [#allocation4]
    $region69: #{pos_lstm_forward.1} parent=1 // pred_fallthru
      _
    // Predicated region
    $region70: #{pos_lstm_forward.1} parent=1 // pred_check
      _
    $region71: #{pos_lstm_forward.1} parent=1 // pred_check_branch
      %2777 = sbr.rel (0) target = $region73
    $region72: #{pos_lstm_forward.1} parent=1 // pred_region
      %2779 = vsyncadd [#allocation17], 0
      %s2781 = sshll.u32 [#allocation16], 4
      %s2782 = int_to_ptr.vmem [resolvable:$true] %s2781
      %s2783 = sshll.u32 %s10, 4
      %s2784 = int_to_ptr.hbm [resolvable:$true] %s2783
      %2786 = dma.vmem_to_hbm [thread:$0]  %s2782, 16, %s2784, [#allocation17]
    $region73: #{pos_lstm_forward.1} parent=1 // pred_fallthru
      _
    // Predicated region
    $region74: #{pos_lstm_forward.1} parent=1 // pred_check
      _
    $region75: #{pos_lstm_forward.1} parent=1 // pred_check_branch
      %2788 = sbr.rel (0) target = $region77
    $region76: #{pos_lstm_forward.1} parent=1 // pred_region
      _
    $region77: #{pos_lstm_forward.1} parent=1 // pred_fallthru
      _
    // Predicated region
    $region78: #{pos_lstm_forward.1} parent=1 // pred_check
      _
    $region79: #{pos_lstm_forward.1} parent=1 // pred_check_branch
      %2790 = sbr.rel (0) target = $region81
    $region80: #{pos_lstm_forward.1} parent=1 // pred_region
      %2792 = dma.done [#allocation4], 16
    $region81: #{pos_lstm_forward.1} parent=1 // pred_fallthru
      _
    // Predicated region
    $region82: #{pos_lstm_forward.1} parent=1 // pred_check
      _
    $region83: #{pos_lstm_forward.1} parent=1 // pred_check_branch
      %2794 = sbr.rel (0) target = $region85
    $region84: #{pos_lstm_forward.1} parent=1 // pred_region
      %2796 = dma.done [#allocation17], 16
    $region85: #{pos_lstm_forward.1} parent=1 // pred_fallthru
      _
    %2797 = vsyncpa [#allocation3], 1
    %2798 = vsyncpa [#allocation8], 1
    %2799 = vsyncpa [#allocation11], 1
    %2800 = vsyncpa [#allocation14], 1
    %2801 = vsyncpa [#allocation4], 1
    %2802 = vsyncpa [#allocation17], 1
    %2803 = vsyncpa [#allocation5], 1

</llo_original>
